<compile_context>
chip_gen: v7x
topology: tpu7x:2x2x1
jax: 0.10.0
libtpu: 0.0.40
codegen_flags: <defaults>
</compile_context>

<pallas_src>
import functools

import jax
import jax.numpy as jnp
from jax import lax
from jax.experimental import pallas as pl
from jax.experimental.pallas import tpu as pltpu


# ----------------------------- tiling config --------------------------------

TILE_M = 256                       # row tile for in-kernel strip-mining / head grid
LANE = 128                         # hidden / output feature dims padded to this
VMEM_LIMIT = 48 * 1024 * 1024      # safe on v7x (64 MiB/TC) with headroom; > 32 MiB default


def _round_up(x, m):
  return (x + m - 1) // m * m


# ------------------------ fused fixed-point kernel ---------------------------


def _ignn_fixed_point_kernel(a_ref, u_ref, omega_ref, bias_ref, w_ref, h0_ref,
                             o_ref, b_ref, hb_ref, hn_ref, flag_ref,
                             *, max_iters, tol, n_real, tile_m, num_row_tiles):
  """Whole fixed-point solve in one kernel.

  VMEM-resident state (loaded / initialized once, reused every iteration):
    a_ref   (n_pad, n_pad) bf16   normalized adjacency
    w_ref   (h_pad, h_pad) f32    projected recurrent weight (pre-transposed)
    b_ref   (n_pad, h_pad) f32    loop-invariant input term B = U @ Omega + b
    o_ref   (n_pad, h_pad) f32    current H in f32 (doubles as kernel output)
    hb_ref  (n_pad, h_pad) bf16   current H in bf16 (MXU operand)
    hn_ref  (n_pad, h_pad) bf16   staging buffer for next H (RAW safety)
    flag_ref (1,) int32 SMEM      1 while not converged
  """
  h_pad = o_ref.shape[1]

  # ---- one-time init: B = U @ Omega + bias, H carries. Padded rows of B are
  # forced to exactly 0 so they stay 0 through relu and never pollute the
  # residual. ----
  def init_row(r, carry):
    r0 = pl.multiple_of(r * tile_m, tile_m)
    b_val = (jnp.dot(u_ref[pl.ds(r0, tile_m), :], omega_ref[...],
                     preferred_element_type=jnp.float32) + bias_ref[...])
    rows = lax.broadcasted_iota(jnp.int32, (tile_m, h_pad), 0) + r0
    b_ref[pl.ds(r0, tile_m), :] = jnp.where(rows < n_real, b_val, 0.0)
    h0_tile = h0_ref[pl.ds(r0, tile_m), :]
    o_ref[pl.ds(r0, tile_m), :] = h0_tile
    hb_ref[pl.ds(r0, tile_m), :] = h0_tile.astype(jnp.bfloat16)
    return carry

  lax.fori_loop(0, num_row_tiles, init_row, 0)
  flag_ref[0] = jnp.int32(1)

  # ---- fixed-point iterations  H <- relu((A @ H) @ W + B), early-stop skip ----
  def iter_body(it, carry):
    not_converged = flag_ref[0] != 0

    @pl.when(not_converged)
    def _():
      def row_body(r, res):
        num, den = res
        r0 = pl.multiple_of(r * tile_m, tile_m)
        # dominant matmul: bf16 x bf16 with f32 accumulation; A row-slab and
        # the full H operand are both VMEM-resident (no HBM traffic here).
        ah = jnp.dot(a_ref[pl.ds(r0, tile_m), :], hb_ref[...],
                     preferred_element_type=jnp.float32)
        # small epilogue matmul in f32 ((A@H)@W == A@(H@W)) -- no extra bf16
        # rounding injected on the accumulator.
        hw = jnp.dot(ah, w_ref[...], preferred_element_type=jnp.float32)
        h_new = jnp.maximum(hw + b_ref[pl.ds(r0, tile_m), :], 0.0)
        h_old = o_ref[pl.ds(r0, tile_m), :]
        d = h_new - h_old
        num = num + jnp.sum(d * d, keepdims=True)
        den = den + jnp.sum(h_new * h_new, keepdims=True)
        o_ref[pl.ds(r0, tile_m), :] = h_new                         # f32 carry
        hn_ref[pl.ds(r0, tile_m), :] = h_new.astype(jnp.bfloat16)   # staged bf16
        return num, den

      num, den = lax.fori_loop(
          0, num_row_tiles, row_body,
          (jnp.zeros((1, 1), jnp.float32), jnp.zeros((1, 1), jnp.float32)))

      # publish the staged bf16 H only after every row tile has consumed the
      # old one (avoids the read-after-write hazard across row tiles).
      def publish_row(r, c2):
        r0 = pl.multiple_of(r * tile_m, tile_m)
        hb_ref[pl.ds(r0, tile_m), :] = hn_ref[pl.ds(r0, tile_m), :]
        return c2

      lax.fori_loop(0, num_row_tiles, publish_row, 0)

      # fused convergence check (f32, real region only):
      #   ||H_new - H_old||^2 > tol^2 * ||H_new||^2
      num_s = num[0, 0]
      den_s = den[0, 0]
      flag_ref[0] = (num_s > (tol * tol) * den_s).astype(jnp.int32)

    return carry

  lax.fori_loop(0, max_iters, iter_body, 0)
  # o_ref already holds the final f32 H.


def ignn_fixed_point(a_bf16, u_bf16, omega_bf16, bias_f32, w_f32, h0_f32, *,
                     max_iters, tol, n_real):
  n_pad = a_bf16.shape[0]
  f_in = u_bf16.shape[1]
  h_pad = w_f32.shape[0]
  assert n_pad % TILE_M == 0
  num_row_tiles = n_pad // TILE_M

  kernel = functools.partial(
      _ignn_fixed_point_kernel, max_iters=int(max_iters), tol=float(tol),
      n_real=int(n_real), tile_m=TILE_M, num_row_tiles=num_row_tiles)

  return pl.pallas_call(
      kernel,
      out_shape=jax.ShapeDtypeStruct((n_pad, h_pad), jnp.float32),
      grid_spec=pltpu.PrefetchScalarGridSpec(
          num_scalar_prefetch=0,
          grid=(1,),
          in_specs=[
              pl.BlockSpec((n_pad, n_pad), lambda i: (0, 0)),   # A_hat (bf16)
              pl.BlockSpec((n_pad, f_in), lambda i: (0, 0)),    # U (bf16)
              pl.BlockSpec((f_in, h_pad), lambda i: (0, 0)),    # Omega (bf16)
              pl.BlockSpec((1, h_pad), lambda i: (0, 0)),       # bias (f32)
              pl.BlockSpec((h_pad, h_pad), lambda i: (0, 0)),   # W (f32)
              pl.BlockSpec((n_pad, h_pad), lambda i: (0, 0)),   # H0 (f32)
          ],
          out_specs=pl.BlockSpec((n_pad, h_pad), lambda i: (0, 0)),
          scratch_shapes=[
              pltpu.VMEM((n_pad, h_pad), jnp.float32),    # B (loop-invariant)
              pltpu.VMEM((n_pad, h_pad), jnp.bfloat16),   # H bf16 (current)
              pltpu.VMEM((n_pad, h_pad), jnp.bfloat16),   # H bf16 (staging)
              pltpu.SMEM((1,), jnp.int32),                # converged flag
          ]),
      compiler_params=pltpu.CompilerParams(
          dimension_semantics=("arbitrary",),
          vmem_limit_bytes=VMEM_LIMIT),
  )(a_bf16, u_bf16, omega_bf16, bias_f32, w_f32, h0_f32)


# ------------------------------ head kernel ----------------------------------


def _head_kernel(h_ref, w_ref, b_ref, o_ref, *, out_dim):
  """Prediction head + log_softmax over a lane-padded (128-wide) output tile."""
  logits = jnp.dot(h_ref[...], w_ref[...],
                   preferred_element_type=jnp.float32) + b_ref[...]
  col = lax.broadcasted_iota(jnp.int32, logits.shape, 1)
  valid = col < out_dim
  masked = jnp.where(valid, logits, -1e30)
  m = jnp.max(masked, axis=-1, keepdims=True)
  e = jnp.where(valid, jnp.exp(masked - m), 0.0)
  lse = jnp.log(jnp.sum(e, axis=-1, keepdims=True))
  o_ref[...] = jnp.where(valid, masked - m - lse, 0.0)


def prediction_head_logsoftmax(h_f32, w_head_f32, b_head_f32, out_dim):
  n_pad, h_pad = h_f32.shape
  out_pad = w_head_f32.shape[1]
  grid = (n_pad // TILE_M,)
  kernel = functools.partial(_head_kernel, out_dim=out_dim)
  return pl.pallas_call(
      kernel,
      out_shape=jax.ShapeDtypeStruct((n_pad, out_pad), jnp.float32),
      grid_spec=pltpu.PrefetchScalarGridSpec(
          num_scalar_prefetch=0,
          grid=grid,
          in_specs=[
              pl.BlockSpec((TILE_M, h_pad), lambda i: (i, 0)),
              pl.BlockSpec((h_pad, out_pad), lambda i: (0, 0)),
              pl.BlockSpec((1, out_pad), lambda i: (0, 0)),
          ],
          out_specs=pl.BlockSpec((TILE_M, out_pad), lambda i: (i, 0))),
      compiler_params=pltpu.CompilerParams(
          dimension_semantics=("parallel",),
          vmem_limit_bytes=VMEM_LIMIT),
  )(h_f32, w_head_f32, b_head_f32)


# ----------------------------- plain-JAX glue --------------------------------


def build_normalized_adjacency(edge_index, num_nodes):
  """A_hat = D^-1/2 (A + I) D^-1/2, scatter-ADD so multi-edges are counted."""
  src, dst = edge_index[0], edge_index[1]
  a = jnp.zeros((num_nodes, num_nodes), jnp.float32)
  a = a.at[dst, src].add(1.0)                       # src -> dst messages
  a = a + jnp.eye(num_nodes, dtype=jnp.float32)     # self loops (add semantics)
  deg = jnp.sum(a, axis=1)
  d_inv_sqrt = jnp.where(deg > 0, 1.0 / jnp.sqrt(deg), 0.0)
  return a * d_inv_sqrt[:, None] * d_inv_sqrt[None, :]


def compute_spectral_radius(a, num_iters=64):
  """Power iteration (plain JAX preprocessing, mirrors compute_spectral_radius)."""
  n = a.shape[0]
  v = jnp.ones((n, 1), jnp.float32) / jnp.sqrt(jnp.float32(n))

  def body(_, v):
    v = a @ v
    return v / (jnp.linalg.norm(v) + 1e-12)

  v = lax.fori_loop(0, num_iters, body, v)
  return jnp.linalg.norm(a @ v) / (jnp.linalg.norm(v) + 1e-12)


def projection_norm_inf(w, radius):
  """Project each row of w onto the L1 ball of `radius` (rows already inside
  are untouched), enforcing ||w||_inf <= radius (mirrors projection_norm_inf)."""
  habs = jnp.abs(w)
  sgn = jnp.sign(w)
  u = jnp.sort(habs, axis=-1)[:, ::-1]                       # descending
  ind = jnp.arange(1, w.shape[-1] + 1, dtype=w.dtype)
  cssv = jnp.cumsum(u, axis=-1) - radius
  cond = (u * ind) > cssv
  rho = jnp.maximum(jnp.sum(cond.astype(jnp.int32), axis=-1), 1)
  theta = jnp.take_along_axis(cssv, (rho - 1)[:, None], axis=-1)
  theta = theta / rho[:, None].astype(w.dtype)
  proj = sgn * jnp.maximum(habs - theta, 0.0)
  over = jnp.sum(habs, axis=-1, keepdims=True) > radius
  return jnp.where(over, proj, w)


def ignn_forward(node_index, node_feature, edge_index, params, *,
                 kappa, max_iters, tol):
  """Full ImplicitGraphNeuralNet forward (inference mode)."""
  n, f_in = node_feature.shape
  hidden = params["w_rec"].shape[0]
  out_dim = params["w_head"].shape[1]

  # ---- preprocessing (plain-JAX, one-time per call) ----
  a_hat = build_normalized_adjacency(edge_index, n)
  spectral_radius = compute_spectral_radius(a_hat)
  w_rec = projection_norm_inf(params["w_rec"], kappa / spectral_radius)

  # ---- lane/row padding (numerically exact, sliced off at the end) ----
  n_pad = _round_up(n, TILE_M)
  h_pad = _round_up(hidden, LANE)
  out_pad = _round_up(out_dim, LANE)

  # Fused kernel keeps A_hat (bf16) plus a handful of (n_pad, h_pad) buffers
  # resident in VMEM for the whole solve: rough budget check.
  approx_vmem = (2 * n_pad * n_pad * 2            # A bf16, double-buffered worst case
                 + 8 * n_pad * h_pad * 4          # H0/out/B/bf16 buffers (upper bound)
                 + 2 * h_pad * h_pad * 4)
  if approx_vmem > VMEM_LIMIT:
    # TODO(synk): streamed / block-sparse A_hat path for graphs > VMEM.
    raise NotImplementedError(
        "graph too large for the VMEM-resident fused IGNN kernel")

  a_hat_p = jnp.zeros((n_pad, n_pad), jnp.float32).at[:n, :n].set(a_hat)
  a_hat_bf16 = a_hat_p.astype(jnp.bfloat16)

  u_bf16 = (jnp.zeros((n_pad, f_in), jnp.float32).at[:n].set(node_feature)
            .astype(jnp.bfloat16))
  omega_bf16 = (jnp.zeros((f_in, h_pad), jnp.float32)
                .at[:, :hidden].set(params["omega"]).astype(jnp.bfloat16))
  b_layer_p = jnp.zeros((1, h_pad), jnp.float32).at[0, :hidden].set(
      params["b_layer"])

  # nn.Linear computes x @ W.weight.T, so the kernel uses w_rec.T (kept f32)
  w_used = jnp.zeros((h_pad, h_pad), jnp.float32).at[:hidden, :hidden].set(
      w_rec.T)

  w_head_p = jnp.zeros((h_pad, out_pad), jnp.float32).at[:hidden, :out_dim].set(
      params["w_head"])
  b_head_p = jnp.zeros((1, out_pad), jnp.float32).at[0, :out_dim].set(
      params["b_head"])

  # initial hidden state from the (frozen) embedding table
  x0 = jnp.take(params["embedding"], node_index, axis=0)
  h0 = jnp.zeros((n_pad, h_pad), jnp.float32).at[:n, :hidden].set(x0)

  # ---- fused fixed-point solve (single pallas_call, everything VMEM-resident) ----
  h_final = ignn_fixed_point(a_hat_bf16, u_bf16, omega_bf16, b_layer_p, w_used,
                             h0, max_iters=max_iters, tol=tol, n_real=n)

  # ---- dropout (eval-mode identity) + prediction head + log_softmax ----
  # TODO(synk): training-mode dropout (F.dropout with drop_prob) not implemented.
  log_probs_p = prediction_head_logsoftmax(h_final, w_head_p, b_head_p, out_dim)
  log_probs = log_probs_p[:n, :out_dim]

  # functional equivalent of `self.embedding.weight[node_index] = x.detach()`
  h_real = h_final[:n, :hidden]
  new_embedding = params["embedding"].at[node_index].set(h_real)

  return log_probs, new_embedding


def init_params(key, num_nodes, input_dim, hidden_dim, output_dim):
  k_emb, k_w, k_o, k_h = jax.random.split(key, 4)
  s_w = 1.0 / jnp.sqrt(hidden_dim)
  s_o = 1.0 / jnp.sqrt(input_dim)
  s_h = 1.0 / jnp.sqrt(hidden_dim)
  return dict(
      embedding=jax.random.normal(k_emb, (num_nodes, hidden_dim), jnp.float32),
      w_rec=jax.random.uniform(k_w, (hidden_dim, hidden_dim), jnp.float32,
                               -s_w, s_w),
      omega=jax.random.uniform(k_o, (input_dim, hidden_dim), jnp.float32,
                               -s_o, s_o),
      b_layer=jnp.zeros((hidden_dim,), jnp.float32),
      w_head=jax.random.uniform(k_h, (hidden_dim, output_dim), jnp.float32,
                                -s_h, s_h),
      b_head=jnp.zeros((output_dim,), jnp.float32),
  )


if __name__ == "__main__":
  # small synthetic graph consistent with the module's forward:
  #   N nodes, input_dim node features, hidden_dim recurrent state,
  #   output_dim classes; N pads to 512 so the in-kernel row loop actually
  #   strip-mines two 256-row tiles over the VMEM-resident A_hat.
  N, INPUT_DIM, HIDDEN_DIM, OUTPUT_DIM = 300, 16, 32, 7
  E = 1200
  KAPPA, MAX_ITERS, TOL = 0.95, 16, 1e-3

  key = jax.random.PRNGKey(0)
  k_x, k_e, k_p = jax.random.split(key, 3)

  node_feature = jax.random.normal(k_x, (N, INPUT_DIM), jnp.float32)
  edge_index = jax.random.randint(k_e, (2, E), 0, N, jnp.int32)
  node_index = jnp.arange(N, dtype=jnp.int32)

  params = init_params(k_p, N, INPUT_DIM, HIDDEN_DIM, OUTPUT_DIM)

  fwd = jax.jit(functools.partial(ignn_forward, kappa=KAPPA,
                                  max_iters=MAX_ITERS, tol=TOL))
  log_probs, new_emb = fwd(node_index, node_feature, edge_index, params)
  log_probs = jax.block_until_ready(log_probs)

  assert log_probs.shape == (N, OUTPUT_DIM)
  assert new_emb.shape == (N, HIDDEN_DIM)
  assert bool(jnp.all(jnp.isfinite(log_probs)))
  # log_softmax rows must sum to ~1 after exp
  assert jnp.allclose(jnp.sum(jnp.exp(log_probs), axis=-1), 1.0, atol=1e-3)

  print("KERNEL_OK")
</pallas_src>

<mosaic_0001>
module attributes {stable_mosaic.version = 11 : i64} {
  func.func private @main(%arg0: i32) attributes {dimension_semantics = [#tpu.dimension_semantics<core_parallel>], iteration_bounds = array<i64: 2>, tpu.core_type = #tpu.core_type<sc_scalar_subcore>, window_params = []} {
    return
  }
}

module attributes {stable_mosaic.version = 11 : i64} {
  func.func private @main(%arg0: i32) attributes {dimension_semantics = [#tpu.dimension_semantics<core_parallel>], iteration_bounds = array<i64: 2>, tpu.core_type = #tpu.core_type<sc_scalar_subcore>, window_params = []} {
    return
  }
}

module attributes {stable_mosaic.version = 11 : i64} {
  func.func @_ignn_fixed_point_kernel(%arg0: i32, %arg1: memref<512x512xbf16, #tpu.memory_space<vmem>>, %arg2: memref<512x16xbf16, #tpu.memory_space<vmem>>, %arg3: memref<16x128xbf16, #tpu.memory_space<vmem>>, %arg4: memref<1x128xf32, #tpu.memory_space<vmem>>, %arg5: memref<128x128xf32, #tpu.memory_space<vmem>>, %arg6: memref<512x128xf32, #tpu.memory_space<vmem>>, %arg7: memref<512x128xf32, #tpu.memory_space<vmem>>, %arg8: memref<512x128xf32, #tpu.memory_space<vmem>>, %arg9: memref<512x128xbf16, #tpu.memory_space<vmem>>, %arg10: memref<512x128xbf16, #tpu.memory_space<vmem>>, %arg11: memref<1xi32, #tpu.memory_space<smem>>) attributes {dimension_semantics = [#tpu.dimension_semantics<arbitrary>], iteration_bounds = array<i64: 1>, scalar_prefetch = 0 : i64, scratch_operands = 4 : i64, tpu.core_type = #tpu.core_type<tc>, window_params = [{pipeline_mode = #tpu.pipeline_mode<synchronous>, transform_indices = @transform_0, window_bounds = array<i64: 512, 512>}, {pipeline_mode = #tpu.pipeline_mode<synchronous>, transform_indices = @transform_1, window_bounds = array<i64: 512, 16>}, {pipeline_mode = #tpu.pipeline_mode<synchronous>, transform_indices = @transform_2, window_bounds = array<i64: 16, 128>}, {pipeline_mode = #tpu.pipeline_mode<synchronous>, transform_indices = @transform_3, window_bounds = array<i64: 1, 128>}, {pipeline_mode = #tpu.pipeline_mode<synchronous>, transform_indices = @transform_4, window_bounds = array<i64: 128, 128>}, {pipeline_mode = #tpu.pipeline_mode<synchronous>, transform_indices = @transform_5, window_bounds = array<i64: 512, 128>}, {pipeline_mode = #tpu.pipeline_mode<synchronous>, transform_indices = @transform_6, window_bounds = array<i64: 512, 128>}]} {
    %c0_i32 = arith.constant 0 : i32
    %c2_i32 = arith.constant 2 : i32
    %0 = arith.addi %c0_i32, %c2_i32 : i32
    %c1_i32 = arith.constant 1 : i32
    scf.for %arg12 = %c0_i32 to %0 step %c1_i32  : i32 {
      %c256_i32 = arith.constant 256 : i32
      %3 = arith.muli %arg12, %c256_i32 : i32
      %4 = tpu.assume_multiple %3, 256 : i32
      %5 = arith.index_cast %4 : i32 to index
      %c0_4 = arith.constant 0 : index
      %6 = vector.load %arg2[%5, %c0_4] : memref<512x16xbf16, #tpu.memory_space<vmem>>, vector<256x16xbf16>
      %c0_5 = arith.constant 0 : index
      %c0_6 = arith.constant 0 : index
      %7 = vector.load %arg3[%c0_5, %c0_6] : memref<16x128xbf16, #tpu.memory_space<vmem>>, vector<16x128xbf16>
      %cst = arith.constant dense<0.000000e+00> : vector<256x128xf32>
      %8 = tpu.matmul %6, %7, %cst {dimension_numbers = #tpu.dot_dimension_numbers<[1], [0], [0], [1], [0, 0, 1, 1], [], []>} : vector<256x16xbf16>, vector<16x128xbf16>, vector<256x128xf32> -> vector<256x128xf32>
      %c0_7 = arith.constant 0 : index
      %c0_8 = arith.constant 0 : index
      %9 = vector.load %arg4[%c0_7, %c0_8] : memref<1x128xf32, #tpu.memory_space<vmem>>, vector<1x128xf32>
      %10 = vector.broadcast %9 : vector<1x128xf32> to vector<256x128xf32>
      %11 = arith.addf %8, %10 : vector<256x128xf32>
      %12 = tpu.iota {dimensions = array<i32: 0>} : vector<256x128xi32>
      %13 = vector.broadcast %4 : i32 to vector<256x128xi32>
      %14 = arith.addi %12, %13 : vector<256x128xi32>
      %c300_i32 = arith.constant 300 : i32
      %15 = vector.broadcast %c300_i32 : i32 to vector<256x128xi32>
      %16 = arith.cmpi slt, %14, %15 : vector<256x128xi32>
      %cst_9 = arith.constant 0.000000e+00 : f32
      %17 = vector.broadcast %cst_9 : f32 to vector<256x128xf32>
      %18 = arith.select %16, %11, %17 : vector<256x128xi1>, vector<256x128xf32>
      %19 = arith.index_cast %4 : i32 to index
      %c0_10 = arith.constant 0 : index
      %20 = vector.load %arg8[%19, %c0_10] : memref<512x128xf32, #tpu.memory_space<vmem>>, vector<256x128xf32>
      tpu.vector_store %arg8[%19, %c0_10], %18 {strides = array<i32>} : memref<512x128xf32, #tpu.memory_space<vmem>>, vector<256x128xf32>,
      %21 = arith.index_cast %4 : i32 to index
      %c0_11 = arith.constant 0 : index
      %22 = vector.load %arg6[%21, %c0_11] : memref<512x128xf32, #tpu.memory_space<vmem>>, vector<256x128xf32>
      %23 = arith.index_cast %4 : i32 to index
      %c0_12 = arith.constant 0 : index
      %24 = vector.load %arg7[%23, %c0_12] : memref<512x128xf32, #tpu.memory_space<vmem>>, vector<256x128xf32>
      tpu.vector_store %arg7[%23, %c0_12], %22 {strides = array<i32>} : memref<512x128xf32, #tpu.memory_space<vmem>>, vector<256x128xf32>,
      %25 = arith.truncf %22 : vector<256x128xf32> to vector<256x128xbf16>
      %26 = arith.index_cast %4 : i32 to index
      %c0_13 = arith.constant 0 : index
      %27 = vector.load %arg9[%26, %c0_13] : memref<512x128xbf16, #tpu.memory_space<vmem>>, vector<256x128xbf16>
      tpu.vector_store %arg9[%26, %c0_13], %25 {strides = array<i32>} : memref<512x128xbf16, #tpu.memory_space<vmem>>, vector<256x128xbf16>,
    }
    %c2_i32_0 = arith.constant 2 : i32
    %c1_i32_1 = arith.constant 1 : i32
    %c0 = arith.constant 0 : index
    %1 = memref.load %arg11[%c0] : memref<1xi32, #tpu.memory_space<smem>>
    memref.store %c1_i32_1, %arg11[%c0] : memref<1xi32, #tpu.memory_space<smem>>
    %c0_i32_2 = arith.constant 0 : i32
    %c16_i32 = arith.constant 16 : i32
    %2 = arith.addi %c0_i32_2, %c16_i32 : i32
    %c1_i32_3 = arith.constant 1 : i32
    scf.for %arg12 = %c0_i32_2 to %2 step %c1_i32_3  : i32 {
      %c0_4 = arith.constant 0 : index
      %3 = memref.load %arg11[%c0_4] : memref<1xi32, #tpu.memory_space<smem>>
      %c0_i32_5 = arith.constant 0 : i32
      %4 = arith.cmpi ne, %3, %c0_i32_5 : i32
      %5 = arith.extui %4 : i1 to i32
      %c0_i32_6 = arith.constant 0 : i32
      %6 = arith.cmpi ne, %5, %c0_i32_6 : i32
      scf.if %6 {
        %cst = arith.constant 0.000000e+00 : f32
        %7 = vector.broadcast %cst : f32 to vector<1x1xf32>
        %cst_7 = arith.constant 0.000000e+00 : f32
        %8 = vector.broadcast %cst_7 : f32 to vector<1x1xf32>
        %c0_i32_8 = arith.constant 0 : i32
        %c2_i32_9 = arith.constant 2 : i32
        %9 = arith.addi %c0_i32_8, %c2_i32_9 : i32
        %c1_i32_10 = arith.constant 1 : i32
        %10:2 = scf.for %arg13 = %c0_i32_8 to %9 step %c1_i32_10 iter_args(%arg14 = %7, %arg15 = %8) -> (vector<1x1xf32>, vector<1x1xf32>)  : i32 {
          %c256_i32 = arith.constant 256 : i32
          %18 = arith.muli %arg13, %c256_i32 : i32
          %19 = tpu.assume_multiple %18, 256 : i32
          %20 = arith.index_cast %19 : i32 to index
          %c0_18 = arith.constant 0 : index
          %21 = vector.load %arg1[%20, %c0_18] : memref<512x512xbf16, #tpu.memory_space<vmem>>, vector<256x512xbf16>
          %c0_19 = arith.constant 0 : index
          %c0_20 = arith.constant 0 : index
          %22 = vector.load %arg9[%c0_19, %c0_20] : memref<512x128xbf16, #tpu.memory_space<vmem>>, vector<512x128xbf16>
          %cst_21 = arith.constant dense<0.000000e+00> : vector<256x128xf32>
          %23 = tpu.matmul %21, %22, %cst_21 {dimension_numbers = #tpu.dot_dimension_numbers<[1], [0], [0], [1], [0, 0, 1, 1], [], []>} : vector<256x512xbf16>, vector<512x128xbf16>, vector<256x128xf32> -> vector<256x128xf32>
          %c0_22 = arith.constant 0 : index
          %c0_23 = arith.constant 0 : index
          %24 = vector.load %arg5[%c0_22, %c0_23] : memref<128x128xf32, #tpu.memory_space<vmem>>, vector<128x128xf32>
          %cst_24 = arith.constant dense<0.000000e+00> : vector<256x128xf32>
          %25 = tpu.matmul %23, %24, %cst_24 {dimension_numbers = #tpu.dot_dimension_numbers<[1], [0], [0], [1], [0, 0, 1, 1], [], []>} : vector<256x128xf32>, vector<128x128xf32>, vector<256x128xf32> -> vector<256x128xf32>
          %26 = arith.index_cast %19 : i32 to index
          %c0_25 = arith.constant 0 : index
          %27 = vector.load %arg8[%26, %c0_25] : memref<512x128xf32, #tpu.memory_space<vmem>>, vector<256x128xf32>
          %28 = arith.addf %25, %27 : vector<256x128xf32>
          %cst_26 = arith.constant 0.000000e+00 : f32
          %29 = vector.broadcast %cst_26 : f32 to vector<256x128xf32>
          %30 = arith.maximumf %28, %29 : vector<256x128xf32>
          %31 = arith.index_cast %19 : i32 to index
          %c0_27 = arith.constant 0 : index
          %32 = vector.load %arg7[%31, %c0_27] : memref<512x128xf32, #tpu.memory_space<vmem>>, vector<256x128xf32>
          %33 = arith.subf %30, %32 : vector<256x128xf32>
          %34 = arith.mulf %33, %33 : vector<256x128xf32>
          %35 = vector.shape_cast %34 : vector<256x128xf32> to vector<1x256x128xf32>
          %cst_28 = arith.constant dense<0.000000e+00> : vector<1xf32>
          %36 = vector.multi_reduction <add>, %35, %cst_28 [1, 2] : vector<1x256x128xf32> to vector<1xf32>
          %37 = vector.shape_cast %36 : vector<1xf32> to vector<1x1x1xf32>
          %38 = vector.extract %37[0, 0, 0] : f32 from vector<1x1x1xf32>
          %39 = vector.broadcast %38 : f32 to vector<1x1xf32>
          %40 = arith.addf %arg14, %39 : vector<1x1xf32>
          %41 = arith.mulf %30, %30 : vector<256x128xf32>
          %42 = vector.shape_cast %41 : vector<256x128xf32> to vector<1x256x128xf32>
          %cst_29 = arith.constant dense<0.000000e+00> : vector<1xf32>
          %43 = vector.multi_reduction <add>, %42, %cst_29 [1, 2] : vector<1x256x128xf32> to vector<1xf32>
          %44 = vector.shape_cast %43 : vector<1xf32> to vector<1x1x1xf32>
          %45 = vector.extract %44[0, 0, 0] : f32 from vector<1x1x1xf32>
          %46 = vector.broadcast %45 : f32 to vector<1x1xf32>
          %47 = arith.addf %arg15, %46 : vector<1x1xf32>
          %48 = arith.index_cast %19 : i32 to index
          %c0_30 = arith.constant 0 : index
          %49 = vector.load %arg7[%48, %c0_30] : memref<512x128xf32, #tpu.memory_space<vmem>>, vector<256x128xf32>
          tpu.vector_store %arg7[%48, %c0_30], %30 {strides = array<i32>} : memref<512x128xf32, #tpu.memory_space<vmem>>, vector<256x128xf32>,
          %50 = arith.truncf %30 : vector<256x128xf32> to vector<256x128xbf16>
          %51 = arith.index_cast %19 : i32 to index
          %c0_31 = arith.constant 0 : index
          %52 = vector.load %arg10[%51, %c0_31] : memref<512x128xbf16, #tpu.memory_space<vmem>>, vector<256x128xbf16>
          tpu.vector_store %arg10[%51, %c0_31], %50 {strides = array<i32>} : memref<512x128xbf16, #tpu.memory_space<vmem>>, vector<256x128xbf16>,
          scf.yield %40, %47 : vector<1x1xf32>, vector<1x1xf32>
        }
        %c2_i32_11 = arith.constant 2 : i32
        %c0_i32_12 = arith.constant 0 : i32
        %c2_i32_13 = arith.constant 2 : i32
        %11 = arith.addi %c0_i32_12, %c2_i32_13 : i32
        %c1_i32_14 = arith.constant 1 : i32
        scf.for %arg13 = %c0_i32_12 to %11 step %c1_i32_14  : i32 {
          %c256_i32 = arith.constant 256 : i32
          %18 = arith.muli %arg13, %c256_i32 : i32
          %19 = tpu.assume_multiple %18, 256 : i32
          %20 = arith.index_cast %19 : i32 to index
          %c0_18 = arith.constant 0 : index
          %21 = vector.load %arg10[%20, %c0_18] : memref<512x128xbf16, #tpu.memory_space<vmem>>, vector<256x128xbf16>
          %22 = arith.index_cast %19 : i32 to index
          %c0_19 = arith.constant 0 : index
          %23 = vector.load %arg9[%22, %c0_19] : memref<512x128xbf16, #tpu.memory_space<vmem>>, vector<256x128xbf16>
          tpu.vector_store %arg9[%22, %c0_19], %21 {strides = array<i32>} : memref<512x128xbf16, #tpu.memory_space<vmem>>, vector<256x128xbf16>,
        }
        %c2_i32_15 = arith.constant 2 : i32
        %12 = vector.extract %10#0[0, 0] : f32 from vector<1x1xf32>
        %13 = vector.extract %10#1[0, 0] : f32 from vector<1x1xf32>
        %cst_16 = arith.constant 9.99999997E-7 : f32
        %14 = arith.mulf %cst_16, %13 : f32
        %15 = arith.cmpf ogt, %12, %14 : f32
        %16 = arith.extui %15 : i1 to i32
        %c0_17 = arith.constant 0 : index
        %17 = memref.load %arg11[%c0_17] : memref<1xi32, #tpu.memory_space<smem>>
        memref.store %16, %arg11[%c0_17] : memref<1xi32, #tpu.memory_space<smem>>
      } else {
      }
    }
    return
  }
  func.func @transform_0(%arg0: i32) -> (i32, i32) {
    %c0_i32 = arith.constant 0 : i32
    %c0_i32_0 = arith.constant 0 : i32
    %c0_i32_1 = arith.constant 0 : i32
    return %c0_i32, %c0_i32_0 : i32, i32
  }
  func.func @transform_1(%arg0: i32) -> (i32, i32) {
    %c0_i32 = arith.constant 0 : i32
    %c0_i32_0 = arith.constant 0 : i32
    %c0_i32_1 = arith.constant 0 : i32
    return %c0_i32, %c0_i32_0 : i32, i32
  }
  func.func @transform_2(%arg0: i32) -> (i32, i32) {
    %c0_i32 = arith.constant 0 : i32
    %c0_i32_0 = arith.constant 0 : i32
    %c0_i32_1 = arith.constant 0 : i32
    return %c0_i32, %c0_i32_0 : i32, i32
  }
  func.func @transform_3(%arg0: i32) -> (i32, i32) {
    %c0_i32 = arith.constant 0 : i32
    %c0_i32_0 = arith.constant 0 : i32
    %c0_i32_1 = arith.constant 0 : i32
    return %c0_i32, %c0_i32_0 : i32, i32
  }
  func.func @transform_4(%arg0: i32) -> (i32, i32) {
    %c0_i32 = arith.constant 0 : i32
    %c0_i32_0 = arith.constant 0 : i32
    %c0_i32_1 = arith.constant 0 : i32
    return %c0_i32, %c0_i32_0 : i32, i32
  }
  func.func @transform_5(%arg0: i32) -> (i32, i32) {
    %c0_i32 = arith.constant 0 : i32
    %c0_i32_0 = arith.constant 0 : i32
    %c0_i32_1 = arith.constant 0 : i32
    return %c0_i32, %c0_i32_0 : i32, i32
  }
  func.func @transform_6(%arg0: i32) -> (i32, i32) {
    %c0_i32 = arith.constant 0 : i32
    %c0_i32_0 = arith.constant 0 : i32
    %c0_i32_1 = arith.constant 0 : i32
    return %c0_i32, %c0_i32_0 : i32, i32
  }
}

module attributes {stable_mosaic.version = 11 : i64} {
  func.func @_head_kernel(%arg0: i32, %arg1: memref<256x128xf32, #tpu.memory_space<vmem>>, %arg2: memref<128x128xf32, #tpu.memory_space<vmem>>, %arg3: memref<1x128xf32, #tpu.memory_space<vmem>>, %arg4: memref<256x128xf32, #tpu.memory_space<vmem>>) attributes {dimension_semantics = [#tpu.dimension_semantics<parallel>], iteration_bounds = array<i64: 2>, scalar_prefetch = 0 : i64, scratch_operands = 0 : i64, tpu.core_type = #tpu.core_type<tc>, window_params = [{transform_indices = @transform_0, window_bounds = array<i64: 256, 128>}, {pipeline_mode = #tpu.pipeline_mode<synchronous>, transform_indices = @transform_1, window_bounds = array<i64: 128, 128>}, {pipeline_mode = #tpu.pipeline_mode<synchronous>, transform_indices = @transform_2, window_bounds = array<i64: 1, 128>}, {transform_indices = @transform_3, window_bounds = array<i64: 256, 128>}]} {
    %c0 = arith.constant 0 : index
    %c0_0 = arith.constant 0 : index
    %0 = vector.load %arg1[%c0, %c0_0] : memref<256x128xf32, #tpu.memory_space<vmem>>, vector<256x128xf32>
    %c0_1 = arith.constant 0 : index
    %c0_2 = arith.constant 0 : index
    %1 = vector.load %arg2[%c0_1, %c0_2] : memref<128x128xf32, #tpu.memory_space<vmem>>, vector<128x128xf32>
    %cst = arith.constant dense<0.000000e+00> : vector<256x128xf32>
    %2 = tpu.matmul %0, %1, %cst {dimension_numbers = #tpu.dot_dimension_numbers<[1], [0], [0], [1], [0, 0, 1, 1], [], []>} : vector<256x128xf32>, vector<128x128xf32>, vector<256x128xf32> -> vector<256x128xf32>
    %c0_3 = arith.constant 0 : index
    %c0_4 = arith.constant 0 : index
    %3 = vector.load %arg3[%c0_3, %c0_4] : memref<1x128xf32, #tpu.memory_space<vmem>>, vector<1x128xf32>
    %4 = vector.broadcast %3 : vector<1x128xf32> to vector<256x128xf32>
    %5 = arith.addf %2, %4 : vector<256x128xf32>
    %6 = tpu.iota {dimensions = array<i32: 1>} : vector<256x128xi32>
    %c7_i32 = arith.constant 7 : i32
    %7 = vector.broadcast %c7_i32 : i32 to vector<256x128xi32>
    %8 = arith.cmpi slt, %6, %7 : vector<256x128xi32>
    %cst_5 = arith.constant -1.000000e+30 : f32
    %9 = vector.broadcast %cst_5 : f32 to vector<256x128xf32>
    %10 = arith.select %8, %5, %9 : vector<256x128xi1>, vector<256x128xf32>
    %cst_6 = arith.constant dense<0xFF800000> : vector<256xf32>
    %11 = vector.multi_reduction <maximumf>, %10, %cst_6 [1] : vector<256x128xf32> to vector<256xf32>
    %12 = vector.shape_cast %11 : vector<256xf32> to vector<256x1xf32>
    %13 = vector.broadcast %12 : vector<256x1xf32> to vector<256x128xf32>
    %14 = arith.subf %10, %13 : vector<256x128xf32>
    %15 = math.exp %14 : vector<256x128xf32>
    %cst_7 = arith.constant 0.000000e+00 : f32
    %16 = vector.broadcast %cst_7 : f32 to vector<256x128xf32>
    %17 = arith.select %8, %15, %16 : vector<256x128xi1>, vector<256x128xf32>
    %cst_8 = arith.constant dense<0.000000e+00> : vector<256xf32>
    %18 = vector.multi_reduction <add>, %17, %cst_8 [1] : vector<256x128xf32> to vector<256xf32>
    %19 = vector.shape_cast %18 : vector<256xf32> to vector<256x1xf32>
    %20 = math.log %19 : vector<256x1xf32>
    %21 = vector.broadcast %12 : vector<256x1xf32> to vector<256x128xf32>
    %22 = arith.subf %10, %21 : vector<256x128xf32>
    %23 = vector.broadcast %20 : vector<256x1xf32> to vector<256x128xf32>
    %24 = arith.subf %22, %23 : vector<256x128xf32>
    %cst_9 = arith.constant 0.000000e+00 : f32
    %25 = vector.broadcast %cst_9 : f32 to vector<256x128xf32>
    %26 = arith.select %8, %24, %25 : vector<256x128xi1>, vector<256x128xf32>
    %c0_10 = arith.constant 0 : index
    %c0_11 = arith.constant 0 : index
    %27 = vector.load %arg4[%c0_10, %c0_11] : memref<256x128xf32, #tpu.memory_space<vmem>>, vector<256x128xf32>
    tpu.vector_store %arg4[%c0_10, %c0_11], %26 {strides = array<i32>} : memref<256x128xf32, #tpu.memory_space<vmem>>, vector<256x128xf32>,
    return
  }
  func.func @transform_0(%arg0: i32) -> (i32, i32) {
    %c0_i32 = arith.constant 0 : i32
    %c0_i32_0 = arith.constant 0 : i32
    return %arg0, %c0_i32 : i32, i32
  }
  func.func @transform_1(%arg0: i32) -> (i32, i32) {
    %c0_i32 = arith.constant 0 : i32
    %c0_i32_0 = arith.constant 0 : i32
    %c0_i32_1 = arith.constant 0 : i32
    return %c0_i32, %c0_i32_0 : i32, i32
  }
  func.func @transform_2(%arg0: i32) -> (i32, i32) {
    %c0_i32 = arith.constant 0 : i32
    %c0_i32_0 = arith.constant 0 : i32
    %c0_i32_1 = arith.constant 0 : i32
    return %c0_i32, %c0_i32_0 : i32, i32
  }
  func.func @transform_3(%arg0: i32) -> (i32, i32) {
    %c0_i32 = arith.constant 0 : i32
    %c0_i32_0 = arith.constant 0 : i32
    return %arg0, %c0_i32 : i32, i32
  }
}

</mosaic_0001>

<llo_original>
// kernel: div.10
$region0: #{div.10}
  #allocation0 [shape = 's32[1]{0}', space=sflag, size = 0x4, scoped, tag = 'scoped memory for div.10']
  %s0 = inlined_call_operand.<no memory space> [shape: f32[], index: 0, kind: input, shape index: {}]
  %s1 = inlined_call_operand.vmem [shape: f32[300,1], index: 1, kind: output, shape index: {}]
  %v2 = vstv %s0
  %3 = vst [vmem:[%s1] sm:$0x1] %v2
  %s4 = scalar_lea.vmem %s1, 1
  %5 = vst [vmem:[%s4] sm:$0x1] %v2
  %s6 = scalar_lea.vmem %s1, 2
  %7 = vst [vmem:[%s6] sm:$0x1] %v2

// kernel: ignn_forward.3
$region0: #{ignn_forward.3}
  #allocation0 [shape = 'u32[]', space=smem, size = 0x4, offset = 0x4, fixed_abs, tag = 'smem constant byte address 0x4 - core index']
  #allocation1 [shape = 'u32[144,128]{1,0:T(1,128)}', space=vmem, size = 0x12000, scoped, tag = 'internal scratch']
  %s0 = inlined_call_operand.vmem [shape: f32[512,128], index: 0, kind: input, shape index: {}]
  %s1 = inlined_call_operand.vmem [shape: f32[128,128], index: 1, kind: input, shape index: {}]
  %s2 = inlined_call_operand.vmem [shape: f32[1,128], index: 2, kind: input, shape index: {}]
  %s3 = inlined_call_operand.vmem [shape: f32[512,128], index: 3, kind: output, shape index: {}]
  %s4 = sld [smem:[#allocation0]]
  $region45: #{ignn_forward.3} parent=0
    _
  %s6 = ssub.s32 1, %s4
  %s7 = scalar_select 0, %s6, %s4
  loop: start=0, step=1, limit=4
  $region2: #{ignn_forward.3} parent=0 // loop_pre_header
    _
  $region3: #{ignn_forward.3} parent=0 // loop_header
    %s9 = sphi 0, %s13
    %p10 = scmp.ge.s32.totalorder %s9, 4
    %s19 = sphi 0, %s21
    %s22 = sphi 0, %s19
    %s23 = sphi 0, %s22
    %s39 = sphi 0, %s23
    %s43 = sphi 0, %s43
    %s45 = sphi 0, %s43
    %s46 = sphi 0, %s45
    %s60 = sphi 0, %s46
    %s64 = sphi 0, %s64
    %s66 = sphi 0, %s64
    %s67 = sphi 0, %s66
    %s81 = sphi 0, %s67
    %s87 = sphi 0, %s89
    %s90 = sphi 0, %s87
    %s91 = sphi 0, %s90
    %s107 = sphi 0, %s91
  $region4: #{ignn_forward.3} parent=0 // loop_header_branch
    %12 = sbr.rel (%p10) target = $region8
  $region5: #{ignn_forward.3} parent=0 // loop_body
    %s14 = ssub.s32 %s9, 1
    %s15 = ssub.s32 %s9, 2
    %s16 = sadd.s32 %s9, 1
    %s17 = ssub.s32 %s9, %s16
    %p18 = scmp.eq.s32.totalorder %s17, 0
    %s20 = sadd.s32 %s19, 1
    %s21 = scalar_select %p18, %s19, %s20
    %p24 = pneg %p18
    %p25 = scmp.eq.s32.totalorder %s9, 1
    %p26 = por %p24, %p25
    %p27 = scmp.ne.s32.totalorder %s19, %s22
    %p28 = scmp.eq.s32.totalorder %s9, 0
    %p29 = por %p27, %p28
    %p30 = scmp.ne.s32.totalorder %s19, %s22
    %p31 = scmp.eq.s32.totalorder %s14, 1
    %p32 = por %p30, %p31
    %p33 = scmp.ne.s32.totalorder %s22, %s23
    %p34 = scmp.eq.s32.totalorder %s14, 0
    %p35 = por %p33, %p34
    %p36 = scmp.ne.s32.totalorder %s22, %s23
    %p37 = scmp.eq.s32.totalorder %s15, 1
    %p38 = por %p36, %p37
    %p40 = scmp.ne.s32.totalorder %s23, %s39
    %p41 = scmp.eq.s32.totalorder %s15, 0
    %p42 = por %p40, %p41
    %s44 = sadd.s32 %s43, 1
    %p47 = scmp.eq.s32.totalorder %s9, 1
    %p48 = scmp.ne.s32.totalorder %s43, %s45
    %p49 = scmp.eq.s32.totalorder %s9, 0
    %p50 = por %p48, %p49
    %p51 = scmp.ne.s32.totalorder %s43, %s45
    %p52 = scmp.eq.s32.totalorder %s14, 1
    %p53 = por %p51, %p52
    %p54 = scmp.ne.s32.totalorder %s45, %s46
    %p55 = scmp.eq.s32.totalorder %s14, 0
    %p56 = por %p54, %p55
    %p57 = scmp.ne.s32.totalorder %s45, %s46
    %p58 = scmp.eq.s32.totalorder %s15, 1
    %p59 = por %p57, %p58
    %p61 = scmp.ne.s32.totalorder %s46, %s60
    %p62 = scmp.eq.s32.totalorder %s15, 0
    %p63 = por %p61, %p62
    %s65 = sadd.s32 %s64, 1
    %p68 = scmp.eq.s32.totalorder %s9, 1
    %p69 = scmp.ne.s32.totalorder %s64, %s66
    %p70 = scmp.eq.s32.totalorder %s9, 0
    %p71 = por %p69, %p70
    %p72 = scmp.ne.s32.totalorder %s64, %s66
    %p73 = scmp.eq.s32.totalorder %s14, 1
    %p74 = por %p72, %p73
    %p75 = scmp.ne.s32.totalorder %s66, %s67
    %p76 = scmp.eq.s32.totalorder %s14, 0
    %p77 = por %p75, %p76
    %p78 = scmp.ne.s32.totalorder %s66, %s67
    %p79 = scmp.eq.s32.totalorder %s15, 1
    %p80 = por %p78, %p79
    %p82 = scmp.ne.s32.totalorder %s67, %s81
    %p83 = scmp.eq.s32.totalorder %s15, 0
    %p84 = por %p82, %p83
    %s85 = ssub.s32 %s9, %s16
    %p86 = scmp.eq.s32.totalorder %s85, 0
    %s88 = sadd.s32 %s87, 1
    %s89 = scalar_select %p86, %s87, %s88
    %p92 = pneg %p86
    %p93 = scmp.eq.s32.totalorder %s9, 1
    %p94 = por %p92, %p93
    %p95 = scmp.ne.s32.totalorder %s87, %s90
    %p96 = scmp.eq.s32.totalorder %s9, 0
    %p97 = por %p95, %p96
    %p98 = scmp.ne.s32.totalorder %s87, %s90
    %p99 = scmp.eq.s32.totalorder %s14, 1
    %p100 = por %p98, %p99
    %p101 = scmp.ne.s32.totalorder %s90, %s91
    %p102 = scmp.eq.s32.totalorder %s14, 0
    %p103 = por %p101, %p102
    %p104 = scmp.ne.s32.totalorder %s90, %s91
    %p105 = scmp.eq.s32.totalorder %s15, 1
    %p106 = por %p104, %p105
    %p108 = scmp.ne.s32.totalorder %s91, %s107
    %p109 = scmp.eq.s32.totalorder %s15, 0
    %p110 = por %p108, %p109
    %p111 = scmp.le.s32.totalorder 1, %s9
    %p112 = scmp.lt.s32.totalorder %s9, 3
    %p113 = pnand %p111, %p112
    %p114 = pneg %p113
    // Predicated region
    $region9: #{ignn_forward.3} parent=5 // pred_check
      _
    $region10: #{ignn_forward.3} parent=5 // pred_check_branch
      %116 = sbr.rel (%p113) target = $region12
    $region11: #{ignn_forward.3} parent=5 // pred_region
      %s117 = ssub.s32 %s9, 1
      // Predicated region
      $region13: #{ignn_forward.3} parent=11 // pred_check
        %p118 = pneg %p56
      $region14: #{ignn_forward.3} parent=11 // pred_check_branch
        %120 = sbr.rel (%p118) target = $region16
      $region15: #{ignn_forward.3} parent=11 // pred_region
        _
      $region16: #{ignn_forward.3} parent=11 // pred_fallthru
        _
      // Predicated region
      $region17: #{ignn_forward.3} parent=11 // pred_check
        %p121 = pneg %p77
      $region18: #{ignn_forward.3} parent=11 // pred_check_branch
        %123 = sbr.rel (%p121) target = $region20
      $region19: #{ignn_forward.3} parent=11 // pred_region
        _
      $region20: #{ignn_forward.3} parent=11 // pred_fallthru
        _
    $region12: #{ignn_forward.3} parent=5 // pred_fallthru
      _
    %p124 = scmp.lt.s32.totalorder %s9, 2
    // Predicated region
    $region21: #{ignn_forward.3} parent=5 // pred_check
      %p125 = pneg %p124
    $region22: #{ignn_forward.3} parent=5 // pred_check_branch
      %127 = sbr.rel (%p125) target = $region24
    $region23: #{ignn_forward.3} parent=5 // pred_region
      // Predicated region
      $region25: #{ignn_forward.3} parent=23 // pred_check
        %p128 = pneg %p29
      $region26: #{ignn_forward.3} parent=23 // pred_check_branch
        %130 = sbr.rel (%p128) target = $region28
      $region27: #{ignn_forward.3} parent=23 // pred_region
        %s131 = smul.u32 32, %s9
        %p132 = scmp.lt.s32.totalorder %s131, 63
        %s133 = scalar_select %p132, %s131, 63
        %s134 = smul.addr %s133, 8
        %s135 = scalar_lea.vmem %s0, %s134
        %s136 = smul.u32 32, %s9
      $region28: #{ignn_forward.3} parent=23 // pred_fallthru
        _
    $region24: #{ignn_forward.3} parent=5 // pred_fallthru
      _
    %p137 = scmp.le.s32.totalorder 1, %s9
    %p138 = scmp.lt.s32.totalorder %s9, 3
    %p139 = pnand %p137, %p138
    %p140 = pneg %p139
    // Predicated region
    $region29: #{ignn_forward.3} parent=5 // pred_check
      _
    $region30: #{ignn_forward.3} parent=5 // pred_check_branch
      %142 = sbr.rel (%p139) target = $region32
    $region31: #{ignn_forward.3} parent=5 // pred_region
      %s143 = ssub.s32 %s9, 1
      %s144 = smul.u32 32, %s14
      %p145 = scmp.lt.s32.totalorder %s144, 63
      %s146 = scalar_select %p145, %s144, 63
      %s147 = smul.addr %s146, 8
      %s148 = scalar_lea.vmem %s0, %s147
      %p149 = pneg %p35
      %p150 = pneg %p32
      %p151 = pneg %p56
      %p152 = pneg %p53
      %p153 = pneg %p77
      %p154 = pneg %p74
      %p155 = pneg %p103
      %p156 = pneg %p100
      %s157 = smul.u32 32, %s14
      %p158 = scmp.lt.s32.totalorder %s157, 63
      %s159 = scalar_select %p158, %s157, 63
      %s160 = smul.addr %s159, 8
      %s161 = scalar_lea.vmem %s3, %s160
      %s162 = smul.u32 32, %s14
      %p163 = scmp.lt.s32.totalorder %s162, 63
      %s164 = scalar_select %p163, %s162, 63
      %s165 = smul.addr %s164, 8
      %s166 = scalar_lea.vmem %s0, %s165
      %s167 = smul.u32 32, %s14
      %s168 = smul.u32 32, %s14
      %p169 = scmp.lt.s32.totalorder %s168, 63
      %s170 = scalar_select %p169, %s168, 63
      %s171 = smul.addr %s170, 8
      %s172 = scalar_lea.vmem %s3, %s171
      %s173 = smul.u32 32, %s14
      %v174 = vld [vmem:[%s166] sm:$0xff]
      %v175 = vld [vmem:[%s166 + $0x8] sm:$0xff]
      %v176 = vld [vmem:[%s166 + $0x10] sm:$0xff]
      %v177 = vld [vmem:[%s166 + $0x18] sm:$0xff]
      %v178 = vld [vmem:[%s166 + $0x20] sm:$0xff]
      %v179 = vld [vmem:[%s166 + $0x28] sm:$0xff]
      %v180 = vld [vmem:[%s166 + $0x30] sm:$0xff]
      %v181 = vld [vmem:[%s166 + $0x38] sm:$0xff]
      %v182 = vld [vmem:[%s166 + $0x40] sm:$0xff]
      %v183 = vld [vmem:[%s166 + $0x48] sm:$0xff]
      %v184 = vld [vmem:[%s166 + $0x50] sm:$0xff]
      %v185 = vld [vmem:[%s166 + $0x58] sm:$0xff]
      %v186 = vld [vmem:[%s166 + $0x60] sm:$0xff]
      %v187 = vld [vmem:[%s166 + $0x68] sm:$0xff]
      %v188 = vld [vmem:[%s166 + $0x70] sm:$0xff]
      %v189 = vld [vmem:[%s166 + $0x78] sm:$0xff]
      %v190 = vld [vmem:[%s166 + $0x80] sm:$0xff]
      %v191 = vld [vmem:[%s166 + $0x88] sm:$0xff]
      %v192 = vld [vmem:[%s166 + $0x90] sm:$0xff]
      %v193 = vld [vmem:[%s166 + $0x98] sm:$0xff]
      %v194 = vld [vmem:[%s166 + $0xa0] sm:$0xff]
      %v195 = vld [vmem:[%s166 + $0xa8] sm:$0xff]
      %v196 = vld [vmem:[%s166 + $0xb0] sm:$0xff]
      %v197 = vld [vmem:[%s166 + $0xb8] sm:$0xff]
      %v198 = vld [vmem:[%s166 + $0xc0] sm:$0xff]
      %v199 = vld [vmem:[%s166 + $0xc8] sm:$0xff]
      %v200 = vld [vmem:[%s166 + $0xd0] sm:$0xff]
      %v201 = vld [vmem:[%s166 + $0xd8] sm:$0xff]
      %v202 = vld [vmem:[%s166 + $0xe0] sm:$0xff]
      %v203 = vld [vmem:[%s166 + $0xe8] sm:$0xff]
      %v204 = vld [vmem:[%s166 + $0xf0] sm:$0xff]
      %v205 = vld [vmem:[%s166 + $0xf8] sm:$0xff]
      %v206 = vld [vmem:[%s1] sm:$0xff]
      %v207 = vld [vmem:[%s1 + $0x8] sm:$0xff]
      %v208 = vld [vmem:[%s1 + $0x10] sm:$0xff]
      %v209 = vld [vmem:[%s1 + $0x18] sm:$0xff]
      %v210 = vld [vmem:[%s1 + $0x20] sm:$0xff]
      %v211 = vld [vmem:[%s1 + $0x28] sm:$0xff]
      %v212 = vld [vmem:[%s1 + $0x30] sm:$0xff]
      %v213 = vld [vmem:[%s1 + $0x38] sm:$0xff]
      %v214 = vld [vmem:[%s1 + $0x40] sm:$0xff]
      %v215 = vld [vmem:[%s1 + $0x48] sm:$0xff]
      %v216 = vld [vmem:[%s1 + $0x50] sm:$0xff]
      %v217 = vld [vmem:[%s1 + $0x58] sm:$0xff]
      %v218 = vld [vmem:[%s1 + $0x60] sm:$0xff]
      %v219 = vld [vmem:[%s1 + $0x68] sm:$0xff]
      %v220 = vld [vmem:[%s1 + $0x70] sm:$0xff]
      %v221 = vld [vmem:[%s1 + $0x78] sm:$0xff]
      %v222 = vld [vmem:[%s2] sm:$0x1]
      %v224 = vlaneseq
      %v225 = vshrl.u32 %v224, 7
      %v226 = vsub.s32 0, %v225
      %v227 = vrot.slane %v222, %v226
      %229 = vmatprep.subr.mxu0 0.0
      %230 = vmatpush1.msra.mxu0 %v206
      %231 = vmatprep.subr.mxu0 0.0
      %232 = vmatpush1.msra.mxu0 %v207
      %233 = vmatprep.subr.mxu0 0.0
      %234 = vmatpush1.msra.mxu0 %v208
      %235 = vmatprep.subr.mxu0 0.0
      %236 = vmatpush1.msra.mxu0 %v209
      %237 = vmatprep.subr.mxu0 0.0
      %238 = vmatpush1.msra.mxu0 %v210
      %239 = vmatprep.subr.mxu0 0.0
      %240 = vmatpush1.msra.mxu0 %v211
      %241 = vmatprep.subr.mxu0 0.0
      %242 = vmatpush1.msra.mxu0 %v212
      %243 = vmatprep.subr.mxu0 0.0
      %244 = vmatpush1.msra.mxu0 %v213
      %245 = vmatprep.subr.mxu0 0.0
      %246 = vmatpush1.msra.mxu0 %v214
      %247 = vmatprep.subr.mxu0 0.0
      %248 = vmatpush1.msra.mxu0 %v215
      %249 = vmatprep.subr.mxu0 0.0
      %250 = vmatpush1.msra.mxu0 %v216
      %251 = vmatprep.subr.mxu0 0.0
      %252 = vmatpush1.msra.mxu0 %v217
      %253 = vmatprep.subr.mxu0 0.0
      %254 = vmatpush1.msra.mxu0 %v218
      %255 = vmatprep.subr.mxu0 0.0
      %256 = vmatpush1.msra.mxu0 %v219
      %257 = vmatprep.subr.mxu0 0.0
      %258 = vmatpush1.msra.mxu0 %v220
      %259 = vmatprep.subr.mxu0 0.0
      %260 = vmatpush1.msra.mxu0 %v221
      %261 = vmatprep.subr.mxu0 0.0
      %262 = vmatpush1.msra.mxu0 0.0
      %263 = vmatprep.subr.mxu0 0.0
      %264 = vmatpush1.msra.mxu0 0.0
      %265 = vmatprep.subr.mxu0 0.0
      %266 = vmatpush1.msra.mxu0 0.0
      %267 = vmatprep.subr.mxu0 0.0
      %268 = vmatpush1.msra.mxu0 0.0
      %269 = vmatprep.subr.mxu0 0.0
      %270 = vmatpush1.msra.mxu0 0.0
      %271 = vmatprep.subr.mxu0 0.0
      %272 = vmatpush1.msra.mxu0 0.0
      %273 = vmatprep.subr.mxu0 0.0
      %274 = vmatpush1.msra.mxu0 0.0
      %275 = vmatprep.subr.mxu0 0.0
      %276 = vmatpush1.msra.mxu0 0.0
      %277 = vmatprep.subr.mxu0 0.0
      %278 = vmatpush1.msra.mxu0 0.0
      %279 = vmatprep.subr.mxu0 0.0
      %280 = vmatpush1.msra.mxu0 0.0
      %281 = vmatprep.subr.mxu0 0.0
      %282 = vmatpush1.msra.mxu0 0.0
      %283 = vmatprep.subr.mxu0 0.0
      %284 = vmatpush1.msra.mxu0 0.0
      %285 = vmatprep.subr.mxu0 0.0
      %286 = vmatpush1.msra.mxu0 0.0
      %287 = vmatprep.subr.mxu0 0.0
      %288 = vmatpush1.msra.mxu0 0.0
      %289 = vmatprep.subr.mxu0 0.0
      %290 = vmatpush1.msra.mxu0 0.0
      %291 = vmatprep.subr.mxu0 0.0
      %292 = vmatpush1.msra.mxu0 0.0
      %293 = vmatprep.mubr.f32.mxu0 0.0
      %294 = vmatmul.mubr.f32.gmra.mrb[0].mxu0 %v174
      %v295 = vpop.f32.mrb[0].mxu0
      %v296 = vadd.f32 %v227, %v295
      %v297 = vpop.f32.mrb[0].mxu0
      %298 = vmatprep.mubr.f32.mxu0 0.0
      %299 = vmatmul.mubr.f32.gmra.mrb[0].mxu0 %v175
      %v300 = vpop.f32.mrb[0].mxu0
      %v301 = vadd.f32 %v227, %v300
      %v302 = vpop.f32.mrb[0].mxu0
      %303 = vmatprep.mubr.f32.mxu0 0.0
      %304 = vmatmul.mubr.f32.gmra.mrb[0].mxu0 %v176
      %v305 = vpop.f32.mrb[0].mxu0
      %v306 = vadd.f32 %v227, %v305
      %v307 = vpop.f32.mrb[0].mxu0
      %308 = vmatprep.mubr.f32.mxu0 0.0
      %309 = vmatmul.mubr.f32.gmra.mrb[0].mxu0 %v177
      %v310 = vpop.f32.mrb[0].mxu0
      %v311 = vadd.f32 %v227, %v310
      %v312 = vpop.f32.mrb[0].mxu0
      %313 = vmatprep.mubr.f32.mxu0 0.0
      %314 = vmatmul.mubr.f32.gmra.mrb[0].mxu0 %v178
      %v315 = vpop.f32.mrb[0].mxu0
      %v316 = vadd.f32 %v227, %v315
      %v317 = vpop.f32.mrb[0].mxu0
      %318 = vmatprep.mubr.f32.mxu0 0.0
      %319 = vmatmul.mubr.f32.gmra.mrb[0].mxu0 %v179
      %v320 = vpop.f32.mrb[0].mxu0
      %v321 = vadd.f32 %v227, %v320
      %v322 = vpop.f32.mrb[0].mxu0
      %323 = vmatprep.mubr.f32.mxu0 0.0
      %324 = vmatmul.mubr.f32.gmra.mrb[0].mxu0 %v180
      %v325 = vpop.f32.mrb[0].mxu0
      %v326 = vadd.f32 %v227, %v325
      %v327 = vpop.f32.mrb[0].mxu0
      %328 = vmatprep.mubr.f32.mxu0 0.0
      %329 = vmatmul.mubr.f32.gmra.mrb[0].mxu0 %v181
      %v330 = vpop.f32.mrb[0].mxu0
      %v331 = vadd.f32 %v227, %v330
      %v332 = vpop.f32.mrb[0].mxu0
      %333 = vmatprep.mubr.f32.mxu0 0.0
      %334 = vmatmul.mubr.f32.gmra.mrb[0].mxu0 %v182
      %v335 = vpop.f32.mrb[0].mxu0
      %v336 = vadd.f32 %v227, %v335
      %v337 = vpop.f32.mrb[0].mxu0
      %338 = vmatprep.mubr.f32.mxu0 0.0
      %339 = vmatmul.mubr.f32.gmra.mrb[0].mxu0 %v183
      %v340 = vpop.f32.mrb[0].mxu0
      %v341 = vadd.f32 %v227, %v340
      %v342 = vpop.f32.mrb[0].mxu0
      %343 = vmatprep.mubr.f32.mxu0 0.0
      %344 = vmatmul.mubr.f32.gmra.mrb[0].mxu0 %v184
      %v345 = vpop.f32.mrb[0].mxu0
      %v346 = vadd.f32 %v227, %v345
      %v347 = vpop.f32.mrb[0].mxu0
      %348 = vmatprep.mubr.f32.mxu0 0.0
      %349 = vmatmul.mubr.f32.gmra.mrb[0].mxu0 %v185
      %v350 = vpop.f32.mrb[0].mxu0
      %v351 = vadd.f32 %v227, %v350
      %v352 = vpop.f32.mrb[0].mxu0
      %353 = vmatprep.mubr.f32.mxu0 0.0
      %354 = vmatmul.mubr.f32.gmra.mrb[0].mxu0 %v186
      %v355 = vpop.f32.mrb[0].mxu0
      %v356 = vadd.f32 %v227, %v355
      %v357 = vpop.f32.mrb[0].mxu0
      %358 = vmatprep.mubr.f32.mxu0 0.0
      %359 = vmatmul.mubr.f32.gmra.mrb[0].mxu0 %v187
      %v360 = vpop.f32.mrb[0].mxu0
      %v361 = vadd.f32 %v227, %v360
      %v362 = vpop.f32.mrb[0].mxu0
      %363 = vmatprep.mubr.f32.mxu0 0.0
      %364 = vmatmul.mubr.f32.gmra.mrb[0].mxu0 %v188
      %v365 = vpop.f32.mrb[0].mxu0
      %v366 = vadd.f32 %v227, %v365
      %v367 = vpop.f32.mrb[0].mxu0
      %368 = vmatprep.mubr.f32.mxu0 0.0
      %369 = vmatmul.mubr.f32.gmra.mrb[0].mxu0 %v189
      %v370 = vpop.f32.mrb[0].mxu0
      %v371 = vadd.f32 %v227, %v370
      %v372 = vpop.f32.mrb[0].mxu0
      %373 = vmatprep.mubr.f32.mxu0 0.0
      %374 = vmatmul.mubr.f32.gmra.mrb[0].mxu0 %v190
      %v375 = vpop.f32.mrb[0].mxu0
      %v376 = vadd.f32 %v227, %v375
      %v377 = vpop.f32.mrb[0].mxu0
      %378 = vmatprep.mubr.f32.mxu0 0.0
      %379 = vmatmul.mubr.f32.gmra.mrb[0].mxu0 %v191
      %v380 = vpop.f32.mrb[0].mxu0
      %v381 = vadd.f32 %v227, %v380
      %v382 = vpop.f32.mrb[0].mxu0
      %383 = vmatprep.mubr.f32.mxu0 0.0
      %384 = vmatmul.mubr.f32.gmra.mrb[0].mxu0 %v192
      %v385 = vpop.f32.mrb[0].mxu0
      %v386 = vadd.f32 %v227, %v385
      %v387 = vpop.f32.mrb[0].mxu0
      %388 = vmatprep.mubr.f32.mxu0 0.0
      %389 = vmatmul.mubr.f32.gmra.mrb[0].mxu0 %v193
      %v390 = vpop.f32.mrb[0].mxu0
      %v391 = vadd.f32 %v227, %v390
      %v392 = vpop.f32.mrb[0].mxu0
      %393 = vmatprep.mubr.f32.mxu0 0.0
      %394 = vmatmul.mubr.f32.gmra.mrb[0].mxu0 %v194
      %v395 = vpop.f32.mrb[0].mxu0
      %v396 = vadd.f32 %v227, %v395
      %v397 = vpop.f32.mrb[0].mxu0
      %398 = vmatprep.mubr.f32.mxu0 0.0
      %399 = vmatmul.mubr.f32.gmra.mrb[0].mxu0 %v195
      %v400 = vpop.f32.mrb[0].mxu0
      %v401 = vadd.f32 %v227, %v400
      %v402 = vpop.f32.mrb[0].mxu0
      %403 = vmatprep.mubr.f32.mxu0 0.0
      %404 = vmatmul.mubr.f32.gmra.mrb[0].mxu0 %v196
      %v405 = vpop.f32.mrb[0].mxu0
      %v406 = vadd.f32 %v227, %v405
      %v407 = vpop.f32.mrb[0].mxu0
      %408 = vmatprep.mubr.f32.mxu0 0.0
      %409 = vmatmul.mubr.f32.gmra.mrb[0].mxu0 %v197
      %v410 = vpop.f32.mrb[0].mxu0
      %v411 = vadd.f32 %v227, %v410
      %v412 = vpop.f32.mrb[0].mxu0
      %413 = vmatprep.mubr.f32.mxu0 0.0
      %414 = vmatmul.mubr.f32.gmra.mrb[0].mxu0 %v198
      %v415 = vpop.f32.mrb[0].mxu0
      %v416 = vadd.f32 %v227, %v415
      %v417 = vpop.f32.mrb[0].mxu0
      %418 = vmatprep.mubr.f32.mxu0 0.0
      %419 = vmatmul.mubr.f32.gmra.mrb[0].mxu0 %v199
      %v420 = vpop.f32.mrb[0].mxu0
      %v421 = vadd.f32 %v227, %v420
      %v422 = vpop.f32.mrb[0].mxu0
      %423 = vmatprep.mubr.f32.mxu0 0.0
      %424 = vmatmul.mubr.f32.gmra.mrb[0].mxu0 %v200
      %v425 = vpop.f32.mrb[0].mxu0
      %v426 = vadd.f32 %v227, %v425
      %v427 = vpop.f32.mrb[0].mxu0
      %428 = vmatprep.mubr.f32.mxu0 0.0
      %429 = vmatmul.mubr.f32.gmra.mrb[0].mxu0 %v201
      %v430 = vpop.f32.mrb[0].mxu0
      %v431 = vadd.f32 %v227, %v430
      %v432 = vpop.f32.mrb[0].mxu0
      %433 = vmatprep.mubr.f32.mxu0 0.0
      %434 = vmatmul.mubr.f32.gmra.mrb[0].mxu0 %v202
      %v435 = vpop.f32.mrb[0].mxu0
      %v436 = vadd.f32 %v227, %v435
      %v437 = vpop.f32.mrb[0].mxu0
      %438 = vmatprep.mubr.f32.mxu0 0.0
      %439 = vmatmul.mubr.f32.gmra.mrb[0].mxu0 %v203
      %v440 = vpop.f32.mrb[0].mxu0
      %v441 = vadd.f32 %v227, %v440
      %v442 = vpop.f32.mrb[0].mxu0
      %443 = vmatprep.mubr.f32.mxu0 0.0
      %444 = vmatmul.mubr.f32.gmra.mrb[0].mxu0 %v204
      %v445 = vpop.f32.mrb[0].mxu0
      %v446 = vadd.f32 %v227, %v445
      %v447 = vpop.f32.mrb[0].mxu0
      %448 = vmatprep.mubr.f32.mxu0 0.0
      %449 = vmatmul.mubr.f32.gmra.mrb[0].mxu0 %v205
      %v450 = vpop.f32.mrb[0].mxu0
      %v451 = vadd.f32 %v227, %v450
      %v452 = vpop.f32.mrb[0].mxu0
      %453 = vdwg.mxu0
      %v454 = vlaneseq
      %v455 = vand.u32 %v454, 127
      %vm456 = vcmp.lt.s32.totalorder %v455, 7
      %v457 = vsel %vm456, %v296, -1e+30
      %v458 = vsel %vm456, %v301, -1e+30
      %v459 = vsel %vm456, %v306, -1e+30
      %v460 = vsel %vm456, %v311, -1e+30
      %v461 = vsel %vm456, %v316, -1e+30
      %v462 = vsel %vm456, %v321, -1e+30
      %v463 = vsel %vm456, %v326, -1e+30
      %v464 = vsel %vm456, %v331, -1e+30
      %v465 = vsel %vm456, %v336, -1e+30
      %v466 = vsel %vm456, %v341, -1e+30
      %v467 = vsel %vm456, %v346, -1e+30
      %v468 = vsel %vm456, %v351, -1e+30
      %v469 = vsel %vm456, %v356, -1e+30
      %v470 = vsel %vm456, %v361, -1e+30
      %v471 = vsel %vm456, %v366, -1e+30
      %v472 = vsel %vm456, %v371, -1e+30
      %v473 = vsel %vm456, %v376, -1e+30
      %v474 = vsel %vm456, %v381, -1e+30
      %v475 = vsel %vm456, %v386, -1e+30
      %v476 = vsel %vm456, %v391, -1e+30
      %v477 = vsel %vm456, %v396, -1e+30
      %v478 = vsel %vm456, %v401, -1e+30
      %v479 = vsel %vm456, %v406, -1e+30
      %v480 = vsel %vm456, %v411, -1e+30
      %v481 = vsel %vm456, %v416, -1e+30
      %v482 = vsel %vm456, %v421, -1e+30
      %v483 = vsel %vm456, %v426, -1e+30
      %v484 = vsel %vm456, %v431, -1e+30
      %v485 = vsel %vm456, %v436, -1e+30
      %v486 = vsel %vm456, %v441, -1e+30
      %v487 = vsel %vm456, %v446, -1e+30
      %v488 = vsel %vm456, %v451, -1e+30
      %489 = vmax.xlane.f32.xlu0 %v457
      %v490 = vpop.xlane.xlu0 %489
      %491 = vmax.xlane.f32.xlu0 %v458
      %v492 = vpop.xlane.xlu0 %491
      %493 = vmax.xlane.f32.xlu0 %v459
      %v494 = vpop.xlane.xlu0 %493
      %495 = vmax.xlane.f32.xlu0 %v460
      %v496 = vpop.xlane.xlu0 %495
      %497 = vmax.xlane.f32.xlu0 %v461
      %v498 = vpop.xlane.xlu0 %497
      %499 = vmax.xlane.f32.xlu0 %v462
      %v500 = vpop.xlane.xlu0 %499
      %501 = vmax.xlane.f32.xlu0 %v463
      %v502 = vpop.xlane.xlu0 %501
      %503 = vmax.xlane.f32.xlu0 %v464
      %v504 = vpop.xlane.xlu0 %503
      %505 = vmax.xlane.f32.xlu0 %v465
      %v506 = vpop.xlane.xlu0 %505
      %507 = vmax.xlane.f32.xlu0 %v466
      %v508 = vpop.xlane.xlu0 %507
      %509 = vmax.xlane.f32.xlu0 %v467
      %v510 = vpop.xlane.xlu0 %509
      %511 = vmax.xlane.f32.xlu0 %v468
      %v512 = vpop.xlane.xlu0 %511
      %513 = vmax.xlane.f32.xlu0 %v469
      %v514 = vpop.xlane.xlu0 %513
      %515 = vmax.xlane.f32.xlu0 %v470
      %v516 = vpop.xlane.xlu0 %515
      %517 = vmax.xlane.f32.xlu0 %v471
      %v518 = vpop.xlane.xlu0 %517
      %519 = vmax.xlane.f32.xlu0 %v472
      %v520 = vpop.xlane.xlu0 %519
      %521 = vmax.xlane.f32.xlu0 %v473
      %v522 = vpop.xlane.xlu0 %521
      %523 = vmax.xlane.f32.xlu0 %v474
      %v524 = vpop.xlane.xlu0 %523
      %525 = vmax.xlane.f32.xlu0 %v475
      %v526 = vpop.xlane.xlu0 %525
      %527 = vmax.xlane.f32.xlu0 %v476
      %v528 = vpop.xlane.xlu0 %527
      %529 = vmax.xlane.f32.xlu0 %v477
      %v530 = vpop.xlane.xlu0 %529
      %531 = vmax.xlane.f32.xlu0 %v478
      %v532 = vpop.xlane.xlu0 %531
      %533 = vmax.xlane.f32.xlu0 %v479
      %v534 = vpop.xlane.xlu0 %533
      %535 = vmax.xlane.f32.xlu0 %v480
      %v536 = vpop.xlane.xlu0 %535
      %537 = vmax.xlane.f32.xlu0 %v481
      %v538 = vpop.xlane.xlu0 %537
      %539 = vmax.xlane.f32.xlu0 %v482
      %v540 = vpop.xlane.xlu0 %539
      %541 = vmax.xlane.f32.xlu0 %v483
      %v542 = vpop.xlane.xlu0 %541
      %543 = vmax.xlane.f32.xlu0 %v484
      %v544 = vpop.xlane.xlu0 %543
      %545 = vmax.xlane.f32.xlu0 %v485
      %v546 = vpop.xlane.xlu0 %545
      %547 = vmax.xlane.f32.xlu0 %v486
      %v548 = vpop.xlane.xlu0 %547
      %549 = vmax.xlane.f32.xlu0 %v487
      %v550 = vpop.xlane.xlu0 %549
      %551 = vmax.xlane.f32.xlu0 %v488
      %v552 = vpop.xlane.xlu0 %551
      %v553 = vsub.f32 %v457, %v490
      %v554 = vsub.f32 %v458, %v492
      %v555 = vsub.f32 %v459, %v494
      %v556 = vsub.f32 %v460, %v496
      %v557 = vsub.f32 %v461, %v498
      %v558 = vsub.f32 %v462, %v500
      %v559 = vsub.f32 %v463, %v502
      %v560 = vsub.f32 %v464, %v504
      %v561 = vsub.f32 %v465, %v506
      %v562 = vsub.f32 %v466, %v508
      %v563 = vsub.f32 %v467, %v510
      %v564 = vsub.f32 %v468, %v512
      %v565 = vsub.f32 %v469, %v514
      %v566 = vsub.f32 %v470, %v516
      %v567 = vsub.f32 %v471, %v518
      %v568 = vsub.f32 %v472, %v520
      %v569 = vsub.f32 %v473, %v522
      %v570 = vsub.f32 %v474, %v524
      %v571 = vsub.f32 %v475, %v526
      %v572 = vsub.f32 %v476, %v528
      %v573 = vsub.f32 %v477, %v530
      %v574 = vsub.f32 %v478, %v532
      %v575 = vsub.f32 %v479, %v534
      %v576 = vsub.f32 %v480, %v536
      %v577 = vsub.f32 %v481, %v538
      %v578 = vsub.f32 %v482, %v540
      %v579 = vsub.f32 %v483, %v542
      %v580 = vsub.f32 %v484, %v544
      %v581 = vsub.f32 %v485, %v546
      %v582 = vsub.f32 %v486, %v548
      %v583 = vsub.f32 %v487, %v550
      %v584 = vsub.f32 %v488, %v552
      %v585 = vmul.f32 %v553, 1.442695
      %v586 = vpow.pop %v585
      %v587 = vmul.f32 %v554, 1.442695
      %v588 = vpow.pop %v587
      %v589 = vmul.f32 %v555, 1.442695
      %v590 = vpow.pop %v589
      %v591 = vmul.f32 %v556, 1.442695
      %v592 = vpow.pop %v591
      %v593 = vmul.f32 %v557, 1.442695
      %v594 = vpow.pop %v593
      %v595 = vmul.f32 %v558, 1.442695
      %v596 = vpow.pop %v595
      %v597 = vmul.f32 %v559, 1.442695
      %v598 = vpow.pop %v597
      %v599 = vmul.f32 %v560, 1.442695
      %v600 = vpow.pop %v599
      %v601 = vmul.f32 %v561, 1.442695
      %v602 = vpow.pop %v601
      %v603 = vmul.f32 %v562, 1.442695
      %v604 = vpow.pop %v603
      %v605 = vmul.f32 %v563, 1.442695
      %v606 = vpow.pop %v605
      %v607 = vmul.f32 %v564, 1.442695
      %v608 = vpow.pop %v607
      %v609 = vmul.f32 %v565, 1.442695
      %v610 = vpow.pop %v609
      %v611 = vmul.f32 %v566, 1.442695
      %v612 = vpow.pop %v611
      %v613 = vmul.f32 %v567, 1.442695
      %v614 = vpow.pop %v613
      %v615 = vmul.f32 %v568, 1.442695
      %v616 = vpow.pop %v615
      %v617 = vmul.f32 %v569, 1.442695
      %v618 = vpow.pop %v617
      %v619 = vmul.f32 %v570, 1.442695
      %v620 = vpow.pop %v619
      %v621 = vmul.f32 %v571, 1.442695
      %v622 = vpow.pop %v621
      %v623 = vmul.f32 %v572, 1.442695
      %v624 = vpow.pop %v623
      %v625 = vmul.f32 %v573, 1.442695
      %v626 = vpow.pop %v625
      %v627 = vmul.f32 %v574, 1.442695
      %v628 = vpow.pop %v627
      %v629 = vmul.f32 %v575, 1.442695
      %v630 = vpow.pop %v629
      %v631 = vmul.f32 %v576, 1.442695
      %v632 = vpow.pop %v631
      %v633 = vmul.f32 %v577, 1.442695
      %v634 = vpow.pop %v633
      %v635 = vmul.f32 %v578, 1.442695
      %v636 = vpow.pop %v635
      %v637 = vmul.f32 %v579, 1.442695
      %v638 = vpow.pop %v637
      %v639 = vmul.f32 %v580, 1.442695
      %v640 = vpow.pop %v639
      %v641 = vmul.f32 %v581, 1.442695
      %v642 = vpow.pop %v641
      %v643 = vmul.f32 %v582, 1.442695
      %v644 = vpow.pop %v643
      %v645 = vmul.f32 %v583, 1.442695
      %v646 = vpow.pop %v645
      %v647 = vmul.f32 %v584, 1.442695
      %v648 = vpow.pop %v647
      %v649 = vsel %vm456, %v586, 0.0
      %v650 = vsel %vm456, %v588, 0.0
      %v651 = vsel %vm456, %v590, 0.0
      %v652 = vsel %vm456, %v592, 0.0
      %v653 = vsel %vm456, %v594, 0.0
      %v654 = vsel %vm456, %v596, 0.0
      %v655 = vsel %vm456, %v598, 0.0
      %v656 = vsel %vm456, %v600, 0.0
      %v657 = vsel %vm456, %v602, 0.0
      %v658 = vsel %vm456, %v604, 0.0
      %v659 = vsel %vm456, %v606, 0.0
      %v660 = vsel %vm456, %v608, 0.0
      %v661 = vsel %vm456, %v610, 0.0
      %v662 = vsel %vm456, %v612, 0.0
      %v663 = vsel %vm456, %v614, 0.0
      %v664 = vsel %vm456, %v616, 0.0
      %v665 = vsel %vm456, %v618, 0.0
      %v666 = vsel %vm456, %v620, 0.0
      %v667 = vsel %vm456, %v622, 0.0
      %v668 = vsel %vm456, %v624, 0.0
      %v669 = vsel %vm456, %v626, 0.0
      %v670 = vsel %vm456, %v628, 0.0
      %v671 = vsel %vm456, %v630, 0.0
      %v672 = vsel %vm456, %v632, 0.0
      %v673 = vsel %vm456, %v634, 0.0
      %v674 = vsel %vm456, %v636, 0.0
      %v675 = vsel %vm456, %v638, 0.0
      %v676 = vsel %vm456, %v640, 0.0
      %v677 = vsel %vm456, %v642, 0.0
      %v678 = vsel %vm456, %v644, 0.0
      %v679 = vsel %vm456, %v646, 0.0
      %v680 = vsel %vm456, %v648, 0.0
      %681 = vadd.xlane.f32.xlu0 %v649
      %v682 = vpop.xlane.xlu0 %681
      %683 = vadd.xlane.f32.xlu0 %v650
      %v684 = vpop.xlane.xlu0 %683
      %685 = vadd.xlane.f32.xlu0 %v651
      %v686 = vpop.xlane.xlu0 %685
      %687 = vadd.xlane.f32.xlu0 %v652
      %v688 = vpop.xlane.xlu0 %687
      %689 = vadd.xlane.f32.xlu0 %v653
      %v690 = vpop.xlane.xlu0 %689
      %691 = vadd.xlane.f32.xlu0 %v654
      %v692 = vpop.xlane.xlu0 %691
      %693 = vadd.xlane.f32.xlu0 %v655
      %v694 = vpop.xlane.xlu0 %693
      %695 = vadd.xlane.f32.xlu0 %v656
      %v696 = vpop.xlane.xlu0 %695
      %697 = vadd.xlane.f32.xlu0 %v657
      %v698 = vpop.xlane.xlu0 %697
      %699 = vadd.xlane.f32.xlu0 %v658
      %v700 = vpop.xlane.xlu0 %699
      %701 = vadd.xlane.f32.xlu0 %v659
      %v702 = vpop.xlane.xlu0 %701
      %703 = vadd.xlane.f32.xlu0 %v660
      %v704 = vpop.xlane.xlu0 %703
      %705 = vadd.xlane.f32.xlu0 %v661
      %v706 = vpop.xlane.xlu0 %705
      %707 = vadd.xlane.f32.xlu0 %v662
      %v708 = vpop.xlane.xlu0 %707
      %709 = vadd.xlane.f32.xlu0 %v663
      %v710 = vpop.xlane.xlu0 %709
      %711 = vadd.xlane.f32.xlu0 %v664
      %v712 = vpop.xlane.xlu0 %711
      %713 = vadd.xlane.f32.xlu0 %v665
      %v714 = vpop.xlane.xlu0 %713
      %715 = vadd.xlane.f32.xlu0 %v666
      %v716 = vpop.xlane.xlu0 %715
      %717 = vadd.xlane.f32.xlu0 %v667
      %v718 = vpop.xlane.xlu0 %717
      %719 = vadd.xlane.f32.xlu0 %v668
      %v720 = vpop.xlane.xlu0 %719
      %721 = vadd.xlane.f32.xlu0 %v669
      %v722 = vpop.xlane.xlu0 %721
      %723 = vadd.xlane.f32.xlu0 %v670
      %v724 = vpop.xlane.xlu0 %723
      %725 = vadd.xlane.f32.xlu0 %v671
      %v726 = vpop.xlane.xlu0 %725
      %727 = vadd.xlane.f32.xlu0 %v672
      %v728 = vpop.xlane.xlu0 %727
      %729 = vadd.xlane.f32.xlu0 %v673
      %v730 = vpop.xlane.xlu0 %729
      %731 = vadd.xlane.f32.xlu0 %v674
      %v732 = vpop.xlane.xlu0 %731
      %733 = vadd.xlane.f32.xlu0 %v675
      %v734 = vpop.xlane.xlu0 %733
      %735 = vadd.xlane.f32.xlu0 %v676
      %v736 = vpop.xlane.xlu0 %735
      %737 = vadd.xlane.f32.xlu0 %v677
      %v738 = vpop.xlane.xlu0 %737
      %739 = vadd.xlane.f32.xlu0 %v678
      %v740 = vpop.xlane.xlu0 %739
      %741 = vadd.xlane.f32.xlu0 %v679
      %v742 = vpop.xlane.xlu0 %741
      %743 = vadd.xlane.f32.xlu0 %v680
      %v744 = vpop.xlane.xlu0 %743
      %v745 = vlog2.pop %v682
      %v746 = vmul.f32 %v745, 0.6931472
      %v747 = vlog2.pop %v684
      %v748 = vmul.f32 %v747, 0.6931472
      %v749 = vlog2.pop %v686
      %v750 = vmul.f32 %v749, 0.6931472
      %v751 = vlog2.pop %v688
      %v752 = vmul.f32 %v751, 0.6931472
      %v753 = vlog2.pop %v690
      %v754 = vmul.f32 %v753, 0.6931472
      %v755 = vlog2.pop %v692
      %v756 = vmul.f32 %v755, 0.6931472
      %v757 = vlog2.pop %v694
      %v758 = vmul.f32 %v757, 0.6931472
      %v759 = vlog2.pop %v696
      %v760 = vmul.f32 %v759, 0.6931472
      %v761 = vlog2.pop %v698
      %v762 = vmul.f32 %v761, 0.6931472
      %v763 = vlog2.pop %v700
      %v764 = vmul.f32 %v763, 0.6931472
      %v765 = vlog2.pop %v702
      %v766 = vmul.f32 %v765, 0.6931472
      %v767 = vlog2.pop %v704
      %v768 = vmul.f32 %v767, 0.6931472
      %v769 = vlog2.pop %v706
      %v770 = vmul.f32 %v769, 0.6931472
      %v771 = vlog2.pop %v708
      %v772 = vmul.f32 %v771, 0.6931472
      %v773 = vlog2.pop %v710
      %v774 = vmul.f32 %v773, 0.6931472
      %v775 = vlog2.pop %v712
      %v776 = vmul.f32 %v775, 0.6931472
      %v777 = vlog2.pop %v714
      %v778 = vmul.f32 %v777, 0.6931472
      %v779 = vlog2.pop %v716
      %v780 = vmul.f32 %v779, 0.6931472
      %v781 = vlog2.pop %v718
      %v782 = vmul.f32 %v781, 0.6931472
      %v783 = vlog2.pop %v720
      %v784 = vmul.f32 %v783, 0.6931472
      %v785 = vlog2.pop %v722
      %v786 = vmul.f32 %v785, 0.6931472
      %v787 = vlog2.pop %v724
      %v788 = vmul.f32 %v787, 0.6931472
      %v789 = vlog2.pop %v726
      %v790 = vmul.f32 %v789, 0.6931472
      %v791 = vlog2.pop %v728
      %v792 = vmul.f32 %v791, 0.6931472
      %v793 = vlog2.pop %v730
      %v794 = vmul.f32 %v793, 0.6931472
      %v795 = vlog2.pop %v732
      %v796 = vmul.f32 %v795, 0.6931472
      %v797 = vlog2.pop %v734
      %v798 = vmul.f32 %v797, 0.6931472
      %v799 = vlog2.pop %v736
      %v800 = vmul.f32 %v799, 0.6931472
      %v801 = vlog2.pop %v738
      %v802 = vmul.f32 %v801, 0.6931472
      %v803 = vlog2.pop %v740
      %v804 = vmul.f32 %v803, 0.6931472
      %v805 = vlog2.pop %v742
      %v806 = vmul.f32 %v805, 0.6931472
      %v807 = vlog2.pop %v744
      %v808 = vmul.f32 %v807, 0.6931472
      %v809 = vsub.f32 %v553, %v746
      %v810 = vsub.f32 %v554, %v748
      %v811 = vsub.f32 %v555, %v750
      %v812 = vsub.f32 %v556, %v752
      %v813 = vsub.f32 %v557, %v754
      %v814 = vsub.f32 %v558, %v756
      %v815 = vsub.f32 %v559, %v758
      %v816 = vsub.f32 %v560, %v760
      %v817 = vsub.f32 %v561, %v762
      %v818 = vsub.f32 %v562, %v764
      %v819 = vsub.f32 %v563, %v766
      %v820 = vsub.f32 %v564, %v768
      %v821 = vsub.f32 %v565, %v770
      %v822 = vsub.f32 %v566, %v772
      %v823 = vsub.f32 %v567, %v774
      %v824 = vsub.f32 %v568, %v776
      %v825 = vsub.f32 %v569, %v778
      %v826 = vsub.f32 %v570, %v780
      %v827 = vsub.f32 %v571, %v782
      %v828 = vsub.f32 %v572, %v784
      %v829 = vsub.f32 %v573, %v786
      %v830 = vsub.f32 %v574, %v788
      %v831 = vsub.f32 %v575, %v790
      %v832 = vsub.f32 %v576, %v792
      %v833 = vsub.f32 %v577, %v794
      %v834 = vsub.f32 %v578, %v796
      %v835 = vsub.f32 %v579, %v798
      %v836 = vsub.f32 %v580, %v800
      %v837 = vsub.f32 %v581, %v802
      %v838 = vsub.f32 %v582, %v804
      %v839 = vsub.f32 %v583, %v806
      %v840 = vsub.f32 %v584, %v808
      %v841 = vsel %vm456, %v809, 0.0
      %v842 = vsel %vm456, %v810, 0.0
      %v843 = vsel %vm456, %v811, 0.0
      %v844 = vsel %vm456, %v812, 0.0
      %v845 = vsel %vm456, %v813, 0.0
      %v846 = vsel %vm456, %v814, 0.0
      %v847 = vsel %vm456, %v815, 0.0
      %v848 = vsel %vm456, %v816, 0.0
      %v849 = vsel %vm456, %v817, 0.0
      %v850 = vsel %vm456, %v818, 0.0
      %v851 = vsel %vm456, %v819, 0.0
      %v852 = vsel %vm456, %v820, 0.0
      %v853 = vsel %vm456, %v821, 0.0
      %v854 = vsel %vm456, %v822, 0.0
      %v855 = vsel %vm456, %v823, 0.0
      %v856 = vsel %vm456, %v824, 0.0
      %v857 = vsel %vm456, %v825, 0.0
      %v858 = vsel %vm456, %v826, 0.0
      %v859 = vsel %vm456, %v827, 0.0
      %v860 = vsel %vm456, %v828, 0.0
      %v861 = vsel %vm456, %v829, 0.0
      %v862 = vsel %vm456, %v830, 0.0
      %v863 = vsel %vm456, %v831, 0.0
      %v864 = vsel %vm456, %v832, 0.0
      %v865 = vsel %vm456, %v833, 0.0
      %v866 = vsel %vm456, %v834, 0.0
      %v867 = vsel %vm456, %v835, 0.0
      %v868 = vsel %vm456, %v836, 0.0
      %v869 = vsel %vm456, %v837, 0.0
      %v870 = vsel %vm456, %v838, 0.0
      %v871 = vsel %vm456, %v839, 0.0
      %v872 = vsel %vm456, %v840, 0.0
      %873 = vst [vmem:[%s172] sm:$0xff] %v841
      %874 = vst [vmem:[%s172 + $0x8] sm:$0xff] %v842
      %875 = vst [vmem:[%s172 + $0x10] sm:$0xff] %v843
      %876 = vst [vmem:[%s172 + $0x18] sm:$0xff] %v844
      %877 = vst [vmem:[%s172 + $0x20] sm:$0xff] %v845
      %878 = vst [vmem:[%s172 + $0x28] sm:$0xff] %v846
      %879 = vst [vmem:[%s172 + $0x30] sm:$0xff] %v847
      %880 = vst [vmem:[%s172 + $0x38] sm:$0xff] %v848
      %881 = vst [vmem:[%s172 + $0x40] sm:$0xff] %v849
      %882 = vst [vmem:[%s172 + $0x48] sm:$0xff] %v850
      %883 = vst [vmem:[%s172 + $0x50] sm:$0xff] %v851
      %884 = vst [vmem:[%s172 + $0x58] sm:$0xff] %v852
      %885 = vst [vmem:[%s172 + $0x60] sm:$0xff] %v853
      %886 = vst [vmem:[%s172 + $0x68] sm:$0xff] %v854
      %887 = vst [vmem:[%s172 + $0x70] sm:$0xff] %v855
      %888 = vst [vmem:[%s172 + $0x78] sm:$0xff] %v856
      %889 = vst [vmem:[%s172 + $0x80] sm:$0xff] %v857
      %890 = vst [vmem:[%s172 + $0x88] sm:$0xff] %v858
      %891 = vst [vmem:[%s172 + $0x90] sm:$0xff] %v859
      %892 = vst [vmem:[%s172 + $0x98] sm:$0xff] %v860
      %893 = vst [vmem:[%s172 + $0xa0] sm:$0xff] %v861
      %894 = vst [vmem:[%s172 + $0xa8] sm:$0xff] %v862
      %895 = vst [vmem:[%s172 + $0xb0] sm:$0xff] %v863
      %896 = vst [vmem:[%s172 + $0xb8] sm:$0xff] %v864
      %897 = vst [vmem:[%s172 + $0xc0] sm:$0xff] %v865
      %898 = vst [vmem:[%s172 + $0xc8] sm:$0xff] %v866
      %899 = vst [vmem:[%s172 + $0xd0] sm:$0xff] %v867
      %900 = vst [vmem:[%s172 + $0xd8] sm:$0xff] %v868
      %901 = vst [vmem:[%s172 + $0xe0] sm:$0xff] %v869
      %902 = vst [vmem:[%s172 + $0xe8] sm:$0xff] %v870
      %903 = vst [vmem:[%s172 + $0xf0] sm:$0xff] %v871
      %904 = vst [vmem:[%s172 + $0xf8] sm:$0xff] %v872
      %s905 = smul.u32 32, %s14
      %p906 = scmp.lt.s32.totalorder %s905, 63
      %s907 = scalar_select %p906, %s905, 63
      %s908 = smul.addr %s907, 8
      %s909 = scalar_lea.vmem %s3, %s908
      // Predicated region
      $region33: #{ignn_forward.3} parent=31 // pred_check
        %p910 = pneg %p100
      $region34: #{ignn_forward.3} parent=31 // pred_check_branch
        %912 = sbr.rel (%p910) target = $region36
      $region35: #{ignn_forward.3} parent=31 // pred_region
        %s913 = smul.u32 32, %s14
      $region36: #{ignn_forward.3} parent=31 // pred_fallthru
        _
    $region32: #{ignn_forward.3} parent=5 // pred_fallthru
      _
    %p914 = scmp.le.s32.totalorder 2, %s9
    // Predicated region
    $region37: #{ignn_forward.3} parent=5 // pred_check
      %p915 = pneg %p914
    $region38: #{ignn_forward.3} parent=5 // pred_check_branch
      %917 = sbr.rel (%p915) target = $region40
    $region39: #{ignn_forward.3} parent=5 // pred_region
      %s918 = ssub.s32 %s9, 2
      // Predicated region
      $region41: #{ignn_forward.3} parent=39 // pred_check
        %p919 = pneg %p106
      $region42: #{ignn_forward.3} parent=39 // pred_check_branch
        %921 = sbr.rel (%p919) target = $region44
      $region43: #{ignn_forward.3} parent=39 // pred_region
        %s922 = smul.u32 32, %s15
        %p923 = scmp.lt.s32.totalorder %s922, 63
        %s924 = scalar_select %p923, %s922, 63
        %s925 = smul.addr %s924, 8
        %s926 = scalar_lea.vmem %s3, %s925
      $region44: #{ignn_forward.3} parent=39 // pred_fallthru
        _
    $region40: #{ignn_forward.3} parent=5 // pred_fallthru
      _
  $region6: #{ignn_forward.3} parent=0 // loop_footer
    %s13 = sadd.s32 1, %s9
  $region7: #{ignn_forward.3} parent=0 // loop_footer_branch
    %8 = sbr.rel target = $region3
  $region8: #{ignn_forward.3} parent=0 // loop_exit
    _

// kernel: ignn_forward.2
$region0: #{ignn_forward.2}
  #allocation0 [shape = 'u32[]', space=smem, size = 0x4, offset = 0x4, fixed_abs, tag = 'smem constant byte address 0x4 - core index']
  #allocation1 [shape = 'u32[144,128]{1,0:T(1,128)}', space=vmem, size = 0x12000, scoped, tag = 'internal scratch']
  #allocation2 [shape = 'f32[512,128]{1,0:T(8,128)}', space=vmem, size = 0x40000, scoped, tag = 'scratch operand']
  #allocation3 [shape = 'bf16[512,128]{1,0:T(16,128)(2,1)}', space=vmem, size = 0x20000, scoped, tag = 'scratch operand']
  #allocation4 [shape = 'bf16[512,128]{1,0:T(16,128)(2,1)}', space=vmem, size = 0x20000, scoped, tag = 'scratch operand']
  #allocation5 [shape = 's32[1]{0:T(128)}', space=smem, size = 0x200, scoped, tag = 'scratch operand']
  %s0 = inlined_call_operand.vmem [shape: bf16[512,512], index: 0, kind: input, shape index: {}]
  %s1 = inlined_call_operand.vmem [shape: bf16[512,16], index: 1, kind: input, shape index: {}]
  %s2 = inlined_call_operand.vmem [shape: bf16[16,128], index: 2, kind: input, shape index: {}]
  %s3 = inlined_call_operand.vmem [shape: f32[1,128], index: 3, kind: input, shape index: {}]
  %s4 = inlined_call_operand.vmem [shape: f32[128,128], index: 4, kind: input, shape index: {}]
  %s5 = inlined_call_operand.vmem [shape: f32[512,128], index: 5, kind: input, shape index: {}]
  %s6 = inlined_call_operand.vmem [shape: f32[512,128], index: 6, kind: output, shape index: {}]
  %s7 = sld [smem:[#allocation0]]
  $region66: #{ignn_forward.2} parent=0
    _
  %s9 = ssub.s32 1, %s7
  %s10 = scalar_select 0, %s9, %s7
  // Predicated region
  $region2: #{ignn_forward.2} parent=0 // pred_check
    _
  $region3: #{ignn_forward.2} parent=0 // pred_check_branch
    %12 = sbr.rel (0) target = $region5
  $region4: #{ignn_forward.2} parent=0 // pred_region
    _
  $region5: #{ignn_forward.2} parent=0 // pred_fallthru
    _
  // Predicated region
  $region6: #{ignn_forward.2} parent=0 // pred_check
    _
  $region7: #{ignn_forward.2} parent=0 // pred_check_branch
    %14 = sbr.rel (0) target = $region9
  $region8: #{ignn_forward.2} parent=0 // pred_region
    _
  $region9: #{ignn_forward.2} parent=0 // pred_fallthru
    _
  // Predicated region
  $region10: #{ignn_forward.2} parent=0 // pred_check
    _
  $region11: #{ignn_forward.2} parent=0 // pred_check_branch
    %16 = sbr.rel (0) target = $region13
  $region12: #{ignn_forward.2} parent=0 // pred_region
    _
  $region13: #{ignn_forward.2} parent=0 // pred_fallthru
    _
  // Predicated region
  $region14: #{ignn_forward.2} parent=0 // pred_check
    _
  $region15: #{ignn_forward.2} parent=0 // pred_check_branch
    %18 = sbr.rel (0) target = $region17
  $region16: #{ignn_forward.2} parent=0 // pred_region
    _
  $region17: #{ignn_forward.2} parent=0 // pred_fallthru
    _
  // Predicated region
  $region18: #{ignn_forward.2} parent=0 // pred_check
    _
  $region19: #{ignn_forward.2} parent=0 // pred_check_branch
    %20 = sbr.rel (0) target = $region21
  $region20: #{ignn_forward.2} parent=0 // pred_region
    _
  $region21: #{ignn_forward.2} parent=0 // pred_fallthru
    _
  // Predicated region
  $region22: #{ignn_forward.2} parent=0 // pred_check
    _
  $region23: #{ignn_forward.2} parent=0 // pred_check_branch
    %22 = sbr.rel (0) target = $region25
  $region24: #{ignn_forward.2} parent=0 // pred_region
    _
  $region25: #{ignn_forward.2} parent=0 // pred_fallthru
    _
  loop: start=0, step=1, limit=2
  $region26: #{ignn_forward.2} parent=0 // loop_pre_header
    _
  $region27: #{ignn_forward.2} parent=0 // loop_header
    %s25 = sphi 0, %s29
    %p26 = scmp.ge.s32.totalorder %s25, 2
  $region28: #{ignn_forward.2} parent=0 // loop_header_branch
    %28 = sbr.rel (%p26) target = $region32
  $region29: #{ignn_forward.2} parent=0 // loop_body
    %s30 = smul.u32 %s25, 256
    %s31 = sshra.s32 %s30, 3
    %s32 = sand.u32 %s30, 7
    %s33 = smul.addr %s31, 4
    %s34 = scalar_lea.vmem %s1, %s33
    %v35 = vld [vmem:[%s34] sm:$0xf]
    %v36 = vld [vmem:[%s34 + $0x4] sm:$0xf]
    %v37 = vld [vmem:[%s34 + $0x8] sm:$0xf]
    %v38 = vld [vmem:[%s34 + $0xc] sm:$0xf]
    %v39 = vld [vmem:[%s34 + $0x10] sm:$0xf]
    %v40 = vld [vmem:[%s34 + $0x14] sm:$0xf]
    %v41 = vld [vmem:[%s34 + $0x18] sm:$0xf]
    %v42 = vld [vmem:[%s34 + $0x1c] sm:$0xf]
    %v43 = vld [vmem:[%s34 + $0x20] sm:$0xf]
    %v44 = vld [vmem:[%s34 + $0x24] sm:$0xf]
    %v45 = vld [vmem:[%s34 + $0x28] sm:$0xf]
    %v46 = vld [vmem:[%s34 + $0x2c] sm:$0xf]
    %v47 = vld [vmem:[%s34 + $0x30] sm:$0xf]
    %v48 = vld [vmem:[%s34 + $0x34] sm:$0xf]
    %v49 = vld [vmem:[%s34 + $0x38] sm:$0xf]
    %v50 = vld [vmem:[%s34 + $0x3c] sm:$0xf]
    %v51 = vld [vmem:[%s34 + $0x40] sm:$0xf]
    %v52 = vld [vmem:[%s34 + $0x44] sm:$0xf]
    %v53 = vld [vmem:[%s34 + $0x48] sm:$0xf]
    %v54 = vld [vmem:[%s34 + $0x4c] sm:$0xf]
    %v55 = vld [vmem:[%s34 + $0x50] sm:$0xf]
    %v56 = vld [vmem:[%s34 + $0x54] sm:$0xf]
    %v57 = vld [vmem:[%s34 + $0x58] sm:$0xf]
    %v58 = vld [vmem:[%s34 + $0x5c] sm:$0xf]
    %v59 = vld [vmem:[%s34 + $0x60] sm:$0xf]
    %v60 = vld [vmem:[%s34 + $0x64] sm:$0xf]
    %v61 = vld [vmem:[%s34 + $0x68] sm:$0xf]
    %v62 = vld [vmem:[%s34 + $0x6c] sm:$0xf]
    %v63 = vld [vmem:[%s34 + $0x70] sm:$0xf]
    %v64 = vld [vmem:[%s34 + $0x74] sm:$0xf]
    %v65 = vld [vmem:[%s34 + $0x78] sm:$0xf]
    %v66 = vld [vmem:[%s34 + $0x7c] sm:$0xf]
    %v67 = vld [vmem:[%s2] sm:$0xf]
    %v68 = vld [vmem:[%s2 + $0x4] sm:$0xf]
    %v69 = vld [vmem:[%s3] sm:$0x1]
    %v71 = vlaneseq
    %v72 = vshrl.u32 %v71, 7
    %v73 = vsub.s32 0, %v72
    %v74 = vrot.slane %v69, %v73
    %v108 = vunpack.c.l.b16 %v35
    %v109 = vunpack.c.l.b16 %v36
    %v110 = vunpack.c.l.b16 %v37
    %v111 = vunpack.c.l.b16 %v38
    %v112 = vunpack.c.l.b16 %v39
    %v113 = vunpack.c.l.b16 %v40
    %v114 = vunpack.c.l.b16 %v41
    %v115 = vunpack.c.l.b16 %v42
    %v116 = vunpack.c.l.b16 %v43
    %v117 = vunpack.c.l.b16 %v44
    %v118 = vunpack.c.l.b16 %v45
    %v119 = vunpack.c.l.b16 %v46
    %v120 = vunpack.c.l.b16 %v47
    %v121 = vunpack.c.l.b16 %v48
    %v122 = vunpack.c.l.b16 %v49
    %v123 = vunpack.c.l.b16 %v50
    %v124 = vunpack.c.l.b16 %v51
    %v125 = vunpack.c.l.b16 %v52
    %v126 = vunpack.c.l.b16 %v53
    %v127 = vunpack.c.l.b16 %v54
    %v128 = vunpack.c.l.b16 %v55
    %v129 = vunpack.c.l.b16 %v56
    %v130 = vunpack.c.l.b16 %v57
    %v131 = vunpack.c.l.b16 %v58
    %v132 = vunpack.c.l.b16 %v59
    %v133 = vunpack.c.l.b16 %v60
    %v134 = vunpack.c.l.b16 %v61
    %v135 = vunpack.c.l.b16 %v62
    %v136 = vunpack.c.l.b16 %v63
    %v137 = vunpack.c.l.b16 %v64
    %v138 = vunpack.c.l.b16 %v65
    %v139 = vunpack.c.l.b16 %v66
    %v140 = vpack.c.b16 %v109, %v108
    %v141 = vpack.c.b16 %v111, %v110
    %v142 = vpack.c.b16 %v113, %v112
    %v143 = vpack.c.b16 %v115, %v114
    %v144 = vpack.c.b16 %v117, %v116
    %v145 = vpack.c.b16 %v119, %v118
    %v146 = vpack.c.b16 %v121, %v120
    %v147 = vpack.c.b16 %v123, %v122
    %v148 = vpack.c.b16 %v125, %v124
    %v149 = vpack.c.b16 %v127, %v126
    %v150 = vpack.c.b16 %v129, %v128
    %v151 = vpack.c.b16 %v131, %v130
    %v152 = vpack.c.b16 %v133, %v132
    %v153 = vpack.c.b16 %v135, %v134
    %v154 = vpack.c.b16 %v137, %v136
    %v155 = vpack.c.b16 %v139, %v138
    %v158 = vunpack.c.l.b16 %v67
    %v159 = vunpack.c.l.b16 %v68
    %v160 = vpack.c.b16 %v159, %v158
    %vm162 = vcmask 130048
    %v164 = vsel %vm162, %v140, 0
    %v167 = vsel %vm162, %v141, 0
    %v170 = vsel %vm162, %v142, 0
    %v173 = vsel %vm162, %v143, 0
    %v176 = vsel %vm162, %v144, 0
    %v179 = vsel %vm162, %v145, 0
    %v182 = vsel %vm162, %v146, 0
    %v185 = vsel %vm162, %v147, 0
    %v188 = vsel %vm162, %v148, 0
    %v191 = vsel %vm162, %v149, 0
    %v194 = vsel %vm162, %v150, 0
    %v197 = vsel %vm162, %v151, 0
    %v200 = vsel %vm162, %v152, 0
    %v203 = vsel %vm162, %v153, 0
    %v206 = vsel %vm162, %v154, 0
    %v209 = vsel %vm162, %v155, 0
    %211 = vmatprep.subr.bf16.mxu0 0
    %212 = vmatpush1.bf16.msra.mxu0 %v160
    %213 = vmatprep.subr.bf16.mxu0 0
    %214 = vmatpush1.bf16.msra.mxu0 0
    %215 = vmatprep.subr.bf16.mxu0 0
    %216 = vmatpush1.bf16.msra.mxu0 0
    %217 = vmatprep.subr.bf16.mxu0 0
    %218 = vmatpush1.bf16.msra.mxu0 0
    %219 = vmatprep.subr.bf16.mxu0 0
    %220 = vmatpush1.bf16.msra.mxu0 0
    %221 = vmatprep.subr.bf16.mxu0 0
    %222 = vmatpush1.bf16.msra.mxu0 0
    %223 = vmatprep.subr.bf16.mxu0 0
    %224 = vmatpush1.bf16.msra.mxu0 0
    %225 = vmatprep.subr.bf16.mxu0 0
    %226 = vmatpush1.bf16.msra.mxu0 0
    %227 = vmatprep.subr.bf16.mxu0 0
    %228 = vmatpush1.bf16.msra.mxu0 0
    %229 = vmatprep.subr.bf16.mxu0 0
    %230 = vmatpush1.bf16.msra.mxu0 0
    %231 = vmatprep.subr.bf16.mxu0 0
    %232 = vmatpush1.bf16.msra.mxu0 0
    %233 = vmatprep.subr.bf16.mxu0 0
    %234 = vmatpush1.bf16.msra.mxu0 0
    %235 = vmatprep.subr.bf16.mxu0 0
    %236 = vmatpush1.bf16.msra.mxu0 0
    %237 = vmatprep.subr.bf16.mxu0 0
    %238 = vmatpush1.bf16.msra.mxu0 0
    %239 = vmatprep.subr.bf16.mxu0 0
    %240 = vmatpush1.bf16.msra.mxu0 0
    %241 = vmatprep.subr.bf16.mxu0 0
    %242 = vmatpush1.bf16.msra.mxu0 0
    %243 = vmatprep.mubr.bf16.mxu0 0
    %244 = vmatmul.mubr.bf16.gmra.mrb[0].mxu0 %v164
    %v245 = vpop.f32.mrb[0].mxu0
    %v246 = vadd.f32 %v74, %v245
    %v247 = vpop.f32.mrb[0].mxu0
    %v248 = vpop.f32.mrb[0].mxu0
    %v249 = vadd.f32 %v74, %v248
    %v250 = vpop.f32.mrb[0].mxu0
    %251 = vmatprep.mubr.bf16.mxu0 0
    %252 = vmatmul.mubr.bf16.gmra.mrb[0].mxu0 %v167
    %v253 = vpop.f32.mrb[0].mxu0
    %v254 = vadd.f32 %v74, %v253
    %v255 = vpop.f32.mrb[0].mxu0
    %v256 = vpop.f32.mrb[0].mxu0
    %v257 = vadd.f32 %v74, %v256
    %v258 = vpop.f32.mrb[0].mxu0
    %259 = vmatprep.mubr.bf16.mxu0 0
    %260 = vmatmul.mubr.bf16.gmra.mrb[0].mxu0 %v170
    %v261 = vpop.f32.mrb[0].mxu0
    %v262 = vadd.f32 %v74, %v261
    %v263 = vpop.f32.mrb[0].mxu0
    %v264 = vpop.f32.mrb[0].mxu0
    %v265 = vadd.f32 %v74, %v264
    %v266 = vpop.f32.mrb[0].mxu0
    %267 = vmatprep.mubr.bf16.mxu0 0
    %268 = vmatmul.mubr.bf16.gmra.mrb[0].mxu0 %v173
    %v269 = vpop.f32.mrb[0].mxu0
    %v270 = vadd.f32 %v74, %v269
    %v271 = vpop.f32.mrb[0].mxu0
    %v272 = vpop.f32.mrb[0].mxu0
    %v273 = vadd.f32 %v74, %v272
    %v274 = vpop.f32.mrb[0].mxu0
    %275 = vmatprep.mubr.bf16.mxu0 0
    %276 = vmatmul.mubr.bf16.gmra.mrb[0].mxu0 %v176
    %v277 = vpop.f32.mrb[0].mxu0
    %v278 = vadd.f32 %v74, %v277
    %v279 = vpop.f32.mrb[0].mxu0
    %v280 = vpop.f32.mrb[0].mxu0
    %v281 = vadd.f32 %v74, %v280
    %v282 = vpop.f32.mrb[0].mxu0
    %283 = vmatprep.mubr.bf16.mxu0 0
    %284 = vmatmul.mubr.bf16.gmra.mrb[0].mxu0 %v179
    %v285 = vpop.f32.mrb[0].mxu0
    %v286 = vadd.f32 %v74, %v285
    %v287 = vpop.f32.mrb[0].mxu0
    %v288 = vpop.f32.mrb[0].mxu0
    %v289 = vadd.f32 %v74, %v288
    %v290 = vpop.f32.mrb[0].mxu0
    %291 = vmatprep.mubr.bf16.mxu0 0
    %292 = vmatmul.mubr.bf16.gmra.mrb[0].mxu0 %v182
    %v293 = vpop.f32.mrb[0].mxu0
    %v294 = vadd.f32 %v74, %v293
    %v295 = vpop.f32.mrb[0].mxu0
    %v296 = vpop.f32.mrb[0].mxu0
    %v297 = vadd.f32 %v74, %v296
    %v298 = vpop.f32.mrb[0].mxu0
    %299 = vmatprep.mubr.bf16.mxu0 0
    %300 = vmatmul.mubr.bf16.gmra.mrb[0].mxu0 %v185
    %v301 = vpop.f32.mrb[0].mxu0
    %v302 = vadd.f32 %v74, %v301
    %v303 = vpop.f32.mrb[0].mxu0
    %v304 = vpop.f32.mrb[0].mxu0
    %v305 = vadd.f32 %v74, %v304
    %v306 = vpop.f32.mrb[0].mxu0
    %307 = vmatprep.mubr.bf16.mxu0 0
    %308 = vmatmul.mubr.bf16.gmra.mrb[0].mxu0 %v188
    %v309 = vpop.f32.mrb[0].mxu0
    %v310 = vadd.f32 %v74, %v309
    %v311 = vpop.f32.mrb[0].mxu0
    %v312 = vpop.f32.mrb[0].mxu0
    %v313 = vadd.f32 %v74, %v312
    %v314 = vpop.f32.mrb[0].mxu0
    %315 = vmatprep.mubr.bf16.mxu0 0
    %316 = vmatmul.mubr.bf16.gmra.mrb[0].mxu0 %v191
    %v317 = vpop.f32.mrb[0].mxu0
    %v318 = vadd.f32 %v74, %v317
    %v319 = vpop.f32.mrb[0].mxu0
    %v320 = vpop.f32.mrb[0].mxu0
    %v321 = vadd.f32 %v74, %v320
    %v322 = vpop.f32.mrb[0].mxu0
    %323 = vmatprep.mubr.bf16.mxu0 0
    %324 = vmatmul.mubr.bf16.gmra.mrb[0].mxu0 %v194
    %v325 = vpop.f32.mrb[0].mxu0
    %v326 = vadd.f32 %v74, %v325
    %v327 = vpop.f32.mrb[0].mxu0
    %v328 = vpop.f32.mrb[0].mxu0
    %v329 = vadd.f32 %v74, %v328
    %v330 = vpop.f32.mrb[0].mxu0
    %331 = vmatprep.mubr.bf16.mxu0 0
    %332 = vmatmul.mubr.bf16.gmra.mrb[0].mxu0 %v197
    %v333 = vpop.f32.mrb[0].mxu0
    %v334 = vadd.f32 %v74, %v333
    %v335 = vpop.f32.mrb[0].mxu0
    %v336 = vpop.f32.mrb[0].mxu0
    %v337 = vadd.f32 %v74, %v336
    %v338 = vpop.f32.mrb[0].mxu0
    %339 = vmatprep.mubr.bf16.mxu0 0
    %340 = vmatmul.mubr.bf16.gmra.mrb[0].mxu0 %v200
    %v341 = vpop.f32.mrb[0].mxu0
    %v342 = vadd.f32 %v74, %v341
    %v343 = vpop.f32.mrb[0].mxu0
    %v344 = vpop.f32.mrb[0].mxu0
    %v345 = vadd.f32 %v74, %v344
    %v346 = vpop.f32.mrb[0].mxu0
    %347 = vmatprep.mubr.bf16.mxu0 0
    %348 = vmatmul.mubr.bf16.gmra.mrb[0].mxu0 %v203
    %v349 = vpop.f32.mrb[0].mxu0
    %v350 = vadd.f32 %v74, %v349
    %v351 = vpop.f32.mrb[0].mxu0
    %v352 = vpop.f32.mrb[0].mxu0
    %v353 = vadd.f32 %v74, %v352
    %v354 = vpop.f32.mrb[0].mxu0
    %355 = vmatprep.mubr.bf16.mxu0 0
    %356 = vmatmul.mubr.bf16.gmra.mrb[0].mxu0 %v206
    %v357 = vpop.f32.mrb[0].mxu0
    %v358 = vadd.f32 %v74, %v357
    %v359 = vpop.f32.mrb[0].mxu0
    %v360 = vpop.f32.mrb[0].mxu0
    %v361 = vadd.f32 %v74, %v360
    %v362 = vpop.f32.mrb[0].mxu0
    %363 = vmatprep.mubr.bf16.mxu0 0
    %364 = vmatmul.mubr.bf16.gmra.mrb[0].mxu0 %v209
    %v365 = vpop.f32.mrb[0].mxu0
    %v366 = vadd.f32 %v74, %v365
    %v367 = vpop.f32.mrb[0].mxu0
    %v368 = vpop.f32.mrb[0].mxu0
    %v369 = vadd.f32 %v74, %v368
    %v370 = vpop.f32.mrb[0].mxu0
    %371 = vdwg.mxu0
    %v372 = vlaneseq
    %v373 = vshrl.u32 %v372, 7
    %v374 = vadd.s32 %v373, 8
    %v375 = vadd.s32 %v373, 16
    %v376 = vadd.s32 %v373, 24
    %v377 = vadd.s32 %v373, 32
    %v378 = vadd.s32 %v373, 40
    %v379 = vadd.s32 %v373, 48
    %v380 = vadd.s32 %v373, 56
    %v381 = vadd.s32 %v373, 64
    %v382 = vadd.s32 %v373, 72
    %v383 = vadd.s32 %v373, 80
    %v384 = vadd.s32 %v373, 88
    %v385 = vadd.s32 %v373, 96
    %v386 = vadd.s32 %v373, 104
    %v387 = vadd.s32 %v373, 112
    %v388 = vadd.s32 %v373, 120
    %v389 = vadd.s32 %v373, 128
    %v390 = vadd.s32 %v373, 136
    %v391 = vadd.s32 %v373, 144
    %v392 = vadd.s32 %v373, 152
    %v393 = vadd.s32 %v373, 160
    %v394 = vadd.s32 %v373, 168
    %v395 = vadd.s32 %v373, 176
    %v396 = vadd.s32 %v373, 184
    %v397 = vadd.s32 %v373, 192
    %v398 = vadd.s32 %v373, 200
    %v399 = vadd.s32 %v373, 208
    %v400 = vadd.s32 %v373, 216
    %v401 = vadd.s32 %v373, 224
    %v402 = vadd.s32 %v373, 232
    %v403 = vadd.s32 %v373, 240
    %v404 = vadd.s32 %v373, 248
    %v405 = vstv %s30
    %v406 = vadd.s32 %v373, %v405
    %v407 = vadd.s32 %v374, %v405
    %v408 = vadd.s32 %v375, %v405
    %v409 = vadd.s32 %v376, %v405
    %v410 = vadd.s32 %v377, %v405
    %v411 = vadd.s32 %v378, %v405
    %v412 = vadd.s32 %v379, %v405
    %v413 = vadd.s32 %v380, %v405
    %v414 = vadd.s32 %v381, %v405
    %v415 = vadd.s32 %v382, %v405
    %v416 = vadd.s32 %v383, %v405
    %v417 = vadd.s32 %v384, %v405
    %v418 = vadd.s32 %v385, %v405
    %v419 = vadd.s32 %v386, %v405
    %v420 = vadd.s32 %v387, %v405
    %v421 = vadd.s32 %v388, %v405
    %v422 = vadd.s32 %v389, %v405
    %v423 = vadd.s32 %v390, %v405
    %v424 = vadd.s32 %v391, %v405
    %v425 = vadd.s32 %v392, %v405
    %v426 = vadd.s32 %v393, %v405
    %v427 = vadd.s32 %v394, %v405
    %v428 = vadd.s32 %v395, %v405
    %v429 = vadd.s32 %v396, %v405
    %v430 = vadd.s32 %v397, %v405
    %v431 = vadd.s32 %v398, %v405
    %v432 = vadd.s32 %v399, %v405
    %v433 = vadd.s32 %v400, %v405
    %v434 = vadd.s32 %v401, %v405
    %v435 = vadd.s32 %v402, %v405
    %v436 = vadd.s32 %v403, %v405
    %v437 = vadd.s32 %v404, %v405
    %vm438 = vcmp.lt.s32.totalorder %v406, 300
    %vm439 = vcmp.lt.s32.totalorder %v407, 300
    %vm440 = vcmp.lt.s32.totalorder %v408, 300
    %vm441 = vcmp.lt.s32.totalorder %v409, 300
    %vm442 = vcmp.lt.s32.totalorder %v410, 300
    %vm443 = vcmp.lt.s32.totalorder %v411, 300
    %vm444 = vcmp.lt.s32.totalorder %v412, 300
    %vm445 = vcmp.lt.s32.totalorder %v413, 300
    %vm446 = vcmp.lt.s32.totalorder %v414, 300
    %vm447 = vcmp.lt.s32.totalorder %v415, 300
    %vm448 = vcmp.lt.s32.totalorder %v416, 300
    %vm449 = vcmp.lt.s32.totalorder %v417, 300
    %vm450 = vcmp.lt.s32.totalorder %v418, 300
    %vm451 = vcmp.lt.s32.totalorder %v419, 300
    %vm452 = vcmp.lt.s32.totalorder %v420, 300
    %vm453 = vcmp.lt.s32.totalorder %v421, 300
    %vm454 = vcmp.lt.s32.totalorder %v422, 300
    %vm455 = vcmp.lt.s32.totalorder %v423, 300
    %vm456 = vcmp.lt.s32.totalorder %v424, 300
    %vm457 = vcmp.lt.s32.totalorder %v425, 300
    %vm458 = vcmp.lt.s32.totalorder %v426, 300
    %vm459 = vcmp.lt.s32.totalorder %v427, 300
    %vm460 = vcmp.lt.s32.totalorder %v428, 300
    %vm461 = vcmp.lt.s32.totalorder %v429, 300
    %vm462 = vcmp.lt.s32.totalorder %v430, 300
    %vm463 = vcmp.lt.s32.totalorder %v431, 300
    %vm464 = vcmp.lt.s32.totalorder %v432, 300
    %vm465 = vcmp.lt.s32.totalorder %v433, 300
    %vm466 = vcmp.lt.s32.totalorder %v434, 300
    %vm467 = vcmp.lt.s32.totalorder %v435, 300
    %vm468 = vcmp.lt.s32.totalorder %v436, 300
    %vm469 = vcmp.lt.s32.totalorder %v437, 300
    %v470 = vsel %vm438, %v246, 0.0
    %v471 = vsel %vm439, %v249, 0.0
    %v472 = vsel %vm440, %v254, 0.0
    %v473 = vsel %vm441, %v257, 0.0
    %v474 = vsel %vm442, %v262, 0.0
    %v475 = vsel %vm443, %v265, 0.0
    %v476 = vsel %vm444, %v270, 0.0
    %v477 = vsel %vm445, %v273, 0.0
    %v478 = vsel %vm446, %v278, 0.0
    %v479 = vsel %vm447, %v281, 0.0
    %v480 = vsel %vm448, %v286, 0.0
    %v481 = vsel %vm449, %v289, 0.0
    %v482 = vsel %vm450, %v294, 0.0
    %v483 = vsel %vm451, %v297, 0.0
    %v484 = vsel %vm452, %v302, 0.0
    %v485 = vsel %vm453, %v305, 0.0
    %v486 = vsel %vm454, %v310, 0.0
    %v487 = vsel %vm455, %v313, 0.0
    %v488 = vsel %vm456, %v318, 0.0
    %v489 = vsel %vm457, %v321, 0.0
    %v490 = vsel %vm458, %v326, 0.0
    %v491 = vsel %vm459, %v329, 0.0
    %v492 = vsel %vm460, %v334, 0.0
    %v493 = vsel %vm461, %v337, 0.0
    %v494 = vsel %vm462, %v342, 0.0
    %v495 = vsel %vm463, %v345, 0.0
    %v496 = vsel %vm464, %v350, 0.0
    %v497 = vsel %vm465, %v353, 0.0
    %v498 = vsel %vm466, %v358, 0.0
    %v499 = vsel %vm467, %v361, 0.0
    %v500 = vsel %vm468, %v366, 0.0
    %v501 = vsel %vm469, %v369, 0.0
    %s502 = scalar_lea.vmem [#allocation2], %s30
    %503 = vst [vmem:[%s502] sm:$0xff] %v470
    %504 = vst [vmem:[%s502 + $0x8] sm:$0xff] %v471
    %505 = vst [vmem:[%s502 + $0x10] sm:$0xff] %v472
    %506 = vst [vmem:[%s502 + $0x18] sm:$0xff] %v473
    %507 = vst [vmem:[%s502 + $0x20] sm:$0xff] %v474
    %508 = vst [vmem:[%s502 + $0x28] sm:$0xff] %v475
    %509 = vst [vmem:[%s502 + $0x30] sm:$0xff] %v476
    %510 = vst [vmem:[%s502 + $0x38] sm:$0xff] %v477
    %511 = vst [vmem:[%s502 + $0x40] sm:$0xff] %v478
    %512 = vst [vmem:[%s502 + $0x48] sm:$0xff] %v479
    %513 = vst [vmem:[%s502 + $0x50] sm:$0xff] %v480
    %514 = vst [vmem:[%s502 + $0x58] sm:$0xff] %v481
    %515 = vst [vmem:[%s502 + $0x60] sm:$0xff] %v482
    %516 = vst [vmem:[%s502 + $0x68] sm:$0xff] %v483
    %517 = vst [vmem:[%s502 + $0x70] sm:$0xff] %v484
    %518 = vst [vmem:[%s502 + $0x78] sm:$0xff] %v485
    %519 = vst [vmem:[%s502 + $0x80] sm:$0xff] %v486
    %520 = vst [vmem:[%s502 + $0x88] sm:$0xff] %v487
    %521 = vst [vmem:[%s502 + $0x90] sm:$0xff] %v488
    %522 = vst [vmem:[%s502 + $0x98] sm:$0xff] %v489
    %523 = vst [vmem:[%s502 + $0xa0] sm:$0xff] %v490
    %524 = vst [vmem:[%s502 + $0xa8] sm:$0xff] %v491
    %525 = vst [vmem:[%s502 + $0xb0] sm:$0xff] %v492
    %526 = vst [vmem:[%s502 + $0xb8] sm:$0xff] %v493
    %527 = vst [vmem:[%s502 + $0xc0] sm:$0xff] %v494
    %528 = vst [vmem:[%s502 + $0xc8] sm:$0xff] %v495
    %529 = vst [vmem:[%s502 + $0xd0] sm:$0xff] %v496
    %530 = vst [vmem:[%s502 + $0xd8] sm:$0xff] %v497
    %531 = vst [vmem:[%s502 + $0xe0] sm:$0xff] %v498
    %532 = vst [vmem:[%s502 + $0xe8] sm:$0xff] %v499
    %533 = vst [vmem:[%s502 + $0xf0] sm:$0xff] %v500
    %534 = vst [vmem:[%s502 + $0xf8] sm:$0xff] %v501
    %s535 = scalar_lea.vmem %s5, %s30
    %v536 = vld [vmem:[%s535] sm:$0xff]
    %v537 = vld [vmem:[%s535 + $0x8] sm:$0xff]
    %v538 = vld [vmem:[%s535 + $0x10] sm:$0xff]
    %v539 = vld [vmem:[%s535 + $0x18] sm:$0xff]
    %v540 = vld [vmem:[%s535 + $0x20] sm:$0xff]
    %v541 = vld [vmem:[%s535 + $0x28] sm:$0xff]
    %v542 = vld [vmem:[%s535 + $0x30] sm:$0xff]
    %v543 = vld [vmem:[%s535 + $0x38] sm:$0xff]
    %v544 = vld [vmem:[%s535 + $0x40] sm:$0xff]
    %v545 = vld [vmem:[%s535 + $0x48] sm:$0xff]
    %v546 = vld [vmem:[%s535 + $0x50] sm:$0xff]
    %v547 = vld [vmem:[%s535 + $0x58] sm:$0xff]
    %v548 = vld [vmem:[%s535 + $0x60] sm:$0xff]
    %v549 = vld [vmem:[%s535 + $0x68] sm:$0xff]
    %v550 = vld [vmem:[%s535 + $0x70] sm:$0xff]
    %v551 = vld [vmem:[%s535 + $0x78] sm:$0xff]
    %v552 = vld [vmem:[%s535 + $0x80] sm:$0xff]
    %v553 = vld [vmem:[%s535 + $0x88] sm:$0xff]
    %v554 = vld [vmem:[%s535 + $0x90] sm:$0xff]
    %v555 = vld [vmem:[%s535 + $0x98] sm:$0xff]
    %v556 = vld [vmem:[%s535 + $0xa0] sm:$0xff]
    %v557 = vld [vmem:[%s535 + $0xa8] sm:$0xff]
    %v558 = vld [vmem:[%s535 + $0xb0] sm:$0xff]
    %v559 = vld [vmem:[%s535 + $0xb8] sm:$0xff]
    %v560 = vld [vmem:[%s535 + $0xc0] sm:$0xff]
    %v561 = vld [vmem:[%s535 + $0xc8] sm:$0xff]
    %v562 = vld [vmem:[%s535 + $0xd0] sm:$0xff]
    %v563 = vld [vmem:[%s535 + $0xd8] sm:$0xff]
    %v564 = vld [vmem:[%s535 + $0xe0] sm:$0xff]
    %v565 = vld [vmem:[%s535 + $0xe8] sm:$0xff]
    %v566 = vld [vmem:[%s535 + $0xf0] sm:$0xff]
    %v567 = vld [vmem:[%s535 + $0xf8] sm:$0xff]
    %s568 = scalar_lea.vmem %s6, %s30
    %569 = vst [vmem:[%s568] sm:$0xff] %v536
    %570 = vst [vmem:[%s568 + $0x8] sm:$0xff] %v537
    %571 = vst [vmem:[%s568 + $0x10] sm:$0xff] %v538
    %572 = vst [vmem:[%s568 + $0x18] sm:$0xff] %v539
    %573 = vst [vmem:[%s568 + $0x20] sm:$0xff] %v540
    %574 = vst [vmem:[%s568 + $0x28] sm:$0xff] %v541
    %575 = vst [vmem:[%s568 + $0x30] sm:$0xff] %v542
    %576 = vst [vmem:[%s568 + $0x38] sm:$0xff] %v543
    %577 = vst [vmem:[%s568 + $0x40] sm:$0xff] %v544
    %578 = vst [vmem:[%s568 + $0x48] sm:$0xff] %v545
    %579 = vst [vmem:[%s568 + $0x50] sm:$0xff] %v546
    %580 = vst [vmem:[%s568 + $0x58] sm:$0xff] %v547
    %581 = vst [vmem:[%s568 + $0x60] sm:$0xff] %v548
    %582 = vst [vmem:[%s568 + $0x68] sm:$0xff] %v549
    %583 = vst [vmem:[%s568 + $0x70] sm:$0xff] %v550
    %584 = vst [vmem:[%s568 + $0x78] sm:$0xff] %v551
    %585 = vst [vmem:[%s568 + $0x80] sm:$0xff] %v552
    %586 = vst [vmem:[%s568 + $0x88] sm:$0xff] %v553
    %587 = vst [vmem:[%s568 + $0x90] sm:$0xff] %v554
    %588 = vst [vmem:[%s568 + $0x98] sm:$0xff] %v555
    %589 = vst [vmem:[%s568 + $0xa0] sm:$0xff] %v556
    %590 = vst [vmem:[%s568 + $0xa8] sm:$0xff] %v557
    %591 = vst [vmem:[%s568 + $0xb0] sm:$0xff] %v558
    %592 = vst [vmem:[%s568 + $0xb8] sm:$0xff] %v559
    %593 = vst [vmem:[%s568 + $0xc0] sm:$0xff] %v560
    %594 = vst [vmem:[%s568 + $0xc8] sm:$0xff] %v561
    %595 = vst [vmem:[%s568 + $0xd0] sm:$0xff] %v562
    %596 = vst [vmem:[%s568 + $0xd8] sm:$0xff] %v563
    %597 = vst [vmem:[%s568 + $0xe0] sm:$0xff] %v564
    %598 = vst [vmem:[%s568 + $0xe8] sm:$0xff] %v565
    %599 = vst [vmem:[%s568 + $0xf0] sm:$0xff] %v566
    %600 = vst [vmem:[%s568 + $0xf8] sm:$0xff] %v567
    %v601 = vpack.c.bf16 %v537, %v536
    %v602 = vpack.c.bf16 %v539, %v538
    %v603 = vpack.c.bf16 %v541, %v540
    %v604 = vpack.c.bf16 %v543, %v542
    %v605 = vpack.c.bf16 %v545, %v544
    %v606 = vpack.c.bf16 %v547, %v546
    %v607 = vpack.c.bf16 %v549, %v548
    %v608 = vpack.c.bf16 %v551, %v550
    %v609 = vpack.c.bf16 %v553, %v552
    %v610 = vpack.c.bf16 %v555, %v554
    %v611 = vpack.c.bf16 %v557, %v556
    %v612 = vpack.c.bf16 %v559, %v558
    %v613 = vpack.c.bf16 %v561, %v560
    %v614 = vpack.c.bf16 %v563, %v562
    %v615 = vpack.c.bf16 %v565, %v564
    %v616 = vpack.c.bf16 %v567, %v566
    %s617 = sshra.s32 %s30, 4
    %s618 = sand.u32 %s30, 15
    %s619 = smul.addr %s617, 8
    %s620 = scalar_lea.vmem [#allocation3], %s619
    %621 = vst [vmem:[%s620] sm:$0xff] %v601
    %622 = vst [vmem:[%s620 + $0x8] sm:$0xff] %v602
    %623 = vst [vmem:[%s620 + $0x10] sm:$0xff] %v603
    %624 = vst [vmem:[%s620 + $0x18] sm:$0xff] %v604
    %625 = vst [vmem:[%s620 + $0x20] sm:$0xff] %v605
    %626 = vst [vmem:[%s620 + $0x28] sm:$0xff] %v606
    %627 = vst [vmem:[%s620 + $0x30] sm:$0xff] %v607
    %628 = vst [vmem:[%s620 + $0x38] sm:$0xff] %v608
    %629 = vst [vmem:[%s620 + $0x40] sm:$0xff] %v609
    %630 = vst [vmem:[%s620 + $0x48] sm:$0xff] %v610
    %631 = vst [vmem:[%s620 + $0x50] sm:$0xff] %v611
    %632 = vst [vmem:[%s620 + $0x58] sm:$0xff] %v612
    %633 = vst [vmem:[%s620 + $0x60] sm:$0xff] %v613
    %634 = vst [vmem:[%s620 + $0x68] sm:$0xff] %v614
    %635 = vst [vmem:[%s620 + $0x70] sm:$0xff] %v615
    %636 = vst [vmem:[%s620 + $0x78] sm:$0xff] %v616
  $region30: #{ignn_forward.2} parent=0 // loop_footer
    %s29 = sadd.s32 1, %s25
  $region31: #{ignn_forward.2} parent=0 // loop_footer_branch
    %24 = sbr.rel target = $region27
  $region32: #{ignn_forward.2} parent=0 // loop_exit
    _
  %s637 = scalar_lea.smem [#allocation5], 0
  %638 = sst [smem:[%s637]] 1
  loop: start=0, step=1, limit=16
  $region33: #{ignn_forward.2} parent=0 // loop_pre_header
    _
  $region34: #{ignn_forward.2} parent=0 // loop_header
    %s640 = sphi 0, %s644
    %p641 = scmp.ge.s32.totalorder %s640, 16
  $region35: #{ignn_forward.2} parent=0 // loop_header_branch
    %643 = sbr.rel (%p641) target = $region39
  $region36: #{ignn_forward.2} parent=0 // loop_body
    %s645 = sld [smem:[#allocation5]]
    %p646 = scmp.ne.s32.totalorder %s645, 0
    // Predicated region
    $region40: #{ignn_forward.2} parent=36 // pred_check
      %p647 = pneg %p646
    $region41: #{ignn_forward.2} parent=36 // pred_check_branch
      %649 = sbr.rel (%p647) target = $region43
    $region42: #{ignn_forward.2} parent=36 // pred_region
      loop: start=0, step=1, limit=2
      $region44: #{ignn_forward.2} parent=42 // loop_pre_header
        _
      $region45: #{ignn_forward.2} parent=42 // loop_header
        %s651 = sphi 0, %s655
        %p652 = scmp.ge.s32.totalorder %s651, 2
        %v656 = vphi 0.0, %v1846
        %v657 = vphi 0.0, %v1920
      $region46: #{ignn_forward.2} parent=42 // loop_header_branch
        %654 = sbr.rel (%p652) target = $region50
      $region47: #{ignn_forward.2} parent=42 // loop_body
        %s658 = smul.u32 %s651, 256
        %s659 = sshra.s32 %s658, 3
        %s660 = sand.u32 %s658, 7
        %s661 = smul.u32 %s659, 4
        %s662 = smul.addr %s661, 4
        %s663 = scalar_lea.vmem %s0, %s662
        %v664 = vld [vmem:[%s663] sm:$0xff]
        %v665 = vld [vmem:[%s663 + $0x8] sm:$0xff]
        %v666 = vld [vmem:[%s663 + $0x10] sm:$0xff]
        %v667 = vld [vmem:[%s663 + $0x18] sm:$0xff]
        %v668 = vld [vmem:[%s663 + $0x20] sm:$0xff]
        %v669 = vld [vmem:[%s663 + $0x28] sm:$0xff]
        %v670 = vld [vmem:[%s663 + $0x30] sm:$0xff]
        %v671 = vld [vmem:[%s663 + $0x38] sm:$0xff]
        %v672 = vld [vmem:[%s663 + $0x40] sm:$0xff]
        %v673 = vld [vmem:[%s663 + $0x48] sm:$0xff]
        %v674 = vld [vmem:[%s663 + $0x50] sm:$0xff]
        %v675 = vld [vmem:[%s663 + $0x58] sm:$0xff]
        %v676 = vld [vmem:[%s663 + $0x60] sm:$0xff]
        %v677 = vld [vmem:[%s663 + $0x68] sm:$0xff]
        %v678 = vld [vmem:[%s663 + $0x70] sm:$0xff]
        %v679 = vld [vmem:[%s663 + $0x78] sm:$0xff]
        %v680 = vld [vmem:[%s663 + $0x80] sm:$0xff]
        %v681 = vld [vmem:[%s663 + $0x88] sm:$0xff]
        %v682 = vld [vmem:[%s663 + $0x90] sm:$0xff]
        %v683 = vld [vmem:[%s663 + $0x98] sm:$0xff]
        %v684 = vld [vmem:[%s663 + $0xa0] sm:$0xff]
        %v685 = vld [vmem:[%s663 + $0xa8] sm:$0xff]
        %v686 = vld [vmem:[%s663 + $0xb0] sm:$0xff]
        %v687 = vld [vmem:[%s663 + $0xb8] sm:$0xff]
        %v688 = vld [vmem:[%s663 + $0xc0] sm:$0xff]
        %v689 = vld [vmem:[%s663 + $0xc8] sm:$0xff]
        %v690 = vld [vmem:[%s663 + $0xd0] sm:$0xff]
        %v691 = vld [vmem:[%s663 + $0xd8] sm:$0xff]
        %v692 = vld [vmem:[%s663 + $0xe0] sm:$0xff]
        %v693 = vld [vmem:[%s663 + $0xe8] sm:$0xff]
        %v694 = vld [vmem:[%s663 + $0xf0] sm:$0xff]
        %v695 = vld [vmem:[%s663 + $0xf8] sm:$0xff]
        %v696 = vld [vmem:[%s663 + $0x100] sm:$0xff]
        %v697 = vld [vmem:[%s663 + $0x108] sm:$0xff]
        %v698 = vld [vmem:[%s663 + $0x110] sm:$0xff]
        %v699 = vld [vmem:[%s663 + $0x118] sm:$0xff]
        %v700 = vld [vmem:[%s663 + $0x120] sm:$0xff]
        %v701 = vld [vmem:[%s663 + $0x128] sm:$0xff]
        %v702 = vld [vmem:[%s663 + $0x130] sm:$0xff]
        %v703 = vld [vmem:[%s663 + $0x138] sm:$0xff]
        %v704 = vld [vmem:[%s663 + $0x140] sm:$0xff]
        %v705 = vld [vmem:[%s663 + $0x148] sm:$0xff]
        %v706 = vld [vmem:[%s663 + $0x150] sm:$0xff]
        %v707 = vld [vmem:[%s663 + $0x158] sm:$0xff]
        %v708 = vld [vmem:[%s663 + $0x160] sm:$0xff]
        %v709 = vld [vmem:[%s663 + $0x168] sm:$0xff]
        %v710 = vld [vmem:[%s663 + $0x170] sm:$0xff]
        %v711 = vld [vmem:[%s663 + $0x178] sm:$0xff]
        %v712 = vld [vmem:[%s663 + $0x180] sm:$0xff]
        %v713 = vld [vmem:[%s663 + $0x188] sm:$0xff]
        %v714 = vld [vmem:[%s663 + $0x190] sm:$0xff]
        %v715 = vld [vmem:[%s663 + $0x198] sm:$0xff]
        %v716 = vld [vmem:[%s663 + $0x1a0] sm:$0xff]
        %v717 = vld [vmem:[%s663 + $0x1a8] sm:$0xff]
        %v718 = vld [vmem:[%s663 + $0x1b0] sm:$0xff]
        %v719 = vld [vmem:[%s663 + $0x1b8] sm:$0xff]
        %v720 = vld [vmem:[%s663 + $0x1c0] sm:$0xff]
        %v721 = vld [vmem:[%s663 + $0x1c8] sm:$0xff]
        %v722 = vld [vmem:[%s663 + $0x1d0] sm:$0xff]
        %v723 = vld [vmem:[%s663 + $0x1d8] sm:$0xff]
        %v724 = vld [vmem:[%s663 + $0x1e0] sm:$0xff]
        %v725 = vld [vmem:[%s663 + $0x1e8] sm:$0xff]
        %v726 = vld [vmem:[%s663 + $0x1f0] sm:$0xff]
        %v727 = vld [vmem:[%s663 + $0x1f8] sm:$0xff]
        %v728 = vld [vmem:[#allocation3] sm:$0xff]
        %v729 = vld [vmem:[#allocation3 + $0x8] sm:$0xff]
        %v730 = vld [vmem:[#allocation3 + $0x10] sm:$0xff]
        %v731 = vld [vmem:[#allocation3 + $0x18] sm:$0xff]
        %v732 = vld [vmem:[#allocation3 + $0x20] sm:$0xff]
        %v733 = vld [vmem:[#allocation3 + $0x28] sm:$0xff]
        %v734 = vld [vmem:[#allocation3 + $0x30] sm:$0xff]
        %v735 = vld [vmem:[#allocation3 + $0x38] sm:$0xff]
        %v736 = vld [vmem:[#allocation3 + $0x40] sm:$0xff]
        %v737 = vld [vmem:[#allocation3 + $0x48] sm:$0xff]
        %v738 = vld [vmem:[#allocation3 + $0x50] sm:$0xff]
        %v739 = vld [vmem:[#allocation3 + $0x58] sm:$0xff]
        %v740 = vld [vmem:[#allocation3 + $0x60] sm:$0xff]
        %v741 = vld [vmem:[#allocation3 + $0x68] sm:$0xff]
        %v742 = vld [vmem:[#allocation3 + $0x70] sm:$0xff]
        %v743 = vld [vmem:[#allocation3 + $0x78] sm:$0xff]
        %v744 = vld [vmem:[#allocation3 + $0x80] sm:$0xff]
        %v745 = vld [vmem:[#allocation3 + $0x88] sm:$0xff]
        %v746 = vld [vmem:[#allocation3 + $0x90] sm:$0xff]
        %v747 = vld [vmem:[#allocation3 + $0x98] sm:$0xff]
        %v748 = vld [vmem:[#allocation3 + $0xa0] sm:$0xff]
        %v749 = vld [vmem:[#allocation3 + $0xa8] sm:$0xff]
        %v750 = vld [vmem:[#allocation3 + $0xb0] sm:$0xff]
        %v751 = vld [vmem:[#allocation3 + $0xb8] sm:$0xff]
        %v752 = vld [vmem:[#allocation3 + $0xc0] sm:$0xff]
        %v753 = vld [vmem:[#allocation3 + $0xc8] sm:$0xff]
        %v754 = vld [vmem:[#allocation3 + $0xd0] sm:$0xff]
        %v755 = vld [vmem:[#allocation3 + $0xd8] sm:$0xff]
        %v756 = vld [vmem:[#allocation3 + $0xe0] sm:$0xff]
        %v757 = vld [vmem:[#allocation3 + $0xe8] sm:$0xff]
        %v758 = vld [vmem:[#allocation3 + $0xf0] sm:$0xff]
        %v759 = vld [vmem:[#allocation3 + $0xf8] sm:$0xff]
        %v824 = vunpack.c.l.b16 %v664
        %v825 = vunpack.c.h.b16 %v664
        %v826 = vunpack.c.l.b16 %v665
        %v827 = vunpack.c.h.b16 %v665
        %v828 = vunpack.c.l.b16 %v666
        %v829 = vunpack.c.h.b16 %v666
        %v830 = vunpack.c.l.b16 %v667
        %v831 = vunpack.c.h.b16 %v667
        %v832 = vunpack.c.l.b16 %v668
        %v833 = vunpack.c.h.b16 %v668
        %v834 = vunpack.c.l.b16 %v669
        %v835 = vunpack.c.h.b16 %v669
        %v836 = vunpack.c.l.b16 %v670
        %v837 = vunpack.c.h.b16 %v670
        %v838 = vunpack.c.l.b16 %v671
        %v839 = vunpack.c.h.b16 %v671
        %v840 = vunpack.c.l.b16 %v672
        %v841 = vunpack.c.h.b16 %v672
        %v842 = vunpack.c.l.b16 %v673
        %v843 = vunpack.c.h.b16 %v673
        %v844 = vunpack.c.l.b16 %v674
        %v845 = vunpack.c.h.b16 %v674
        %v846 = vunpack.c.l.b16 %v675
        %v847 = vunpack.c.h.b16 %v675
        %v848 = vunpack.c.l.b16 %v676
        %v849 = vunpack.c.h.b16 %v676
        %v850 = vunpack.c.l.b16 %v677
        %v851 = vunpack.c.h.b16 %v677
        %v852 = vunpack.c.l.b16 %v678
        %v853 = vunpack.c.h.b16 %v678
        %v854 = vunpack.c.l.b16 %v679
        %v855 = vunpack.c.h.b16 %v679
        %v856 = vunpack.c.l.b16 %v680
        %v857 = vunpack.c.h.b16 %v680
        %v858 = vunpack.c.l.b16 %v681
        %v859 = vunpack.c.h.b16 %v681
        %v860 = vunpack.c.l.b16 %v682
        %v861 = vunpack.c.h.b16 %v682
        %v862 = vunpack.c.l.b16 %v683
        %v863 = vunpack.c.h.b16 %v683
        %v864 = vunpack.c.l.b16 %v684
        %v865 = vunpack.c.h.b16 %v684
        %v866 = vunpack.c.l.b16 %v685
        %v867 = vunpack.c.h.b16 %v685
        %v868 = vunpack.c.l.b16 %v686
        %v869 = vunpack.c.h.b16 %v686
        %v870 = vunpack.c.l.b16 %v687
        %v871 = vunpack.c.h.b16 %v687
        %v872 = vunpack.c.l.b16 %v688
        %v873 = vunpack.c.h.b16 %v688
        %v874 = vunpack.c.l.b16 %v689
        %v875 = vunpack.c.h.b16 %v689
        %v876 = vunpack.c.l.b16 %v690
        %v877 = vunpack.c.h.b16 %v690
        %v878 = vunpack.c.l.b16 %v691
        %v879 = vunpack.c.h.b16 %v691
        %v880 = vunpack.c.l.b16 %v692
        %v881 = vunpack.c.h.b16 %v692
        %v882 = vunpack.c.l.b16 %v693
        %v883 = vunpack.c.h.b16 %v693
        %v884 = vunpack.c.l.b16 %v694
        %v885 = vunpack.c.h.b16 %v694
        %v886 = vunpack.c.l.b16 %v695
        %v887 = vunpack.c.h.b16 %v695
        %v888 = vunpack.c.l.b16 %v696
        %v889 = vunpack.c.h.b16 %v696
        %v890 = vunpack.c.l.b16 %v697
        %v891 = vunpack.c.h.b16 %v697
        %v892 = vunpack.c.l.b16 %v698
        %v893 = vunpack.c.h.b16 %v698
        %v894 = vunpack.c.l.b16 %v699
        %v895 = vunpack.c.h.b16 %v699
        %v896 = vunpack.c.l.b16 %v700
        %v897 = vunpack.c.h.b16 %v700
        %v898 = vunpack.c.l.b16 %v701
        %v899 = vunpack.c.h.b16 %v701
        %v900 = vunpack.c.l.b16 %v702
        %v901 = vunpack.c.h.b16 %v702
        %v902 = vunpack.c.l.b16 %v703
        %v903 = vunpack.c.h.b16 %v703
        %v904 = vunpack.c.l.b16 %v704
        %v905 = vunpack.c.h.b16 %v704
        %v906 = vunpack.c.l.b16 %v705
        %v907 = vunpack.c.h.b16 %v705
        %v908 = vunpack.c.l.b16 %v706
        %v909 = vunpack.c.h.b16 %v706
        %v910 = vunpack.c.l.b16 %v707
        %v911 = vunpack.c.h.b16 %v707
        %v912 = vunpack.c.l.b16 %v708
        %v913 = vunpack.c.h.b16 %v708
        %v914 = vunpack.c.l.b16 %v709
        %v915 = vunpack.c.h.b16 %v709
        %v916 = vunpack.c.l.b16 %v710
        %v917 = vunpack.c.h.b16 %v710
        %v918 = vunpack.c.l.b16 %v711
        %v919 = vunpack.c.h.b16 %v711
        %v920 = vunpack.c.l.b16 %v712
        %v921 = vunpack.c.h.b16 %v712
        %v922 = vunpack.c.l.b16 %v713
        %v923 = vunpack.c.h.b16 %v713
        %v924 = vunpack.c.l.b16 %v714
        %v925 = vunpack.c.h.b16 %v714
        %v926 = vunpack.c.l.b16 %v715
        %v927 = vunpack.c.h.b16 %v715
        %v928 = vunpack.c.l.b16 %v716
        %v929 = vunpack.c.h.b16 %v716
        %v930 = vunpack.c.l.b16 %v717
        %v931 = vunpack.c.h.b16 %v717
        %v932 = vunpack.c.l.b16 %v718
        %v933 = vunpack.c.h.b16 %v718
        %v934 = vunpack.c.l.b16 %v719
        %v935 = vunpack.c.h.b16 %v719
        %v936 = vunpack.c.l.b16 %v720
        %v937 = vunpack.c.h.b16 %v720
        %v938 = vunpack.c.l.b16 %v721
        %v939 = vunpack.c.h.b16 %v721
        %v940 = vunpack.c.l.b16 %v722
        %v941 = vunpack.c.h.b16 %v722
        %v942 = vunpack.c.l.b16 %v723
        %v943 = vunpack.c.h.b16 %v723
        %v944 = vunpack.c.l.b16 %v724
        %v945 = vunpack.c.h.b16 %v724
        %v946 = vunpack.c.l.b16 %v725
        %v947 = vunpack.c.h.b16 %v725
        %v948 = vunpack.c.l.b16 %v726
        %v949 = vunpack.c.h.b16 %v726
        %v950 = vunpack.c.l.b16 %v727
        %v951 = vunpack.c.h.b16 %v727
        %v952 = vpack.c.b16 %v828, %v824
        %v953 = vpack.c.b16 %v829, %v825
        %v954 = vpack.c.b16 %v830, %v826
        %v955 = vpack.c.b16 %v831, %v827
        %v956 = vpack.c.b16 %v836, %v832
        %v957 = vpack.c.b16 %v837, %v833
        %v958 = vpack.c.b16 %v838, %v834
        %v959 = vpack.c.b16 %v839, %v835
        %v960 = vpack.c.b16 %v844, %v840
        %v961 = vpack.c.b16 %v845, %v841
        %v962 = vpack.c.b16 %v846, %v842
        %v963 = vpack.c.b16 %v847, %v843
        %v964 = vpack.c.b16 %v852, %v848
        %v965 = vpack.c.b16 %v853, %v849
        %v966 = vpack.c.b16 %v854, %v850
        %v967 = vpack.c.b16 %v855, %v851
        %v968 = vpack.c.b16 %v860, %v856
        %v969 = vpack.c.b16 %v861, %v857
        %v970 = vpack.c.b16 %v862, %v858
        %v971 = vpack.c.b16 %v863, %v859
        %v972 = vpack.c.b16 %v868, %v864
        %v973 = vpack.c.b16 %v869, %v865
        %v974 = vpack.c.b16 %v870, %v866
        %v975 = vpack.c.b16 %v871, %v867
        %v976 = vpack.c.b16 %v876, %v872
        %v977 = vpack.c.b16 %v877, %v873
        %v978 = vpack.c.b16 %v878, %v874
        %v979 = vpack.c.b16 %v879, %v875
        %v980 = vpack.c.b16 %v884, %v880
        %v981 = vpack.c.b16 %v885, %v881
        %v982 = vpack.c.b16 %v886, %v882
        %v983 = vpack.c.b16 %v887, %v883
        %v984 = vpack.c.b16 %v892, %v888
        %v985 = vpack.c.b16 %v893, %v889
        %v986 = vpack.c.b16 %v894, %v890
        %v987 = vpack.c.b16 %v895, %v891
        %v988 = vpack.c.b16 %v900, %v896
        %v989 = vpack.c.b16 %v901, %v897
        %v990 = vpack.c.b16 %v902, %v898
        %v991 = vpack.c.b16 %v903, %v899
        %v992 = vpack.c.b16 %v908, %v904
        %v993 = vpack.c.b16 %v909, %v905
        %v994 = vpack.c.b16 %v910, %v906
        %v995 = vpack.c.b16 %v911, %v907
        %v996 = vpack.c.b16 %v916, %v912
        %v997 = vpack.c.b16 %v917, %v913
        %v998 = vpack.c.b16 %v918, %v914
        %v999 = vpack.c.b16 %v919, %v915
        %v1000 = vpack.c.b16 %v924, %v920
        %v1001 = vpack.c.b16 %v925, %v921
        %v1002 = vpack.c.b16 %v926, %v922
        %v1003 = vpack.c.b16 %v927, %v923
        %v1004 = vpack.c.b16 %v932, %v928
        %v1005 = vpack.c.b16 %v933, %v929
        %v1006 = vpack.c.b16 %v934, %v930
        %v1007 = vpack.c.b16 %v935, %v931
        %v1008 = vpack.c.b16 %v940, %v936
        %v1009 = vpack.c.b16 %v941, %v937
        %v1010 = vpack.c.b16 %v942, %v938
        %v1011 = vpack.c.b16 %v943, %v939
        %v1012 = vpack.c.b16 %v948, %v944
        %v1013 = vpack.c.b16 %v949, %v945
        %v1014 = vpack.c.b16 %v950, %v946
        %v1015 = vpack.c.b16 %v951, %v947
        %1080 = vmatprep.subr.bf16.mxu0 0
        %1081 = vmatpush1.bf16.msra.mxu0 %v728
        %1082 = vmatprep.subr.bf16.mxu0 0
        %1083 = vmatpush1.bf16.msra.mxu0 %v729
        %1084 = vmatprep.subr.bf16.mxu0 0
        %1085 = vmatpush1.bf16.msra.mxu0 %v730
        %1086 = vmatprep.subr.bf16.mxu0 0
        %1087 = vmatpush1.bf16.msra.mxu0 %v731
        %1088 = vmatprep.subr.bf16.mxu0 0
        %1089 = vmatpush1.bf16.msra.mxu0 %v732
        %1090 = vmatprep.subr.bf16.mxu0 0
        %1091 = vmatpush1.bf16.msra.mxu0 %v733
        %1092 = vmatprep.subr.bf16.mxu0 0
        %1093 = vmatpush1.bf16.msra.mxu0 %v734
        %1094 = vmatprep.subr.bf16.mxu0 0
        %1095 = vmatpush1.bf16.msra.mxu0 %v735
        %1096 = vmatprep.subr.bf16.mxu0 0
        %1097 = vmatpush1.bf16.msra.mxu0 %v736
        %1098 = vmatprep.subr.bf16.mxu0 0
        %1099 = vmatpush1.bf16.msra.mxu0 %v737
        %1100 = vmatprep.subr.bf16.mxu0 0
        %1101 = vmatpush1.bf16.msra.mxu0 %v738
        %1102 = vmatprep.subr.bf16.mxu0 0
        %1103 = vmatpush1.bf16.msra.mxu0 %v739
        %1104 = vmatprep.subr.bf16.mxu0 0
        %1105 = vmatpush1.bf16.msra.mxu0 %v740
        %1106 = vmatprep.subr.bf16.mxu0 0
        %1107 = vmatpush1.bf16.msra.mxu0 %v741
        %1108 = vmatprep.subr.bf16.mxu0 0
        %1109 = vmatpush1.bf16.msra.mxu0 %v742
        %1110 = vmatprep.subr.bf16.mxu0 0
        %1111 = vmatpush1.bf16.msra.mxu0 %v743
        %1112 = vmatprep.mubr.bf16.mxu0 %v953
        %1113 = vmatmul.mubr.bf16.gmra.mrb[0].mxu0 %v952
        %v1114 = vpop.f32.mrb[0].mxu0
        %v1115 = vadd.f32 0.0, %v1114
        %v1116 = vpop.f32.mrb[0].mxu0
        %v1117 = vpop.f32.mrb[0].mxu0
        %v1118 = vadd.f32 0.0, %v1117
        %v1119 = vpop.f32.mrb[0].mxu0
        %1120 = vmatprep.mubr.bf16.mxu0 %v957
        %1121 = vmatmul.mubr.bf16.gmra.mrb[0].mxu0 %v956
        %v1122 = vpop.f32.mrb[0].mxu0
        %v1123 = vadd.f32 0.0, %v1122
        %v1124 = vpop.f32.mrb[0].mxu0
        %v1125 = vpop.f32.mrb[0].mxu0
        %v1126 = vadd.f32 0.0, %v1125
        %v1127 = vpop.f32.mrb[0].mxu0
        %1128 = vmatprep.mubr.bf16.mxu0 %v961
        %1129 = vmatmul.mubr.bf16.gmra.mrb[0].mxu0 %v960
        %v1130 = vpop.f32.mrb[0].mxu0
        %v1131 = vadd.f32 0.0, %v1130
        %v1132 = vpop.f32.mrb[0].mxu0
        %v1133 = vpop.f32.mrb[0].mxu0
        %v1134 = vadd.f32 0.0, %v1133
        %v1135 = vpop.f32.mrb[0].mxu0
        %1136 = vmatprep.mubr.bf16.mxu0 %v965
        %1137 = vmatmul.mubr.bf16.gmra.mrb[0].mxu0 %v964
        %v1138 = vpop.f32.mrb[0].mxu0
        %v1139 = vadd.f32 0.0, %v1138
        %v1140 = vpop.f32.mrb[0].mxu0
        %v1141 = vpop.f32.mrb[0].mxu0
        %v1142 = vadd.f32 0.0, %v1141
        %v1143 = vpop.f32.mrb[0].mxu0
        %1144 = vmatprep.mubr.bf16.mxu0 %v969
        %1145 = vmatmul.mubr.bf16.gmra.mrb[0].mxu0 %v968
        %v1146 = vpop.f32.mrb[0].mxu0
        %v1147 = vadd.f32 0.0, %v1146
        %v1148 = vpop.f32.mrb[0].mxu0
        %v1149 = vpop.f32.mrb[0].mxu0
        %v1150 = vadd.f32 0.0, %v1149
        %v1151 = vpop.f32.mrb[0].mxu0
        %1152 = vmatprep.mubr.bf16.mxu0 %v973
        %1153 = vmatmul.mubr.bf16.gmra.mrb[0].mxu0 %v972
        %v1154 = vpop.f32.mrb[0].mxu0
        %v1155 = vadd.f32 0.0, %v1154
        %v1156 = vpop.f32.mrb[0].mxu0
        %v1157 = vpop.f32.mrb[0].mxu0
        %v1158 = vadd.f32 0.0, %v1157
        %v1159 = vpop.f32.mrb[0].mxu0
        %1160 = vmatprep.mubr.bf16.mxu0 %v977
        %1161 = vmatmul.mubr.bf16.gmra.mrb[0].mxu0 %v976
        %v1162 = vpop.f32.mrb[0].mxu0
        %v1163 = vadd.f32 0.0, %v1162
        %v1164 = vpop.f32.mrb[0].mxu0
        %v1165 = vpop.f32.mrb[0].mxu0
        %v1166 = vadd.f32 0.0, %v1165
        %v1167 = vpop.f32.mrb[0].mxu0
        %1168 = vmatprep.mubr.bf16.mxu0 %v981
        %1169 = vmatmul.mubr.bf16.gmra.mrb[0].mxu0 %v980
        %v1170 = vpop.f32.mrb[0].mxu0
        %v1171 = vadd.f32 0.0, %v1170
        %v1172 = vpop.f32.mrb[0].mxu0
        %v1173 = vpop.f32.mrb[0].mxu0
        %v1174 = vadd.f32 0.0, %v1173
        %v1175 = vpop.f32.mrb[0].mxu0
        %1176 = vmatprep.mubr.bf16.mxu0 %v985
        %1177 = vmatmul.mubr.bf16.gmra.mrb[0].mxu0 %v984
        %v1178 = vpop.f32.mrb[0].mxu0
        %v1179 = vadd.f32 0.0, %v1178
        %v1180 = vpop.f32.mrb[0].mxu0
        %v1181 = vpop.f32.mrb[0].mxu0
        %v1182 = vadd.f32 0.0, %v1181
        %v1183 = vpop.f32.mrb[0].mxu0
        %1184 = vmatprep.mubr.bf16.mxu0 %v989
        %1185 = vmatmul.mubr.bf16.gmra.mrb[0].mxu0 %v988
        %v1186 = vpop.f32.mrb[0].mxu0
        %v1187 = vadd.f32 0.0, %v1186
        %v1188 = vpop.f32.mrb[0].mxu0
        %v1189 = vpop.f32.mrb[0].mxu0
        %v1190 = vadd.f32 0.0, %v1189
        %v1191 = vpop.f32.mrb[0].mxu0
        %1192 = vmatprep.mubr.bf16.mxu0 %v993
        %1193 = vmatmul.mubr.bf16.gmra.mrb[0].mxu0 %v992
        %v1194 = vpop.f32.mrb[0].mxu0
        %v1195 = vadd.f32 0.0, %v1194
        %v1196 = vpop.f32.mrb[0].mxu0
        %v1197 = vpop.f32.mrb[0].mxu0
        %v1198 = vadd.f32 0.0, %v1197
        %v1199 = vpop.f32.mrb[0].mxu0
        %1200 = vmatprep.mubr.bf16.mxu0 %v997
        %1201 = vmatmul.mubr.bf16.gmra.mrb[0].mxu0 %v996
        %v1202 = vpop.f32.mrb[0].mxu0
        %v1203 = vadd.f32 0.0, %v1202
        %v1204 = vpop.f32.mrb[0].mxu0
        %v1205 = vpop.f32.mrb[0].mxu0
        %v1206 = vadd.f32 0.0, %v1205
        %v1207 = vpop.f32.mrb[0].mxu0
        %1208 = vmatprep.mubr.bf16.mxu0 %v1001
        %1209 = vmatmul.mubr.bf16.gmra.mrb[0].mxu0 %v1000
        %v1210 = vpop.f32.mrb[0].mxu0
        %v1211 = vadd.f32 0.0, %v1210
        %v1212 = vpop.f32.mrb[0].mxu0
        %v1213 = vpop.f32.mrb[0].mxu0
        %v1214 = vadd.f32 0.0, %v1213
        %v1215 = vpop.f32.mrb[0].mxu0
        %1216 = vmatprep.mubr.bf16.mxu0 %v1005
        %1217 = vmatmul.mubr.bf16.gmra.mrb[0].mxu0 %v1004
        %v1218 = vpop.f32.mrb[0].mxu0
        %v1219 = vadd.f32 0.0, %v1218
        %v1220 = vpop.f32.mrb[0].mxu0
        %v1221 = vpop.f32.mrb[0].mxu0
        %v1222 = vadd.f32 0.0, %v1221
        %v1223 = vpop.f32.mrb[0].mxu0
        %1224 = vmatprep.mubr.bf16.mxu0 %v1009
        %1225 = vmatmul.mubr.bf16.gmra.mrb[0].mxu0 %v1008
        %v1226 = vpop.f32.mrb[0].mxu0
        %v1227 = vadd.f32 0.0, %v1226
        %v1228 = vpop.f32.mrb[0].mxu0
        %v1229 = vpop.f32.mrb[0].mxu0
        %v1230 = vadd.f32 0.0, %v1229
        %v1231 = vpop.f32.mrb[0].mxu0
        %1232 = vmatprep.mubr.bf16.mxu0 %v1013
        %1233 = vmatmul.mubr.bf16.gmra.mrb[0].mxu0 %v1012
        %v1234 = vpop.f32.mrb[0].mxu0
        %v1235 = vadd.f32 0.0, %v1234
        %v1236 = vpop.f32.mrb[0].mxu0
        %v1237 = vpop.f32.mrb[0].mxu0
        %v1238 = vadd.f32 0.0, %v1237
        %v1239 = vpop.f32.mrb[0].mxu0
        %1240 = vdwg.mxu0
        %1241 = vmatprep.subr.bf16.mxu0 0
        %1242 = vmatpush1.bf16.msra.mxu0 %v744
        %1243 = vmatprep.subr.bf16.mxu0 0
        %1244 = vmatpush1.bf16.msra.mxu0 %v745
        %1245 = vmatprep.subr.bf16.mxu0 0
        %1246 = vmatpush1.bf16.msra.mxu0 %v746
        %1247 = vmatprep.subr.bf16.mxu0 0
        %1248 = vmatpush1.bf16.msra.mxu0 %v747
        %1249 = vmatprep.subr.bf16.mxu0 0
        %1250 = vmatpush1.bf16.msra.mxu0 %v748
        %1251 = vmatprep.subr.bf16.mxu0 0
        %1252 = vmatpush1.bf16.msra.mxu0 %v749
        %1253 = vmatprep.subr.bf16.mxu0 0
        %1254 = vmatpush1.bf16.msra.mxu0 %v750
        %1255 = vmatprep.subr.bf16.mxu0 0
        %1256 = vmatpush1.bf16.msra.mxu0 %v751
        %1257 = vmatprep.subr.bf16.mxu0 0
        %1258 = vmatpush1.bf16.msra.mxu0 %v752
        %1259 = vmatprep.subr.bf16.mxu0 0
        %1260 = vmatpush1.bf16.msra.mxu0 %v753
        %1261 = vmatprep.subr.bf16.mxu0 0
        %1262 = vmatpush1.bf16.msra.mxu0 %v754
        %1263 = vmatprep.subr.bf16.mxu0 0
        %1264 = vmatpush1.bf16.msra.mxu0 %v755
        %1265 = vmatprep.subr.bf16.mxu0 0
        %1266 = vmatpush1.bf16.msra.mxu0 %v756
        %1267 = vmatprep.subr.bf16.mxu0 0
        %1268 = vmatpush1.bf16.msra.mxu0 %v757
        %1269 = vmatprep.subr.bf16.mxu0 0
        %1270 = vmatpush1.bf16.msra.mxu0 %v758
        %1271 = vmatprep.subr.bf16.mxu0 0
        %1272 = vmatpush1.bf16.msra.mxu0 %v759
        %1273 = vmatprep.mubr.bf16.mxu0 %v955
        %1274 = vmatmul.mubr.bf16.gmra.mrb[0].mxu0 %v954
        %v1275 = vpop.f32.mrb[0].mxu0
        %v1276 = vadd.f32 %v1115, %v1275
        %v1277 = vpop.f32.mrb[0].mxu0
        %v1278 = vpop.f32.mrb[0].mxu0
        %v1279 = vadd.f32 %v1118, %v1278
        %v1280 = vpop.f32.mrb[0].mxu0
        %1281 = vmatprep.mubr.bf16.mxu0 %v959
        %1282 = vmatmul.mubr.bf16.gmra.mrb[0].mxu0 %v958
        %v1283 = vpop.f32.mrb[0].mxu0
        %v1284 = vadd.f32 %v1123, %v1283
        %v1285 = vpop.f32.mrb[0].mxu0
        %v1286 = vpop.f32.mrb[0].mxu0
        %v1287 = vadd.f32 %v1126, %v1286
        %v1288 = vpop.f32.mrb[0].mxu0
        %1289 = vmatprep.mubr.bf16.mxu0 %v963
        %1290 = vmatmul.mubr.bf16.gmra.mrb[0].mxu0 %v962
        %v1291 = vpop.f32.mrb[0].mxu0
        %v1292 = vadd.f32 %v1131, %v1291
        %v1293 = vpop.f32.mrb[0].mxu0
        %v1294 = vpop.f32.mrb[0].mxu0
        %v1295 = vadd.f32 %v1134, %v1294
        %v1296 = vpop.f32.mrb[0].mxu0
        %1297 = vmatprep.mubr.bf16.mxu0 %v967
        %1298 = vmatmul.mubr.bf16.gmra.mrb[0].mxu0 %v966
        %v1299 = vpop.f32.mrb[0].mxu0
        %v1300 = vadd.f32 %v1139, %v1299
        %v1301 = vpop.f32.mrb[0].mxu0
        %v1302 = vpop.f32.mrb[0].mxu0
        %v1303 = vadd.f32 %v1142, %v1302
        %v1304 = vpop.f32.mrb[0].mxu0
        %1305 = vmatprep.mubr.bf16.mxu0 %v971
        %1306 = vmatmul.mubr.bf16.gmra.mrb[0].mxu0 %v970
        %v1307 = vpop.f32.mrb[0].mxu0
        %v1308 = vadd.f32 %v1147, %v1307
        %v1309 = vpop.f32.mrb[0].mxu0
        %v1310 = vpop.f32.mrb[0].mxu0
        %v1311 = vadd.f32 %v1150, %v1310
        %v1312 = vpop.f32.mrb[0].mxu0
        %1313 = vmatprep.mubr.bf16.mxu0 %v975
        %1314 = vmatmul.mubr.bf16.gmra.mrb[0].mxu0 %v974
        %v1315 = vpop.f32.mrb[0].mxu0
        %v1316 = vadd.f32 %v1155, %v1315
        %v1317 = vpop.f32.mrb[0].mxu0
        %v1318 = vpop.f32.mrb[0].mxu0
        %v1319 = vadd.f32 %v1158, %v1318
        %v1320 = vpop.f32.mrb[0].mxu0
        %1321 = vmatprep.mubr.bf16.mxu0 %v979
        %1322 = vmatmul.mubr.bf16.gmra.mrb[0].mxu0 %v978
        %v1323 = vpop.f32.mrb[0].mxu0
        %v1324 = vadd.f32 %v1163, %v1323
        %v1325 = vpop.f32.mrb[0].mxu0
        %v1326 = vpop.f32.mrb[0].mxu0
        %v1327 = vadd.f32 %v1166, %v1326
        %v1328 = vpop.f32.mrb[0].mxu0
        %1329 = vmatprep.mubr.bf16.mxu0 %v983
        %1330 = vmatmul.mubr.bf16.gmra.mrb[0].mxu0 %v982
        %v1331 = vpop.f32.mrb[0].mxu0
        %v1332 = vadd.f32 %v1171, %v1331
        %v1333 = vpop.f32.mrb[0].mxu0
        %v1334 = vpop.f32.mrb[0].mxu0
        %v1335 = vadd.f32 %v1174, %v1334
        %v1336 = vpop.f32.mrb[0].mxu0
        %1337 = vmatprep.mubr.bf16.mxu0 %v987
        %1338 = vmatmul.mubr.bf16.gmra.mrb[0].mxu0 %v986
        %v1339 = vpop.f32.mrb[0].mxu0
        %v1340 = vadd.f32 %v1179, %v1339
        %v1341 = vpop.f32.mrb[0].mxu0
        %v1342 = vpop.f32.mrb[0].mxu0
        %v1343 = vadd.f32 %v1182, %v1342
        %v1344 = vpop.f32.mrb[0].mxu0
        %1345 = vmatprep.mubr.bf16.mxu0 %v991
        %1346 = vmatmul.mubr.bf16.gmra.mrb[0].mxu0 %v990
        %v1347 = vpop.f32.mrb[0].mxu0
        %v1348 = vadd.f32 %v1187, %v1347
        %v1349 = vpop.f32.mrb[0].mxu0
        %v1350 = vpop.f32.mrb[0].mxu0
        %v1351 = vadd.f32 %v1190, %v1350
        %v1352 = vpop.f32.mrb[0].mxu0
        %1353 = vmatprep.mubr.bf16.mxu0 %v995
        %1354 = vmatmul.mubr.bf16.gmra.mrb[0].mxu0 %v994
        %v1355 = vpop.f32.mrb[0].mxu0
        %v1356 = vadd.f32 %v1195, %v1355
        %v1357 = vpop.f32.mrb[0].mxu0
        %v1358 = vpop.f32.mrb[0].mxu0
        %v1359 = vadd.f32 %v1198, %v1358
        %v1360 = vpop.f32.mrb[0].mxu0
        %1361 = vmatprep.mubr.bf16.mxu0 %v999
        %1362 = vmatmul.mubr.bf16.gmra.mrb[0].mxu0 %v998
        %v1363 = vpop.f32.mrb[0].mxu0
        %v1364 = vadd.f32 %v1203, %v1363
        %v1365 = vpop.f32.mrb[0].mxu0
        %v1366 = vpop.f32.mrb[0].mxu0
        %v1367 = vadd.f32 %v1206, %v1366
        %v1368 = vpop.f32.mrb[0].mxu0
        %1369 = vmatprep.mubr.bf16.mxu0 %v1003
        %1370 = vmatmul.mubr.bf16.gmra.mrb[0].mxu0 %v1002
        %v1371 = vpop.f32.mrb[0].mxu0
        %v1372 = vadd.f32 %v1211, %v1371
        %v1373 = vpop.f32.mrb[0].mxu0
        %v1374 = vpop.f32.mrb[0].mxu0
        %v1375 = vadd.f32 %v1214, %v1374
        %v1376 = vpop.f32.mrb[0].mxu0
        %1377 = vmatprep.mubr.bf16.mxu0 %v1007
        %1378 = vmatmul.mubr.bf16.gmra.mrb[0].mxu0 %v1006
        %v1379 = vpop.f32.mrb[0].mxu0
        %v1380 = vadd.f32 %v1219, %v1379
        %v1381 = vpop.f32.mrb[0].mxu0
        %v1382 = vpop.f32.mrb[0].mxu0
        %v1383 = vadd.f32 %v1222, %v1382
        %v1384 = vpop.f32.mrb[0].mxu0
        %1385 = vmatprep.mubr.bf16.mxu0 %v1011
        %1386 = vmatmul.mubr.bf16.gmra.mrb[0].mxu0 %v1010
        %v1387 = vpop.f32.mrb[0].mxu0
        %v1388 = vadd.f32 %v1227, %v1387
        %v1389 = vpop.f32.mrb[0].mxu0
        %v1390 = vpop.f32.mrb[0].mxu0
        %v1391 = vadd.f32 %v1230, %v1390
        %v1392 = vpop.f32.mrb[0].mxu0
        %1393 = vmatprep.mubr.bf16.mxu0 %v1015
        %1394 = vmatmul.mubr.bf16.gmra.mrb[0].mxu0 %v1014
        %v1395 = vpop.f32.mrb[0].mxu0
        %v1396 = vadd.f32 %v1235, %v1395
        %v1397 = vpop.f32.mrb[0].mxu0
        %v1398 = vpop.f32.mrb[0].mxu0
        %v1399 = vadd.f32 %v1238, %v1398
        %v1400 = vpop.f32.mrb[0].mxu0
        %1401 = vdwg.mxu0
        %v1402 = vld [vmem:[%s4] sm:$0xff]
        %v1403 = vld [vmem:[%s4 + $0x8] sm:$0xff]
        %v1404 = vld [vmem:[%s4 + $0x10] sm:$0xff]
        %v1405 = vld [vmem:[%s4 + $0x18] sm:$0xff]
        %v1406 = vld [vmem:[%s4 + $0x20] sm:$0xff]
        %v1407 = vld [vmem:[%s4 + $0x28] sm:$0xff]
        %v1408 = vld [vmem:[%s4 + $0x30] sm:$0xff]
        %v1409 = vld [vmem:[%s4 + $0x38] sm:$0xff]
        %v1410 = vld [vmem:[%s4 + $0x40] sm:$0xff]
        %v1411 = vld [vmem:[%s4 + $0x48] sm:$0xff]
        %v1412 = vld [vmem:[%s4 + $0x50] sm:$0xff]
        %v1413 = vld [vmem:[%s4 + $0x58] sm:$0xff]
        %v1414 = vld [vmem:[%s4 + $0x60] sm:$0xff]
        %v1415 = vld [vmem:[%s4 + $0x68] sm:$0xff]
        %v1416 = vld [vmem:[%s4 + $0x70] sm:$0xff]
        %v1417 = vld [vmem:[%s4 + $0x78] sm:$0xff]
        %s1418 = scalar_lea.vmem [#allocation2], %s658
        %v1419 = vld [vmem:[%s1418] sm:$0xff]
        %v1420 = vld [vmem:[%s1418 + $0x8] sm:$0xff]
        %v1421 = vld [vmem:[%s1418 + $0x10] sm:$0xff]
        %v1422 = vld [vmem:[%s1418 + $0x18] sm:$0xff]
        %v1423 = vld [vmem:[%s1418 + $0x20] sm:$0xff]
        %v1424 = vld [vmem:[%s1418 + $0x28] sm:$0xff]
        %v1425 = vld [vmem:[%s1418 + $0x30] sm:$0xff]
        %v1426 = vld [vmem:[%s1418 + $0x38] sm:$0xff]
        %v1427 = vld [vmem:[%s1418 + $0x40] sm:$0xff]
        %v1428 = vld [vmem:[%s1418 + $0x48] sm:$0xff]
        %v1429 = vld [vmem:[%s1418 + $0x50] sm:$0xff]
        %v1430 = vld [vmem:[%s1418 + $0x58] sm:$0xff]
        %v1431 = vld [vmem:[%s1418 + $0x60] sm:$0xff]
        %v1432 = vld [vmem:[%s1418 + $0x68] sm:$0xff]
        %v1433 = vld [vmem:[%s1418 + $0x70] sm:$0xff]
        %v1434 = vld [vmem:[%s1418 + $0x78] sm:$0xff]
        %v1435 = vld [vmem:[%s1418 + $0x80] sm:$0xff]
        %v1436 = vld [vmem:[%s1418 + $0x88] sm:$0xff]
        %v1437 = vld [vmem:[%s1418 + $0x90] sm:$0xff]
        %v1438 = vld [vmem:[%s1418 + $0x98] sm:$0xff]
        %v1439 = vld [vmem:[%s1418 + $0xa0] sm:$0xff]
        %v1440 = vld [vmem:[%s1418 + $0xa8] sm:$0xff]
        %v1441 = vld [vmem:[%s1418 + $0xb0] sm:$0xff]
        %v1442 = vld [vmem:[%s1418 + $0xb8] sm:$0xff]
        %v1443 = vld [vmem:[%s1418 + $0xc0] sm:$0xff]
        %v1444 = vld [vmem:[%s1418 + $0xc8] sm:$0xff]
        %v1445 = vld [vmem:[%s1418 + $0xd0] sm:$0xff]
        %v1446 = vld [vmem:[%s1418 + $0xd8] sm:$0xff]
        %v1447 = vld [vmem:[%s1418 + $0xe0] sm:$0xff]
        %v1448 = vld [vmem:[%s1418 + $0xe8] sm:$0xff]
        %v1449 = vld [vmem:[%s1418 + $0xf0] sm:$0xff]
        %v1450 = vld [vmem:[%s1418 + $0xf8] sm:$0xff]
        %1451 = vmatprep.subr.mxu0 0.0
        %1452 = vmatpush1.msra.mxu0 %v1402
        %1453 = vmatprep.subr.mxu0 0.0
        %1454 = vmatpush1.msra.mxu0 %v1403
        %1455 = vmatprep.subr.mxu0 0.0
        %1456 = vmatpush1.msra.mxu0 %v1404
        %1457 = vmatprep.subr.mxu0 0.0
        %1458 = vmatpush1.msra.mxu0 %v1405
        %1459 = vmatprep.subr.mxu0 0.0
        %1460 = vmatpush1.msra.mxu0 %v1406
        %1461 = vmatprep.subr.mxu0 0.0
        %1462 = vmatpush1.msra.mxu0 %v1407
        %1463 = vmatprep.subr.mxu0 0.0
        %1464 = vmatpush1.msra.mxu0 %v1408
        %1465 = vmatprep.subr.mxu0 0.0
        %1466 = vmatpush1.msra.mxu0 %v1409
        %1467 = vmatprep.subr.mxu0 0.0
        %1468 = vmatpush1.msra.mxu0 %v1410
        %1469 = vmatprep.subr.mxu0 0.0
        %1470 = vmatpush1.msra.mxu0 %v1411
        %1471 = vmatprep.subr.mxu0 0.0
        %1472 = vmatpush1.msra.mxu0 %v1412
        %1473 = vmatprep.subr.mxu0 0.0
        %1474 = vmatpush1.msra.mxu0 %v1413
        %1475 = vmatprep.subr.mxu0 0.0
        %1476 = vmatpush1.msra.mxu0 %v1414
        %1477 = vmatprep.subr.mxu0 0.0
        %1478 = vmatpush1.msra.mxu0 %v1415
        %1479 = vmatprep.subr.mxu0 0.0
        %1480 = vmatpush1.msra.mxu0 %v1416
        %1481 = vmatprep.subr.mxu0 0.0
        %1482 = vmatpush1.msra.mxu0 %v1417
        %1483 = vmatprep.subr.mxu0 0.0
        %1484 = vmatpush1.msra.mxu0 0.0
        %1485 = vmatprep.subr.mxu0 0.0
        %1486 = vmatpush1.msra.mxu0 0.0
        %1487 = vmatprep.subr.mxu0 0.0
        %1488 = vmatpush1.msra.mxu0 0.0
        %1489 = vmatprep.subr.mxu0 0.0
        %1490 = vmatpush1.msra.mxu0 0.0
        %1491 = vmatprep.subr.mxu0 0.0
        %1492 = vmatpush1.msra.mxu0 0.0
        %1493 = vmatprep.subr.mxu0 0.0
        %1494 = vmatpush1.msra.mxu0 0.0
        %1495 = vmatprep.subr.mxu0 0.0
        %1496 = vmatpush1.msra.mxu0 0.0
        %1497 = vmatprep.subr.mxu0 0.0
        %1498 = vmatpush1.msra.mxu0 0.0
        %1499 = vmatprep.subr.mxu0 0.0
        %1500 = vmatpush1.msra.mxu0 0.0
        %1501 = vmatprep.subr.mxu0 0.0
        %1502 = vmatpush1.msra.mxu0 0.0
        %1503 = vmatprep.subr.mxu0 0.0
        %1504 = vmatpush1.msra.mxu0 0.0
        %1505 = vmatprep.subr.mxu0 0.0
        %1506 = vmatpush1.msra.mxu0 0.0
        %1507 = vmatprep.subr.mxu0 0.0
        %1508 = vmatpush1.msra.mxu0 0.0
        %1509 = vmatprep.subr.mxu0 0.0
        %1510 = vmatpush1.msra.mxu0 0.0
        %1511 = vmatprep.subr.mxu0 0.0
        %1512 = vmatpush1.msra.mxu0 0.0
        %1513 = vmatprep.subr.mxu0 0.0
        %1514 = vmatpush1.msra.mxu0 0.0
        %1515 = vmatprep.mubr.f32.mxu0 0.0
        %1516 = vmatmul.mubr.f32.gmra.mrb[0].mxu0 %v1276
        %v1517 = vpop.f32.mrb[0].mxu0
        %v1518 = vadd.f32 %v1419, %v1517
        %v1519 = vpop.f32.mrb[0].mxu0
        %1520 = vmatprep.mubr.f32.mxu0 0.0
        %1521 = vmatmul.mubr.f32.gmra.mrb[0].mxu0 %v1279
        %v1522 = vpop.f32.mrb[0].mxu0
        %v1523 = vadd.f32 %v1420, %v1522
        %v1524 = vpop.f32.mrb[0].mxu0
        %1525 = vmatprep.mubr.f32.mxu0 0.0
        %1526 = vmatmul.mubr.f32.gmra.mrb[0].mxu0 %v1284
        %v1527 = vpop.f32.mrb[0].mxu0
        %v1528 = vadd.f32 %v1421, %v1527
        %v1529 = vpop.f32.mrb[0].mxu0
        %1530 = vmatprep.mubr.f32.mxu0 0.0
        %1531 = vmatmul.mubr.f32.gmra.mrb[0].mxu0 %v1287
        %v1532 = vpop.f32.mrb[0].mxu0
        %v1533 = vadd.f32 %v1422, %v1532
        %v1534 = vpop.f32.mrb[0].mxu0
        %1535 = vmatprep.mubr.f32.mxu0 0.0
        %1536 = vmatmul.mubr.f32.gmra.mrb[0].mxu0 %v1292
        %v1537 = vpop.f32.mrb[0].mxu0
        %v1538 = vadd.f32 %v1423, %v1537
        %v1539 = vpop.f32.mrb[0].mxu0
        %1540 = vmatprep.mubr.f32.mxu0 0.0
        %1541 = vmatmul.mubr.f32.gmra.mrb[0].mxu0 %v1295
        %v1542 = vpop.f32.mrb[0].mxu0
        %v1543 = vadd.f32 %v1424, %v1542
        %v1544 = vpop.f32.mrb[0].mxu0
        %1545 = vmatprep.mubr.f32.mxu0 0.0
        %1546 = vmatmul.mubr.f32.gmra.mrb[0].mxu0 %v1300
        %v1547 = vpop.f32.mrb[0].mxu0
        %v1548 = vadd.f32 %v1425, %v1547
        %v1549 = vpop.f32.mrb[0].mxu0
        %1550 = vmatprep.mubr.f32.mxu0 0.0
        %1551 = vmatmul.mubr.f32.gmra.mrb[0].mxu0 %v1303
        %v1552 = vpop.f32.mrb[0].mxu0
        %v1553 = vadd.f32 %v1426, %v1552
        %v1554 = vpop.f32.mrb[0].mxu0
        %1555 = vmatprep.mubr.f32.mxu0 0.0
        %1556 = vmatmul.mubr.f32.gmra.mrb[0].mxu0 %v1308
        %v1557 = vpop.f32.mrb[0].mxu0
        %v1558 = vadd.f32 %v1427, %v1557
        %v1559 = vpop.f32.mrb[0].mxu0
        %1560 = vmatprep.mubr.f32.mxu0 0.0
        %1561 = vmatmul.mubr.f32.gmra.mrb[0].mxu0 %v1311
        %v1562 = vpop.f32.mrb[0].mxu0
        %v1563 = vadd.f32 %v1428, %v1562
        %v1564 = vpop.f32.mrb[0].mxu0
        %1565 = vmatprep.mubr.f32.mxu0 0.0
        %1566 = vmatmul.mubr.f32.gmra.mrb[0].mxu0 %v1316
        %v1567 = vpop.f32.mrb[0].mxu0
        %v1568 = vadd.f32 %v1429, %v1567
        %v1569 = vpop.f32.mrb[0].mxu0
        %1570 = vmatprep.mubr.f32.mxu0 0.0
        %1571 = vmatmul.mubr.f32.gmra.mrb[0].mxu0 %v1319
        %v1572 = vpop.f32.mrb[0].mxu0
        %v1573 = vadd.f32 %v1430, %v1572
        %v1574 = vpop.f32.mrb[0].mxu0
        %1575 = vmatprep.mubr.f32.mxu0 0.0
        %1576 = vmatmul.mubr.f32.gmra.mrb[0].mxu0 %v1324
        %v1577 = vpop.f32.mrb[0].mxu0
        %v1578 = vadd.f32 %v1431, %v1577
        %v1579 = vpop.f32.mrb[0].mxu0
        %1580 = vmatprep.mubr.f32.mxu0 0.0
        %1581 = vmatmul.mubr.f32.gmra.mrb[0].mxu0 %v1327
        %v1582 = vpop.f32.mrb[0].mxu0
        %v1583 = vadd.f32 %v1432, %v1582
        %v1584 = vpop.f32.mrb[0].mxu0
        %1585 = vmatprep.mubr.f32.mxu0 0.0
        %1586 = vmatmul.mubr.f32.gmra.mrb[0].mxu0 %v1332
        %v1587 = vpop.f32.mrb[0].mxu0
        %v1588 = vadd.f32 %v1433, %v1587
        %v1589 = vpop.f32.mrb[0].mxu0
        %1590 = vmatprep.mubr.f32.mxu0 0.0
        %1591 = vmatmul.mubr.f32.gmra.mrb[0].mxu0 %v1335
        %v1592 = vpop.f32.mrb[0].mxu0
        %v1593 = vadd.f32 %v1434, %v1592
        %v1594 = vpop.f32.mrb[0].mxu0
        %1595 = vmatprep.mubr.f32.mxu0 0.0
        %1596 = vmatmul.mubr.f32.gmra.mrb[0].mxu0 %v1340
        %v1597 = vpop.f32.mrb[0].mxu0
        %v1598 = vadd.f32 %v1435, %v1597
        %v1599 = vpop.f32.mrb[0].mxu0
        %1600 = vmatprep.mubr.f32.mxu0 0.0
        %1601 = vmatmul.mubr.f32.gmra.mrb[0].mxu0 %v1343
        %v1602 = vpop.f32.mrb[0].mxu0
        %v1603 = vadd.f32 %v1436, %v1602
        %v1604 = vpop.f32.mrb[0].mxu0
        %1605 = vmatprep.mubr.f32.mxu0 0.0
        %1606 = vmatmul.mubr.f32.gmra.mrb[0].mxu0 %v1348
        %v1607 = vpop.f32.mrb[0].mxu0
        %v1608 = vadd.f32 %v1437, %v1607
        %v1609 = vpop.f32.mrb[0].mxu0
        %1610 = vmatprep.mubr.f32.mxu0 0.0
        %1611 = vmatmul.mubr.f32.gmra.mrb[0].mxu0 %v1351
        %v1612 = vpop.f32.mrb[0].mxu0
        %v1613 = vadd.f32 %v1438, %v1612
        %v1614 = vpop.f32.mrb[0].mxu0
        %1615 = vmatprep.mubr.f32.mxu0 0.0
        %1616 = vmatmul.mubr.f32.gmra.mrb[0].mxu0 %v1356
        %v1617 = vpop.f32.mrb[0].mxu0
        %v1618 = vadd.f32 %v1439, %v1617
        %v1619 = vpop.f32.mrb[0].mxu0
        %1620 = vmatprep.mubr.f32.mxu0 0.0
        %1621 = vmatmul.mubr.f32.gmra.mrb[0].mxu0 %v1359
        %v1622 = vpop.f32.mrb[0].mxu0
        %v1623 = vadd.f32 %v1440, %v1622
        %v1624 = vpop.f32.mrb[0].mxu0
        %1625 = vmatprep.mubr.f32.mxu0 0.0
        %1626 = vmatmul.mubr.f32.gmra.mrb[0].mxu0 %v1364
        %v1627 = vpop.f32.mrb[0].mxu0
        %v1628 = vadd.f32 %v1441, %v1627
        %v1629 = vpop.f32.mrb[0].mxu0
        %1630 = vmatprep.mubr.f32.mxu0 0.0
        %1631 = vmatmul.mubr.f32.gmra.mrb[0].mxu0 %v1367
        %v1632 = vpop.f32.mrb[0].mxu0
        %v1633 = vadd.f32 %v1442, %v1632
        %v1634 = vpop.f32.mrb[0].mxu0
        %1635 = vmatprep.mubr.f32.mxu0 0.0
        %1636 = vmatmul.mubr.f32.gmra.mrb[0].mxu0 %v1372
        %v1637 = vpop.f32.mrb[0].mxu0
        %v1638 = vadd.f32 %v1443, %v1637
        %v1639 = vpop.f32.mrb[0].mxu0
        %1640 = vmatprep.mubr.f32.mxu0 0.0
        %1641 = vmatmul.mubr.f32.gmra.mrb[0].mxu0 %v1375
        %v1642 = vpop.f32.mrb[0].mxu0
        %v1643 = vadd.f32 %v1444, %v1642
        %v1644 = vpop.f32.mrb[0].mxu0
        %1645 = vmatprep.mubr.f32.mxu0 0.0
        %1646 = vmatmul.mubr.f32.gmra.mrb[0].mxu0 %v1380
        %v1647 = vpop.f32.mrb[0].mxu0
        %v1648 = vadd.f32 %v1445, %v1647
        %v1649 = vpop.f32.mrb[0].mxu0
        %1650 = vmatprep.mubr.f32.mxu0 0.0
        %1651 = vmatmul.mubr.f32.gmra.mrb[0].mxu0 %v1383
        %v1652 = vpop.f32.mrb[0].mxu0
        %v1653 = vadd.f32 %v1446, %v1652
        %v1654 = vpop.f32.mrb[0].mxu0
        %1655 = vmatprep.mubr.f32.mxu0 0.0
        %1656 = vmatmul.mubr.f32.gmra.mrb[0].mxu0 %v1388
        %v1657 = vpop.f32.mrb[0].mxu0
        %v1658 = vadd.f32 %v1447, %v1657
        %v1659 = vpop.f32.mrb[0].mxu0
        %1660 = vmatprep.mubr.f32.mxu0 0.0
        %1661 = vmatmul.mubr.f32.gmra.mrb[0].mxu0 %v1391
        %v1662 = vpop.f32.mrb[0].mxu0
        %v1663 = vadd.f32 %v1448, %v1662
        %v1664 = vpop.f32.mrb[0].mxu0
        %1665 = vmatprep.mubr.f32.mxu0 0.0
        %1666 = vmatmul.mubr.f32.gmra.mrb[0].mxu0 %v1396
        %v1667 = vpop.f32.mrb[0].mxu0
        %v1668 = vadd.f32 %v1449, %v1667
        %v1669 = vpop.f32.mrb[0].mxu0
        %1670 = vmatprep.mubr.f32.mxu0 0.0
        %1671 = vmatmul.mubr.f32.gmra.mrb[0].mxu0 %v1399
        %v1672 = vpop.f32.mrb[0].mxu0
        %v1673 = vadd.f32 %v1450, %v1672
        %v1674 = vpop.f32.mrb[0].mxu0
        %1675 = vdwg.mxu0
        %v1676 = vmax.f32 %v1518, 0.0
        %v1677 = vmax.f32 %v1523, 0.0
        %v1678 = vmax.f32 %v1528, 0.0
        %v1679 = vmax.f32 %v1533, 0.0
        %v1680 = vmax.f32 %v1538, 0.0
        %v1681 = vmax.f32 %v1543, 0.0
        %v1682 = vmax.f32 %v1548, 0.0
        %v1683 = vmax.f32 %v1553, 0.0
        %v1684 = vmax.f32 %v1558, 0.0
        %v1685 = vmax.f32 %v1563, 0.0
        %v1686 = vmax.f32 %v1568, 0.0
        %v1687 = vmax.f32 %v1573, 0.0
        %v1688 = vmax.f32 %v1578, 0.0
        %v1689 = vmax.f32 %v1583, 0.0
        %v1690 = vmax.f32 %v1588, 0.0
        %v1691 = vmax.f32 %v1593, 0.0
        %v1692 = vmax.f32 %v1598, 0.0
        %v1693 = vmax.f32 %v1603, 0.0
        %v1694 = vmax.f32 %v1608, 0.0
        %v1695 = vmax.f32 %v1613, 0.0
        %v1696 = vmax.f32 %v1618, 0.0
        %v1697 = vmax.f32 %v1623, 0.0
        %v1698 = vmax.f32 %v1628, 0.0
        %v1699 = vmax.f32 %v1633, 0.0
        %v1700 = vmax.f32 %v1638, 0.0
        %v1701 = vmax.f32 %v1643, 0.0
        %v1702 = vmax.f32 %v1648, 0.0
        %v1703 = vmax.f32 %v1653, 0.0
        %v1704 = vmax.f32 %v1658, 0.0
        %v1705 = vmax.f32 %v1663, 0.0
        %v1706 = vmax.f32 %v1668, 0.0
        %v1707 = vmax.f32 %v1673, 0.0
        %s1708 = scalar_lea.vmem %s6, %s658
        %v1709 = vld [vmem:[%s1708] sm:$0xff]
        %v1710 = vld [vmem:[%s1708 + $0x8] sm:$0xff]
        %v1711 = vld [vmem:[%s1708 + $0x10] sm:$0xff]
        %v1712 = vld [vmem:[%s1708 + $0x18] sm:$0xff]
        %v1713 = vld [vmem:[%s1708 + $0x20] sm:$0xff]
        %v1714 = vld [vmem:[%s1708 + $0x28] sm:$0xff]
        %v1715 = vld [vmem:[%s1708 + $0x30] sm:$0xff]
        %v1716 = vld [vmem:[%s1708 + $0x38] sm:$0xff]
        %v1717 = vld [vmem:[%s1708 + $0x40] sm:$0xff]
        %v1718 = vld [vmem:[%s1708 + $0x48] sm:$0xff]
        %v1719 = vld [vmem:[%s1708 + $0x50] sm:$0xff]
        %v1720 = vld [vmem:[%s1708 + $0x58] sm:$0xff]
        %v1721 = vld [vmem:[%s1708 + $0x60] sm:$0xff]
        %v1722 = vld [vmem:[%s1708 + $0x68] sm:$0xff]
        %v1723 = vld [vmem:[%s1708 + $0x70] sm:$0xff]
        %v1724 = vld [vmem:[%s1708 + $0x78] sm:$0xff]
        %v1725 = vld [vmem:[%s1708 + $0x80] sm:$0xff]
        %v1726 = vld [vmem:[%s1708 + $0x88] sm:$0xff]
        %v1727 = vld [vmem:[%s1708 + $0x90] sm:$0xff]
        %v1728 = vld [vmem:[%s1708 + $0x98] sm:$0xff]
        %v1729 = vld [vmem:[%s1708 + $0xa0] sm:$0xff]
        %v1730 = vld [vmem:[%s1708 + $0xa8] sm:$0xff]
        %v1731 = vld [vmem:[%s1708 + $0xb0] sm:$0xff]
        %v1732 = vld [vmem:[%s1708 + $0xb8] sm:$0xff]
        %v1733 = vld [vmem:[%s1708 + $0xc0] sm:$0xff]
        %v1734 = vld [vmem:[%s1708 + $0xc8] sm:$0xff]
        %v1735 = vld [vmem:[%s1708 + $0xd0] sm:$0xff]
        %v1736 = vld [vmem:[%s1708 + $0xd8] sm:$0xff]
        %v1737 = vld [vmem:[%s1708 + $0xe0] sm:$0xff]
        %v1738 = vld [vmem:[%s1708 + $0xe8] sm:$0xff]
        %v1739 = vld [vmem:[%s1708 + $0xf0] sm:$0xff]
        %v1740 = vld [vmem:[%s1708 + $0xf8] sm:$0xff]
        %v1741 = vsub.f32 %v1676, %v1709
        %v1742 = vsub.f32 %v1677, %v1710
        %v1743 = vsub.f32 %v1678, %v1711
        %v1744 = vsub.f32 %v1679, %v1712
        %v1745 = vsub.f32 %v1680, %v1713
        %v1746 = vsub.f32 %v1681, %v1714
        %v1747 = vsub.f32 %v1682, %v1715
        %v1748 = vsub.f32 %v1683, %v1716
        %v1749 = vsub.f32 %v1684, %v1717
        %v1750 = vsub.f32 %v1685, %v1718
        %v1751 = vsub.f32 %v1686, %v1719
        %v1752 = vsub.f32 %v1687, %v1720
        %v1753 = vsub.f32 %v1688, %v1721
        %v1754 = vsub.f32 %v1689, %v1722
        %v1755 = vsub.f32 %v1690, %v1723
        %v1756 = vsub.f32 %v1691, %v1724
        %v1757 = vsub.f32 %v1692, %v1725
        %v1758 = vsub.f32 %v1693, %v1726
        %v1759 = vsub.f32 %v1694, %v1727
        %v1760 = vsub.f32 %v1695, %v1728
        %v1761 = vsub.f32 %v1696, %v1729
        %v1762 = vsub.f32 %v1697, %v1730
        %v1763 = vsub.f32 %v1698, %v1731
        %v1764 = vsub.f32 %v1699, %v1732
        %v1765 = vsub.f32 %v1700, %v1733
        %v1766 = vsub.f32 %v1701, %v1734
        %v1767 = vsub.f32 %v1702, %v1735
        %v1768 = vsub.f32 %v1703, %v1736
        %v1769 = vsub.f32 %v1704, %v1737
        %v1770 = vsub.f32 %v1705, %v1738
        %v1771 = vsub.f32 %v1706, %v1739
        %v1772 = vsub.f32 %v1707, %v1740
        %v1773 = vmul.f32 %v1741, %v1741
        %v1774 = vmul.f32 %v1742, %v1742
        %v1775 = vmul.f32 %v1743, %v1743
        %v1776 = vmul.f32 %v1744, %v1744
        %v1777 = vmul.f32 %v1745, %v1745
        %v1778 = vmul.f32 %v1746, %v1746
        %v1779 = vmul.f32 %v1747, %v1747
        %v1780 = vmul.f32 %v1748, %v1748
        %v1781 = vmul.f32 %v1749, %v1749
        %v1782 = vmul.f32 %v1750, %v1750
        %v1783 = vmul.f32 %v1751, %v1751
        %v1784 = vmul.f32 %v1752, %v1752
        %v1785 = vmul.f32 %v1753, %v1753
        %v1786 = vmul.f32 %v1754, %v1754
        %v1787 = vmul.f32 %v1755, %v1755
        %v1788 = vmul.f32 %v1756, %v1756
        %v1789 = vmul.f32 %v1757, %v1757
        %v1790 = vmul.f32 %v1758, %v1758
        %v1791 = vmul.f32 %v1759, %v1759
        %v1792 = vmul.f32 %v1760, %v1760
        %v1793 = vmul.f32 %v1761, %v1761
        %v1794 = vmul.f32 %v1762, %v1762
        %v1795 = vmul.f32 %v1763, %v1763
        %v1796 = vmul.f32 %v1764, %v1764
        %v1797 = vmul.f32 %v1765, %v1765
        %v1798 = vmul.f32 %v1766, %v1766
        %v1799 = vmul.f32 %v1767, %v1767
        %v1800 = vmul.f32 %v1768, %v1768
        %v1801 = vmul.f32 %v1769, %v1769
        %v1802 = vmul.f32 %v1770, %v1770
        %v1803 = vmul.f32 %v1771, %v1771
        %v1804 = vmul.f32 %v1772, %v1772
        %v1805 = vadd.f32 %v1773, %v1774
        %v1806 = vadd.f32 %v1805, %v1775
        %v1807 = vadd.f32 %v1806, %v1776
        %v1808 = vadd.f32 %v1807, %v1777
        %v1809 = vadd.f32 %v1808, %v1778
        %v1810 = vadd.f32 %v1809, %v1779
        %v1811 = vadd.f32 %v1810, %v1780
        %v1812 = vadd.f32 %v1811, %v1781
        %v1813 = vadd.f32 %v1812, %v1782
        %v1814 = vadd.f32 %v1813, %v1783
        %v1815 = vadd.f32 %v1814, %v1784
        %v1816 = vadd.f32 %v1815, %v1785
        %v1817 = vadd.f32 %v1816, %v1786
        %v1818 = vadd.f32 %v1817, %v1787
        %v1819 = vadd.f32 %v1818, %v1788
        %v1820 = vadd.f32 %v1819, %v1789
        %v1821 = vadd.f32 %v1820, %v1790
        %v1822 = vadd.f32 %v1821, %v1791
        %v1823 = vadd.f32 %v1822, %v1792
        %v1824 = vadd.f32 %v1823, %v1793
        %v1825 = vadd.f32 %v1824, %v1794
        %v1826 = vadd.f32 %v1825, %v1795
        %v1827 = vadd.f32 %v1826, %v1796
        %v1828 = vadd.f32 %v1827, %v1797
        %v1829 = vadd.f32 %v1828, %v1798
        %v1830 = vadd.f32 %v1829, %v1799
        %v1831 = vadd.f32 %v1830, %v1800
        %v1832 = vadd.f32 %v1831, %v1801
        %v1833 = vadd.f32 %v1832, %v1802
        %v1834 = vadd.f32 %v1833, %v1803
        %v1835 = vadd.f32 %v1834, %v1804
        %1836 = vadd.xlane.f32.xlu0 %v1835
        %v1837 = vpop.xlane.xlu0 %1836
        %v1838 = vrot.slane %v1837, 4
        %v1839 = vadd.f32 %v1837, %v1838
        %v1840 = vrot.slane %v1839, 2
        %v1841 = vadd.f32 %v1839, %v1840
        %v1842 = vrot.slane %v1841, 1
        %v1843 = vadd.f32 %v1841, %v1842
        %s1844 = vtos %v1843
        %v1845 = vstv %s1844
        %v1846 = vadd.f32 %v656, %v1845
        %v1847 = vmul.f32 %v1676, %v1676
        %v1848 = vmul.f32 %v1677, %v1677
        %v1849 = vmul.f32 %v1678, %v1678
        %v1850 = vmul.f32 %v1679, %v1679
        %v1851 = vmul.f32 %v1680, %v1680
        %v1852 = vmul.f32 %v1681, %v1681
        %v1853 = vmul.f32 %v1682, %v1682
        %v1854 = vmul.f32 %v1683, %v1683
        %v1855 = vmul.f32 %v1684, %v1684
        %v1856 = vmul.f32 %v1685, %v1685
        %v1857 = vmul.f32 %v1686, %v1686
        %v1858 = vmul.f32 %v1687, %v1687
        %v1859 = vmul.f32 %v1688, %v1688
        %v1860 = vmul.f32 %v1689, %v1689
        %v1861 = vmul.f32 %v1690, %v1690
        %v1862 = vmul.f32 %v1691, %v1691
        %v1863 = vmul.f32 %v1692, %v1692
        %v1864 = vmul.f32 %v1693, %v1693
        %v1865 = vmul.f32 %v1694, %v1694
        %v1866 = vmul.f32 %v1695, %v1695
        %v1867 = vmul.f32 %v1696, %v1696
        %v1868 = vmul.f32 %v1697, %v1697
        %v1869 = vmul.f32 %v1698, %v1698
        %v1870 = vmul.f32 %v1699, %v1699
        %v1871 = vmul.f32 %v1700, %v1700
        %v1872 = vmul.f32 %v1701, %v1701
        %v1873 = vmul.f32 %v1702, %v1702
        %v1874 = vmul.f32 %v1703, %v1703
        %v1875 = vmul.f32 %v1704, %v1704
        %v1876 = vmul.f32 %v1705, %v1705
        %v1877 = vmul.f32 %v1706, %v1706
        %v1878 = vmul.f32 %v1707, %v1707
        %v1879 = vadd.f32 %v1847, %v1848
        %v1880 = vadd.f32 %v1879, %v1849
        %v1881 = vadd.f32 %v1880, %v1850
        %v1882 = vadd.f32 %v1881, %v1851
        %v1883 = vadd.f32 %v1882, %v1852
        %v1884 = vadd.f32 %v1883, %v1853
        %v1885 = vadd.f32 %v1884, %v1854
        %v1886 = vadd.f32 %v1885, %v1855
        %v1887 = vadd.f32 %v1886, %v1856
        %v1888 = vadd.f32 %v1887, %v1857
        %v1889 = vadd.f32 %v1888, %v1858
        %v1890 = vadd.f32 %v1889, %v1859
        %v1891 = vadd.f32 %v1890, %v1860
        %v1892 = vadd.f32 %v1891, %v1861
        %v1893 = vadd.f32 %v1892, %v1862
        %v1894 = vadd.f32 %v1893, %v1863
        %v1895 = vadd.f32 %v1894, %v1864
        %v1896 = vadd.f32 %v1895, %v1865
        %v1897 = vadd.f32 %v1896, %v1866
        %v1898 = vadd.f32 %v1897, %v1867
        %v1899 = vadd.f32 %v1898, %v1868
        %v1900 = vadd.f32 %v1899, %v1869
        %v1901 = vadd.f32 %v1900, %v1870
        %v1902 = vadd.f32 %v1901, %v1871
        %v1903 = vadd.f32 %v1902, %v1872
        %v1904 = vadd.f32 %v1903, %v1873
        %v1905 = vadd.f32 %v1904, %v1874
        %v1906 = vadd.f32 %v1905, %v1875
        %v1907 = vadd.f32 %v1906, %v1876
        %v1908 = vadd.f32 %v1907, %v1877
        %v1909 = vadd.f32 %v1908, %v1878
        %1910 = vadd.xlane.f32.xlu0 %v1909
        %v1911 = vpop.xlane.xlu0 %1910
        %v1912 = vrot.slane %v1911, 4
        %v1913 = vadd.f32 %v1911, %v1912
        %v1914 = vrot.slane %v1913, 2
        %v1915 = vadd.f32 %v1913, %v1914
        %v1916 = vrot.slane %v1915, 1
        %v1917 = vadd.f32 %v1915, %v1916
        %s1918 = vtos %v1917
        %v1919 = vstv %s1918
        %v1920 = vadd.f32 %v657, %v1919
        %1921 = vst [vmem:[%s1708] sm:$0xff] %v1676
        %1922 = vst [vmem:[%s1708 + $0x8] sm:$0xff] %v1677
        %1923 = vst [vmem:[%s1708 + $0x10] sm:$0xff] %v1678
        %1924 = vst [vmem:[%s1708 + $0x18] sm:$0xff] %v1679
        %1925 = vst [vmem:[%s1708 + $0x20] sm:$0xff] %v1680
        %1926 = vst [vmem:[%s1708 + $0x28] sm:$0xff] %v1681
        %1927 = vst [vmem:[%s1708 + $0x30] sm:$0xff] %v1682
        %1928 = vst [vmem:[%s1708 + $0x38] sm:$0xff] %v1683
        %1929 = vst [vmem:[%s1708 + $0x40] sm:$0xff] %v1684
        %1930 = vst [vmem:[%s1708 + $0x48] sm:$0xff] %v1685
        %1931 = vst [vmem:[%s1708 + $0x50] sm:$0xff] %v1686
        %1932 = vst [vmem:[%s1708 + $0x58] sm:$0xff] %v1687
        %1933 = vst [vmem:[%s1708 + $0x60] sm:$0xff] %v1688
        %1934 = vst [vmem:[%s1708 + $0x68] sm:$0xff] %v1689
        %1935 = vst [vmem:[%s1708 + $0x70] sm:$0xff] %v1690
        %1936 = vst [vmem:[%s1708 + $0x78] sm:$0xff] %v1691
        %1937 = vst [vmem:[%s1708 + $0x80] sm:$0xff] %v1692
        %1938 = vst [vmem:[%s1708 + $0x88] sm:$0xff] %v1693
        %1939 = vst [vmem:[%s1708 + $0x90] sm:$0xff] %v1694
        %1940 = vst [vmem:[%s1708 + $0x98] sm:$0xff] %v1695
        %1941 = vst [vmem:[%s1708 + $0xa0] sm:$0xff] %v1696
        %1942 = vst [vmem:[%s1708 + $0xa8] sm:$0xff] %v1697
        %1943 = vst [vmem:[%s1708 + $0xb0] sm:$0xff] %v1698
        %1944 = vst [vmem:[%s1708 + $0xb8] sm:$0xff] %v1699
        %1945 = vst [vmem:[%s1708 + $0xc0] sm:$0xff] %v1700
        %1946 = vst [vmem:[%s1708 + $0xc8] sm:$0xff] %v1701
        %1947 = vst [vmem:[%s1708 + $0xd0] sm:$0xff] %v1702
        %1948 = vst [vmem:[%s1708 + $0xd8] sm:$0xff] %v1703
        %1949 = vst [vmem:[%s1708 + $0xe0] sm:$0xff] %v1704
        %1950 = vst [vmem:[%s1708 + $0xe8] sm:$0xff] %v1705
        %1951 = vst [vmem:[%s1708 + $0xf0] sm:$0xff] %v1706
        %1952 = vst [vmem:[%s1708 + $0xf8] sm:$0xff] %v1707
        %v1953 = vpack.c.bf16 %v1677, %v1676
        %v1954 = vpack.c.bf16 %v1679, %v1678
        %v1955 = vpack.c.bf16 %v1681, %v1680
        %v1956 = vpack.c.bf16 %v1683, %v1682
        %v1957 = vpack.c.bf16 %v1685, %v1684
        %v1958 = vpack.c.bf16 %v1687, %v1686
        %v1959 = vpack.c.bf16 %v1689, %v1688
        %v1960 = vpack.c.bf16 %v1691, %v1690
        %v1961 = vpack.c.bf16 %v1693, %v1692
        %v1962 = vpack.c.bf16 %v1695, %v1694
        %v1963 = vpack.c.bf16 %v1697, %v1696
        %v1964 = vpack.c.bf16 %v1699, %v1698
        %v1965 = vpack.c.bf16 %v1701, %v1700
        %v1966 = vpack.c.bf16 %v1703, %v1702
        %v1967 = vpack.c.bf16 %v1705, %v1704
        %v1968 = vpack.c.bf16 %v1707, %v1706
        %s1969 = sshra.s32 %s658, 4
        %s1970 = sand.u32 %s658, 15
        %s1971 = smul.addr %s1969, 8
        %s1972 = scalar_lea.vmem [#allocation4], %s1971
        %1973 = vst [vmem:[%s1972] sm:$0xff] %v1953
        %1974 = vst [vmem:[%s1972 + $0x8] sm:$0xff] %v1954
        %1975 = vst [vmem:[%s1972 + $0x10] sm:$0xff] %v1955
        %1976 = vst [vmem:[%s1972 + $0x18] sm:$0xff] %v1956
        %1977 = vst [vmem:[%s1972 + $0x20] sm:$0xff] %v1957
        %1978 = vst [vmem:[%s1972 + $0x28] sm:$0xff] %v1958
        %1979 = vst [vmem:[%s1972 + $0x30] sm:$0xff] %v1959
        %1980 = vst [vmem:[%s1972 + $0x38] sm:$0xff] %v1960
        %1981 = vst [vmem:[%s1972 + $0x40] sm:$0xff] %v1961
        %1982 = vst [vmem:[%s1972 + $0x48] sm:$0xff] %v1962
        %1983 = vst [vmem:[%s1972 + $0x50] sm:$0xff] %v1963
        %1984 = vst [vmem:[%s1972 + $0x58] sm:$0xff] %v1964
        %1985 = vst [vmem:[%s1972 + $0x60] sm:$0xff] %v1965
        %1986 = vst [vmem:[%s1972 + $0x68] sm:$0xff] %v1966
        %1987 = vst [vmem:[%s1972 + $0x70] sm:$0xff] %v1967
        %1988 = vst [vmem:[%s1972 + $0x78] sm:$0xff] %v1968
      $region48: #{ignn_forward.2} parent=42 // loop_footer
        %s655 = sadd.s32 1, %s651
      $region49: #{ignn_forward.2} parent=42 // loop_footer_branch
        %650 = sbr.rel target = $region45
      $region50: #{ignn_forward.2} parent=42 // loop_exit
        _
      loop: start=0, step=1, limit=2
      $region51: #{ignn_forward.2} parent=42 // loop_pre_header
        _
      $region52: #{ignn_forward.2} parent=42 // loop_header
        %s1990 = sphi 0, %s1994
        %p1991 = scmp.ge.s32.totalorder %s1990, 2
      $region53: #{ignn_forward.2} parent=42 // loop_header_branch
        %1993 = sbr.rel (%p1991) target = $region57
      $region54: #{ignn_forward.2} parent=42 // loop_body
        %s1995 = smul.u32 %s1990, 256
        %s1996 = sshra.s32 %s1995, 4
        %s1997 = sand.u32 %s1995, 15
        %s1998 = smul.addr %s1996, 8
        %s1999 = scalar_lea.vmem [#allocation4], %s1998
        %v2000 = vld [vmem:[%s1999] sm:$0xff]
        %v2001 = vld [vmem:[%s1999 + $0x8] sm:$0xff]
        %v2002 = vld [vmem:[%s1999 + $0x10] sm:$0xff]
        %v2003 = vld [vmem:[%s1999 + $0x18] sm:$0xff]
        %v2004 = vld [vmem:[%s1999 + $0x20] sm:$0xff]
        %v2005 = vld [vmem:[%s1999 + $0x28] sm:$0xff]
        %v2006 = vld [vmem:[%s1999 + $0x30] sm:$0xff]
        %v2007 = vld [vmem:[%s1999 + $0x38] sm:$0xff]
        %v2008 = vld [vmem:[%s1999 + $0x40] sm:$0xff]
        %v2009 = vld [vmem:[%s1999 + $0x48] sm:$0xff]
        %v2010 = vld [vmem:[%s1999 + $0x50] sm:$0xff]
        %v2011 = vld [vmem:[%s1999 + $0x58] sm:$0xff]
        %v2012 = vld [vmem:[%s1999 + $0x60] sm:$0xff]
        %v2013 = vld [vmem:[%s1999 + $0x68] sm:$0xff]
        %v2014 = vld [vmem:[%s1999 + $0x70] sm:$0xff]
        %v2015 = vld [vmem:[%s1999 + $0x78] sm:$0xff]
        %s2016 = smul.addr %s1996, 8
        %s2017 = scalar_lea.vmem [#allocation3], %s2016
        %2018 = vst [vmem:[%s2017] sm:$0xff] %v2000
        %2019 = vst [vmem:[%s2017 + $0x8] sm:$0xff] %v2001
        %2020 = vst [vmem:[%s2017 + $0x10] sm:$0xff] %v2002
        %2021 = vst [vmem:[%s2017 + $0x18] sm:$0xff] %v2003
        %2022 = vst [vmem:[%s2017 + $0x20] sm:$0xff] %v2004
        %2023 = vst [vmem:[%s2017 + $0x28] sm:$0xff] %v2005
        %2024 = vst [vmem:[%s2017 + $0x30] sm:$0xff] %v2006
        %2025 = vst [vmem:[%s2017 + $0x38] sm:$0xff] %v2007
        %2026 = vst [vmem:[%s2017 + $0x40] sm:$0xff] %v2008
        %2027 = vst [vmem:[%s2017 + $0x48] sm:$0xff] %v2009
        %2028 = vst [vmem:[%s2017 + $0x50] sm:$0xff] %v2010
        %2029 = vst [vmem:[%s2017 + $0x58] sm:$0xff] %v2011
        %2030 = vst [vmem:[%s2017 + $0x60] sm:$0xff] %v2012
        %2031 = vst [vmem:[%s2017 + $0x68] sm:$0xff] %v2013
        %2032 = vst [vmem:[%s2017 + $0x70] sm:$0xff] %v2014
        %2033 = vst [vmem:[%s2017 + $0x78] sm:$0xff] %v2015
      $region55: #{ignn_forward.2} parent=42 // loop_footer
        %s1994 = sadd.s32 1, %s1990
      $region56: #{ignn_forward.2} parent=42 // loop_footer_branch
        %1989 = sbr.rel target = $region52
      $region57: #{ignn_forward.2} parent=42 // loop_exit
        _
      %s2034 = vtos %v656
      %s2035 = vtos %v657
      %s2036 = smul.f32 %s2035, 1e-06
      %p2037 = scmp.gt.f32.partialorder %s2034, %s2036
      %s2038 = scalar_select %p2037, 1, 0
      %2039 = sst [smem:[%s637]] %s2038
    $region43: #{ignn_forward.2} parent=36 // pred_fallthru
      _
  $region37: #{ignn_forward.2} parent=0 // loop_footer
    %s644 = sadd.s32 1, %s640
  $region38: #{ignn_forward.2} parent=0 // loop_footer_branch
    %639 = sbr.rel target = $region34
  $region39: #{ignn_forward.2} parent=0 // loop_exit
    _
  // Predicated region
  $region58: #{ignn_forward.2} parent=0 // pred_check
    _
  $region59: #{ignn_forward.2} parent=0 // pred_check_branch
    %2041 = sbr.rel (0) target = $region61
  $region60: #{ignn_forward.2} parent=0 // pred_region
    _
  $region61: #{ignn_forward.2} parent=0 // pred_fallthru
    _
  // Predicated region
  $region62: #{ignn_forward.2} parent=0 // pred_check
    _
  $region63: #{ignn_forward.2} parent=0 // pred_check_branch
    %2043 = sbr.rel (0) target = $region65
  $region64: #{ignn_forward.2} parent=0 // pred_region
    _
  $region65: #{ignn_forward.2} parent=0 // pred_fallthru
    _

</llo_original>
